<compile_context>
chip_gen: v5e
topology: v5e:2x2
jax: 0.10.0
libtpu: 0.0.40
codegen_flags: <defaults>
</compile_context>

<pallas_src>
import jax
import jax.numpy as jnp
from jax.experimental import pallas as pl
from jax.experimental.pallas import tpu as pltpu


def _round_up(x, m):
    return ((x + m - 1) // m) * m


def _cdiv(a, b):
    return (a + b - 1) // b


def lat_encoder_kernel(x_ref, w1_ref, b1_ref, w2_ref, b2_ref, out_ref):
    # x_ref:   (TB, D)    f32   activation tile (batch on sublanes, feats on lanes)
    # w1_ref:  (NB, D, D) bf16  per-block first Linear,  (in, out) layout
    # b1_ref:  (NB, D)    f32
    # w2_ref:  (NB, D, D) bf16  per-block second Linear, (in, out) layout
    # b2_ref:  (NB, D)    f32
    # out_ref: (TB, D)    f32
    n_blocks = w1_ref.shape[0]
    x = x_ref[...].astype(jnp.float32)           # residual accumulator stays f32
    for blk in range(n_blocks):                  # static unroll (NB == 8) -> LLO visibility
        h = jnp.dot(x.astype(jnp.bfloat16), w1_ref[blk],
                    preferred_element_type=jnp.float32) + b1_ref[blk]
        h = jnp.where(h >= 0, h, 0.2 * h)        # LeakyReLU(0.2), f32 on the VPU
        x = x + jnp.dot(h.astype(jnp.bfloat16), w2_ref[blk],
                        preferred_element_type=jnp.float32) + b2_ref[blk]
    out_ref[...] = x.astype(out_ref.dtype)


def lat_encoder(lat, w1, b1, w2, b2, *, batch_tile=512):
    """lat: f32 [B, D].  w1, w2: [NB, D, D] ((in, out) layout); b1, b2: [NB, D]."""
    B, D = lat.shape
    NB = w1.shape[0]
    assert w1.shape == (NB, D, D) and w2.shape == (NB, D, D)
    assert b1.shape == (NB, D) and b2.shape == (NB, D)

    # MXU operands in bf16; biases / elementwise math stay f32.
    w1 = w1.astype(jnp.bfloat16)
    w2 = w2.astype(jnp.bfloat16)
    b1 = b1.astype(jnp.float32)
    b2 = b2.astype(jnp.float32)

    # --- batch tiling -------------------------------------------------------
    # >= 2 tiles and an even tile count (v7x dual-TC sharding, pipelining), but
    # never more tiles than real sublane groups (no pure-padding tiles), and
    # rows distributed evenly so padding stays < 1 sublane group per tile.
    cap = max(1, _cdiv(B, 8))
    n_tiles = min(max(2, 2 * _cdiv(B, 2 * batch_tile)), cap)
    TB = _round_up(_cdiv(B, n_tiles), 8)
    Bp = n_tiles * TB
    x = lat if Bp == B else jnp.pad(lat, ((0, Bp - B), (0, 0)))

    weight_bytes = 2 * NB * D * D * 2 + 2 * NB * D * 4      # bf16 weights + f32 biases
    act_bytes = 2 * 2 * TB * D * 4                          # in + out, double-buffered
    flops = 4 * NB * Bp * D * D                             # 2 matmuls/block/row
    bytes_accessed = 2 * Bp * D * 4 + weight_bytes

    def build(single_buffer_weights):
        # Resident weights (constant index_map) are fetched once; single-buffer
        # them so the pipeline does not waste a second VMEM copy.
        wmode = {"pipeline_mode": pl.Buffered(1)} if single_buffer_weights else {}
        return pl.pallas_call(
            lat_encoder_kernel,
            out_shape=jax.ShapeDtypeStruct((Bp, D), lat.dtype),
            grid_spec=pltpu.PrefetchScalarGridSpec(
                num_scalar_prefetch=0,
                grid=(n_tiles,),
                in_specs=[
                    pl.BlockSpec((TB, D), lambda i: (i, 0)),              # activations
                    pl.BlockSpec((NB, D, D), lambda i: (0, 0, 0), **wmode),
                    pl.BlockSpec((NB, D), lambda i: (0, 0), **wmode),
                    pl.BlockSpec((NB, D, D), lambda i: (0, 0, 0), **wmode),
                    pl.BlockSpec((NB, D), lambda i: (0, 0), **wmode),
                ],
                out_specs=pl.BlockSpec((TB, D), lambda i: (i, 0)),
            ),
            compiler_params=pltpu.CompilerParams(
                dimension_semantics=("parallel",),   # batch tiles shard across TCs
                vmem_limit_bytes=int(min(64 << 20,
                                         max(32 << 20,
                                             2 * (2 * weight_bytes + act_bytes)))),
            ),
            cost_estimate=pl.CostEstimate(
                flops=flops, transcendentals=0, bytes_accessed=bytes_accessed),
        )

    try:
        out = build(True)(x, w1, b1, w2, b2)
    except Exception:
        # TODO(synk): pl.Buffered(1) single-buffering rejected by this jax/Mosaic
        # version; fall back to default double-buffered resident weights.
        out = build(False)(x, w1, b1, w2, b2)
    return out[:B]


def _reference_f32(lat, w1, b1, w2, b2):
    """Full-f32 reference (PyTorch semantics)."""
    x = lat.astype(jnp.float32)
    for blk in range(w1.shape[0]):
        h = jnp.dot(x, w1[blk], precision=jax.lax.Precision.HIGHEST) + b1[blk]
        h = jnp.where(h >= 0, h, 0.2 * h)
        x = x + jnp.dot(h, w2[blk], precision=jax.lax.Precision.HIGHEST) + b2[blk]
    return x


def _reference_bf16(lat, w1, b1, w2, b2):
    """Same numerics as the kernel: bf16 MXU operands, f32 accumulate/elementwise."""
    x = lat.astype(jnp.float32)
    w1 = w1.astype(jnp.bfloat16)
    w2 = w2.astype(jnp.bfloat16)
    for blk in range(w1.shape[0]):
        h = jnp.dot(x.astype(jnp.bfloat16), w1[blk],
                    preferred_element_type=jnp.float32) + b1[blk]
        h = jnp.where(h >= 0, h, 0.2 * h)
        x = x + jnp.dot(h.astype(jnp.bfloat16), w2[blk],
                        preferred_element_type=jnp.float32) + b2[blk]
    return x


if __name__ == "__main__":
    # lat_size = 128 (> 3, so self.lat_size == lat_size and all 8 blocks are D -> D).
    D, NB = 128, 8

    key = jax.random.PRNGKey(0)
    k_x, k_w1, k_b1, k_w2, k_b2 = jax.random.split(key, 5)

    bound = 1.0 / jnp.sqrt(D)  # nn.Linear default uniform init scale
    w1 = jax.random.uniform(k_w1, (NB, D, D), jnp.float32, -bound, bound)
    b1 = jax.random.uniform(k_b1, (NB, D), jnp.float32, -bound, bound)
    w2 = jax.random.uniform(k_w2, (NB, D, D), jnp.float32, -bound, bound)
    b2 = jax.random.uniform(k_b2, (NB, D), jnp.float32, -bound, bound)

    # Exercise both the grid=(1,) (B=8) and grid=(2,) (B=48) paths.
    for B in (8, 48):
        lat = jax.random.normal(jax.random.fold_in(k_x, B), (B, D), jnp.float32)

        out = jax.block_until_ready(lat_encoder(lat, w1, b1, w2, b2))
        assert out.shape == (B, D)

        # 1) Exact-path check: kernel vs a JAX reference using identical
        #    bf16-operand / f32-accumulate numerics.
        ref_bf16 = _reference_bf16(lat, w1, b1, w2, b2)
        err_bf16 = float(jnp.max(jnp.abs(out - ref_bf16)))
        assert jnp.allclose(out, ref_bf16, atol=1e-3, rtol=1e-3), (
            f"B={B}: mismatch vs bf16-path reference: {err_bf16}")

        # 2) Precision-tradeoff sanity check vs the full-f32 reference.
        ref_f32 = _reference_f32(lat, w1, b1, w2, b2)
        rel = float(jnp.linalg.norm(out - ref_f32) / jnp.linalg.norm(ref_f32))
        assert rel < 5e-2, f"B={B}: bf16 precision drift too large: rel={rel}"

    print("KERNEL_OK")
</pallas_src>

<mosaic_0001>
module attributes {stable_mosaic.version = 11 : i64} {
  func.func @lat_encoder_kernel(%arg0: i32, %arg1: memref<8x128xf32, #tpu.memory_space<vmem>>, %arg2: memref<8x128x128xbf16, #tpu.memory_space<vmem>>, %arg3: memref<8x128xf32, #tpu.memory_space<vmem>>, %arg4: memref<8x128x128xbf16, #tpu.memory_space<vmem>>, %arg5: memref<8x128xf32, #tpu.memory_space<vmem>>, %arg6: memref<8x128xf32, #tpu.memory_space<vmem>>) attributes {dimension_semantics = [#tpu.dimension_semantics<parallel>], iteration_bounds = array<i64: 1>, scalar_prefetch = 0 : i64, scratch_operands = 0 : i64, tpu.core_type = #tpu.core_type<tc>, window_params = [{transform_indices = @transform_0, window_bounds = array<i64: 8, 128>}, {pipeline_mode = #tpu.pipeline_mode<synchronous>, transform_indices = @transform_1, window_bounds = array<i64: 8, 128, 128>}, {pipeline_mode = #tpu.pipeline_mode<synchronous>, transform_indices = @transform_2, window_bounds = array<i64: 8, 128>}, {pipeline_mode = #tpu.pipeline_mode<synchronous>, transform_indices = @transform_3, window_bounds = array<i64: 8, 128, 128>}, {pipeline_mode = #tpu.pipeline_mode<synchronous>, transform_indices = @transform_4, window_bounds = array<i64: 8, 128>}, {transform_indices = @transform_5, window_bounds = array<i64: 8, 128>}]} {
    %c0 = arith.constant 0 : index
    %c0_0 = arith.constant 0 : index
    %0 = vector.load %arg1[%c0, %c0_0] : memref<8x128xf32, #tpu.memory_space<vmem>>, vector<8x128xf32>
    %1 = arith.truncf %0 : vector<8x128xf32> to vector<8x128xbf16>
    %c0_1 = arith.constant 0 : index
    %c0_2 = arith.constant 0 : index
    %c0_3 = arith.constant 0 : index
    %2 = vector.load %arg2[%c0_1, %c0_2, %c0_3] : memref<8x128x128xbf16, #tpu.memory_space<vmem>>, vector<1x128x128xbf16>
    %3 = vector.shape_cast %2 : vector<1x128x128xbf16> to vector<128x128xbf16>
    %cst = arith.constant dense<0.000000e+00> : vector<8x128xf32>
    %4 = tpu.matmul %1, %3, %cst {dimension_numbers = #tpu.dot_dimension_numbers<[1], [0], [0], [1], [0, 0, 1, 1], [], []>} : vector<8x128xbf16>, vector<128x128xbf16>, vector<8x128xf32> -> vector<8x128xf32>
    %c0_4 = arith.constant 0 : index
    %c0_5 = arith.constant 0 : index
    %5 = vector.load %arg3[%c0_4, %c0_5] : memref<8x128xf32, #tpu.memory_space<vmem>>, vector<1x128xf32>
    %6 = vector.shape_cast %5 : vector<1x128xf32> to vector<128xf32>
    %7 = vector.shape_cast %6 : vector<128xf32> to vector<1x128xf32>
    %8 = vector.broadcast %7 : vector<1x128xf32> to vector<8x128xf32>
    %9 = arith.addf %4, %8 : vector<8x128xf32>
    %cst_6 = arith.constant 0.000000e+00 : f32
    %10 = vector.broadcast %cst_6 : f32 to vector<8x128xf32>
    %11 = arith.cmpf oge, %9, %10 : vector<8x128xf32>
    %cst_7 = arith.constant 2.000000e-01 : f32
    %12 = vector.broadcast %cst_7 : f32 to vector<8x128xf32>
    %13 = arith.mulf %12, %9 : vector<8x128xf32>
    %14 = arith.select %11, %9, %13 : vector<8x128xi1>, vector<8x128xf32>
    %15 = arith.truncf %14 : vector<8x128xf32> to vector<8x128xbf16>
    %c0_8 = arith.constant 0 : index
    %c0_9 = arith.constant 0 : index
    %c0_10 = arith.constant 0 : index
    %16 = vector.load %arg4[%c0_8, %c0_9, %c0_10] : memref<8x128x128xbf16, #tpu.memory_space<vmem>>, vector<1x128x128xbf16>
    %17 = vector.shape_cast %16 : vector<1x128x128xbf16> to vector<128x128xbf16>
    %cst_11 = arith.constant dense<0.000000e+00> : vector<8x128xf32>
    %18 = tpu.matmul %15, %17, %cst_11 {dimension_numbers = #tpu.dot_dimension_numbers<[1], [0], [0], [1], [0, 0, 1, 1], [], []>} : vector<8x128xbf16>, vector<128x128xbf16>, vector<8x128xf32> -> vector<8x128xf32>
    %19 = arith.addf %0, %18 : vector<8x128xf32>
    %c0_12 = arith.constant 0 : index
    %c0_13 = arith.constant 0 : index
    %20 = vector.load %arg5[%c0_12, %c0_13] : memref<8x128xf32, #tpu.memory_space<vmem>>, vector<1x128xf32>
    %21 = vector.shape_cast %20 : vector<1x128xf32> to vector<128xf32>
    %22 = vector.shape_cast %21 : vector<128xf32> to vector<1x128xf32>
    %23 = vector.broadcast %22 : vector<1x128xf32> to vector<8x128xf32>
    %24 = arith.addf %19, %23 : vector<8x128xf32>
    %25 = arith.truncf %24 : vector<8x128xf32> to vector<8x128xbf16>
    %c1 = arith.constant 1 : index
    %c0_14 = arith.constant 0 : index
    %c0_15 = arith.constant 0 : index
    %26 = vector.load %arg2[%c1, %c0_14, %c0_15] : memref<8x128x128xbf16, #tpu.memory_space<vmem>>, vector<1x128x128xbf16>
    %27 = vector.shape_cast %26 : vector<1x128x128xbf16> to vector<128x128xbf16>
    %cst_16 = arith.constant dense<0.000000e+00> : vector<8x128xf32>
    %28 = tpu.matmul %25, %27, %cst_16 {dimension_numbers = #tpu.dot_dimension_numbers<[1], [0], [0], [1], [0, 0, 1, 1], [], []>} : vector<8x128xbf16>, vector<128x128xbf16>, vector<8x128xf32> -> vector<8x128xf32>
    %c1_17 = arith.constant 1 : index
    %c0_18 = arith.constant 0 : index
    %29 = vector.load %arg3[%c1_17, %c0_18] : memref<8x128xf32, #tpu.memory_space<vmem>>, vector<1x128xf32>
    %30 = vector.shape_cast %29 : vector<1x128xf32> to vector<128xf32>
    %31 = vector.shape_cast %30 : vector<128xf32> to vector<1x128xf32>
    %32 = vector.broadcast %31 : vector<1x128xf32> to vector<8x128xf32>
    %33 = arith.addf %28, %32 : vector<8x128xf32>
    %cst_19 = arith.constant 0.000000e+00 : f32
    %34 = vector.broadcast %cst_19 : f32 to vector<8x128xf32>
    %35 = arith.cmpf oge, %33, %34 : vector<8x128xf32>
    %cst_20 = arith.constant 2.000000e-01 : f32
    %36 = vector.broadcast %cst_20 : f32 to vector<8x128xf32>
    %37 = arith.mulf %36, %33 : vector<8x128xf32>
    %38 = arith.select %35, %33, %37 : vector<8x128xi1>, vector<8x128xf32>
    %39 = arith.truncf %38 : vector<8x128xf32> to vector<8x128xbf16>
    %c1_21 = arith.constant 1 : index
    %c0_22 = arith.constant 0 : index
    %c0_23 = arith.constant 0 : index
    %40 = vector.load %arg4[%c1_21, %c0_22, %c0_23] : memref<8x128x128xbf16, #tpu.memory_space<vmem>>, vector<1x128x128xbf16>
    %41 = vector.shape_cast %40 : vector<1x128x128xbf16> to vector<128x128xbf16>
    %cst_24 = arith.constant dense<0.000000e+00> : vector<8x128xf32>
    %42 = tpu.matmul %39, %41, %cst_24 {dimension_numbers = #tpu.dot_dimension_numbers<[1], [0], [0], [1], [0, 0, 1, 1], [], []>} : vector<8x128xbf16>, vector<128x128xbf16>, vector<8x128xf32> -> vector<8x128xf32>
    %43 = arith.addf %24, %42 : vector<8x128xf32>
    %c1_25 = arith.constant 1 : index
    %c0_26 = arith.constant 0 : index
    %44 = vector.load %arg5[%c1_25, %c0_26] : memref<8x128xf32, #tpu.memory_space<vmem>>, vector<1x128xf32>
    %45 = vector.shape_cast %44 : vector<1x128xf32> to vector<128xf32>
    %46 = vector.shape_cast %45 : vector<128xf32> to vector<1x128xf32>
    %47 = vector.broadcast %46 : vector<1x128xf32> to vector<8x128xf32>
    %48 = arith.addf %43, %47 : vector<8x128xf32>
    %49 = arith.truncf %48 : vector<8x128xf32> to vector<8x128xbf16>
    %c2 = arith.constant 2 : index
    %c0_27 = arith.constant 0 : index
    %c0_28 = arith.constant 0 : index
    %50 = vector.load %arg2[%c2, %c0_27, %c0_28] : memref<8x128x128xbf16, #tpu.memory_space<vmem>>, vector<1x128x128xbf16>
    %51 = vector.shape_cast %50 : vector<1x128x128xbf16> to vector<128x128xbf16>
    %cst_29 = arith.constant dense<0.000000e+00> : vector<8x128xf32>
    %52 = tpu.matmul %49, %51, %cst_29 {dimension_numbers = #tpu.dot_dimension_numbers<[1], [0], [0], [1], [0, 0, 1, 1], [], []>} : vector<8x128xbf16>, vector<128x128xbf16>, vector<8x128xf32> -> vector<8x128xf32>
    %c2_30 = arith.constant 2 : index
    %c0_31 = arith.constant 0 : index
    %53 = vector.load %arg3[%c2_30, %c0_31] : memref<8x128xf32, #tpu.memory_space<vmem>>, vector<1x128xf32>
    %54 = vector.shape_cast %53 : vector<1x128xf32> to vector<128xf32>
    %55 = vector.shape_cast %54 : vector<128xf32> to vector<1x128xf32>
    %56 = vector.broadcast %55 : vector<1x128xf32> to vector<8x128xf32>
    %57 = arith.addf %52, %56 : vector<8x128xf32>
    %cst_32 = arith.constant 0.000000e+00 : f32
    %58 = vector.broadcast %cst_32 : f32 to vector<8x128xf32>
    %59 = arith.cmpf oge, %57, %58 : vector<8x128xf32>
    %cst_33 = arith.constant 2.000000e-01 : f32
    %60 = vector.broadcast %cst_33 : f32 to vector<8x128xf32>
    %61 = arith.mulf %60, %57 : vector<8x128xf32>
    %62 = arith.select %59, %57, %61 : vector<8x128xi1>, vector<8x128xf32>
    %63 = arith.truncf %62 : vector<8x128xf32> to vector<8x128xbf16>
    %c2_34 = arith.constant 2 : index
    %c0_35 = arith.constant 0 : index
    %c0_36 = arith.constant 0 : index
    %64 = vector.load %arg4[%c2_34, %c0_35, %c0_36] : memref<8x128x128xbf16, #tpu.memory_space<vmem>>, vector<1x128x128xbf16>
    %65 = vector.shape_cast %64 : vector<1x128x128xbf16> to vector<128x128xbf16>
    %cst_37 = arith.constant dense<0.000000e+00> : vector<8x128xf32>
    %66 = tpu.matmul %63, %65, %cst_37 {dimension_numbers = #tpu.dot_dimension_numbers<[1], [0], [0], [1], [0, 0, 1, 1], [], []>} : vector<8x128xbf16>, vector<128x128xbf16>, vector<8x128xf32> -> vector<8x128xf32>
    %67 = arith.addf %48, %66 : vector<8x128xf32>
    %c2_38 = arith.constant 2 : index
    %c0_39 = arith.constant 0 : index
    %68 = vector.load %arg5[%c2_38, %c0_39] : memref<8x128xf32, #tpu.memory_space<vmem>>, vector<1x128xf32>
    %69 = vector.shape_cast %68 : vector<1x128xf32> to vector<128xf32>
    %70 = vector.shape_cast %69 : vector<128xf32> to vector<1x128xf32>
    %71 = vector.broadcast %70 : vector<1x128xf32> to vector<8x128xf32>
    %72 = arith.addf %67, %71 : vector<8x128xf32>
    %73 = arith.truncf %72 : vector<8x128xf32> to vector<8x128xbf16>
    %c3 = arith.constant 3 : index
    %c0_40 = arith.constant 0 : index
    %c0_41 = arith.constant 0 : index
    %74 = vector.load %arg2[%c3, %c0_40, %c0_41] : memref<8x128x128xbf16, #tpu.memory_space<vmem>>, vector<1x128x128xbf16>
    %75 = vector.shape_cast %74 : vector<1x128x128xbf16> to vector<128x128xbf16>
    %cst_42 = arith.constant dense<0.000000e+00> : vector<8x128xf32>
    %76 = tpu.matmul %73, %75, %cst_42 {dimension_numbers = #tpu.dot_dimension_numbers<[1], [0], [0], [1], [0, 0, 1, 1], [], []>} : vector<8x128xbf16>, vector<128x128xbf16>, vector<8x128xf32> -> vector<8x128xf32>
    %c3_43 = arith.constant 3 : index
    %c0_44 = arith.constant 0 : index
    %77 = vector.load %arg3[%c3_43, %c0_44] : memref<8x128xf32, #tpu.memory_space<vmem>>, vector<1x128xf32>
    %78 = vector.shape_cast %77 : vector<1x128xf32> to vector<128xf32>
    %79 = vector.shape_cast %78 : vector<128xf32> to vector<1x128xf32>
    %80 = vector.broadcast %79 : vector<1x128xf32> to vector<8x128xf32>
    %81 = arith.addf %76, %80 : vector<8x128xf32>
    %cst_45 = arith.constant 0.000000e+00 : f32
    %82 = vector.broadcast %cst_45 : f32 to vector<8x128xf32>
    %83 = arith.cmpf oge, %81, %82 : vector<8x128xf32>
    %cst_46 = arith.constant 2.000000e-01 : f32
    %84 = vector.broadcast %cst_46 : f32 to vector<8x128xf32>
    %85 = arith.mulf %84, %81 : vector<8x128xf32>
    %86 = arith.select %83, %81, %85 : vector<8x128xi1>, vector<8x128xf32>
    %87 = arith.truncf %86 : vector<8x128xf32> to vector<8x128xbf16>
    %c3_47 = arith.constant 3 : index
    %c0_48 = arith.constant 0 : index
    %c0_49 = arith.constant 0 : index
    %88 = vector.load %arg4[%c3_47, %c0_48, %c0_49] : memref<8x128x128xbf16, #tpu.memory_space<vmem>>, vector<1x128x128xbf16>
    %89 = vector.shape_cast %88 : vector<1x128x128xbf16> to vector<128x128xbf16>
    %cst_50 = arith.constant dense<0.000000e+00> : vector<8x128xf32>
    %90 = tpu.matmul %87, %89, %cst_50 {dimension_numbers = #tpu.dot_dimension_numbers<[1], [0], [0], [1], [0, 0, 1, 1], [], []>} : vector<8x128xbf16>, vector<128x128xbf16>, vector<8x128xf32> -> vector<8x128xf32>
    %91 = arith.addf %72, %90 : vector<8x128xf32>
    %c3_51 = arith.constant 3 : index
    %c0_52 = arith.constant 0 : index
    %92 = vector.load %arg5[%c3_51, %c0_52] : memref<8x128xf32, #tpu.memory_space<vmem>>, vector<1x128xf32>
    %93 = vector.shape_cast %92 : vector<1x128xf32> to vector<128xf32>
    %94 = vector.shape_cast %93 : vector<128xf32> to vector<1x128xf32>
    %95 = vector.broadcast %94 : vector<1x128xf32> to vector<8x128xf32>
    %96 = arith.addf %91, %95 : vector<8x128xf32>
    %97 = arith.truncf %96 : vector<8x128xf32> to vector<8x128xbf16>
    %c4 = arith.constant 4 : index
    %c0_53 = arith.constant 0 : index
    %c0_54 = arith.constant 0 : index
    %98 = vector.load %arg2[%c4, %c0_53, %c0_54] : memref<8x128x128xbf16, #tpu.memory_space<vmem>>, vector<1x128x128xbf16>
    %99 = vector.shape_cast %98 : vector<1x128x128xbf16> to vector<128x128xbf16>
    %cst_55 = arith.constant dense<0.000000e+00> : vector<8x128xf32>
    %100 = tpu.matmul %97, %99, %cst_55 {dimension_numbers = #tpu.dot_dimension_numbers<[1], [0], [0], [1], [0, 0, 1, 1], [], []>} : vector<8x128xbf16>, vector<128x128xbf16>, vector<8x128xf32> -> vector<8x128xf32>
    %c4_56 = arith.constant 4 : index
    %c0_57 = arith.constant 0 : index
    %101 = vector.load %arg3[%c4_56, %c0_57] : memref<8x128xf32, #tpu.memory_space<vmem>>, vector<1x128xf32>
    %102 = vector.shape_cast %101 : vector<1x128xf32> to vector<128xf32>
    %103 = vector.shape_cast %102 : vector<128xf32> to vector<1x128xf32>
    %104 = vector.broadcast %103 : vector<1x128xf32> to vector<8x128xf32>
    %105 = arith.addf %100, %104 : vector<8x128xf32>
    %cst_58 = arith.constant 0.000000e+00 : f32
    %106 = vector.broadcast %cst_58 : f32 to vector<8x128xf32>
    %107 = arith.cmpf oge, %105, %106 : vector<8x128xf32>
    %cst_59 = arith.constant 2.000000e-01 : f32
    %108 = vector.broadcast %cst_59 : f32 to vector<8x128xf32>
    %109 = arith.mulf %108, %105 : vector<8x128xf32>
    %110 = arith.select %107, %105, %109 : vector<8x128xi1>, vector<8x128xf32>
    %111 = arith.truncf %110 : vector<8x128xf32> to vector<8x128xbf16>
    %c4_60 = arith.constant 4 : index
    %c0_61 = arith.constant 0 : index
    %c0_62 = arith.constant 0 : index
    %112 = vector.load %arg4[%c4_60, %c0_61, %c0_62] : memref<8x128x128xbf16, #tpu.memory_space<vmem>>, vector<1x128x128xbf16>
    %113 = vector.shape_cast %112 : vector<1x128x128xbf16> to vector<128x128xbf16>
    %cst_63 = arith.constant dense<0.000000e+00> : vector<8x128xf32>
    %114 = tpu.matmul %111, %113, %cst_63 {dimension_numbers = #tpu.dot_dimension_numbers<[1], [0], [0], [1], [0, 0, 1, 1], [], []>} : vector<8x128xbf16>, vector<128x128xbf16>, vector<8x128xf32> -> vector<8x128xf32>
    %115 = arith.addf %96, %114 : vector<8x128xf32>
    %c4_64 = arith.constant 4 : index
    %c0_65 = arith.constant 0 : index
    %116 = vector.load %arg5[%c4_64, %c0_65] : memref<8x128xf32, #tpu.memory_space<vmem>>, vector<1x128xf32>
    %117 = vector.shape_cast %116 : vector<1x128xf32> to vector<128xf32>
    %118 = vector.shape_cast %117 : vector<128xf32> to vector<1x128xf32>
    %119 = vector.broadcast %118 : vector<1x128xf32> to vector<8x128xf32>
    %120 = arith.addf %115, %119 : vector<8x128xf32>
    %121 = arith.truncf %120 : vector<8x128xf32> to vector<8x128xbf16>
    %c5 = arith.constant 5 : index
    %c0_66 = arith.constant 0 : index
    %c0_67 = arith.constant 0 : index
    %122 = vector.load %arg2[%c5, %c0_66, %c0_67] : memref<8x128x128xbf16, #tpu.memory_space<vmem>>, vector<1x128x128xbf16>
    %123 = vector.shape_cast %122 : vector<1x128x128xbf16> to vector<128x128xbf16>
    %cst_68 = arith.constant dense<0.000000e+00> : vector<8x128xf32>
    %124 = tpu.matmul %121, %123, %cst_68 {dimension_numbers = #tpu.dot_dimension_numbers<[1], [0], [0], [1], [0, 0, 1, 1], [], []>} : vector<8x128xbf16>, vector<128x128xbf16>, vector<8x128xf32> -> vector<8x128xf32>
    %c5_69 = arith.constant 5 : index
    %c0_70 = arith.constant 0 : index
    %125 = vector.load %arg3[%c5_69, %c0_70] : memref<8x128xf32, #tpu.memory_space<vmem>>, vector<1x128xf32>
    %126 = vector.shape_cast %125 : vector<1x128xf32> to vector<128xf32>
    %127 = vector.shape_cast %126 : vector<128xf32> to vector<1x128xf32>
    %128 = vector.broadcast %127 : vector<1x128xf32> to vector<8x128xf32>
    %129 = arith.addf %124, %128 : vector<8x128xf32>
    %cst_71 = arith.constant 0.000000e+00 : f32
    %130 = vector.broadcast %cst_71 : f32 to vector<8x128xf32>
    %131 = arith.cmpf oge, %129, %130 : vector<8x128xf32>
    %cst_72 = arith.constant 2.000000e-01 : f32
    %132 = vector.broadcast %cst_72 : f32 to vector<8x128xf32>
    %133 = arith.mulf %132, %129 : vector<8x128xf32>
    %134 = arith.select %131, %129, %133 : vector<8x128xi1>, vector<8x128xf32>
    %135 = arith.truncf %134 : vector<8x128xf32> to vector<8x128xbf16>
    %c5_73 = arith.constant 5 : index
    %c0_74 = arith.constant 0 : index
    %c0_75 = arith.constant 0 : index
    %136 = vector.load %arg4[%c5_73, %c0_74, %c0_75] : memref<8x128x128xbf16, #tpu.memory_space<vmem>>, vector<1x128x128xbf16>
    %137 = vector.shape_cast %136 : vector<1x128x128xbf16> to vector<128x128xbf16>
    %cst_76 = arith.constant dense<0.000000e+00> : vector<8x128xf32>
    %138 = tpu.matmul %135, %137, %cst_76 {dimension_numbers = #tpu.dot_dimension_numbers<[1], [0], [0], [1], [0, 0, 1, 1], [], []>} : vector<8x128xbf16>, vector<128x128xbf16>, vector<8x128xf32> -> vector<8x128xf32>
    %139 = arith.addf %120, %138 : vector<8x128xf32>
    %c5_77 = arith.constant 5 : index
    %c0_78 = arith.constant 0 : index
    %140 = vector.load %arg5[%c5_77, %c0_78] : memref<8x128xf32, #tpu.memory_space<vmem>>, vector<1x128xf32>
    %141 = vector.shape_cast %140 : vector<1x128xf32> to vector<128xf32>
    %142 = vector.shape_cast %141 : vector<128xf32> to vector<1x128xf32>
    %143 = vector.broadcast %142 : vector<1x128xf32> to vector<8x128xf32>
    %144 = arith.addf %139, %143 : vector<8x128xf32>
    %145 = arith.truncf %144 : vector<8x128xf32> to vector<8x128xbf16>
    %c6 = arith.constant 6 : index
    %c0_79 = arith.constant 0 : index
    %c0_80 = arith.constant 0 : index
    %146 = vector.load %arg2[%c6, %c0_79, %c0_80] : memref<8x128x128xbf16, #tpu.memory_space<vmem>>, vector<1x128x128xbf16>
    %147 = vector.shape_cast %146 : vector<1x128x128xbf16> to vector<128x128xbf16>
    %cst_81 = arith.constant dense<0.000000e+00> : vector<8x128xf32>
    %148 = tpu.matmul %145, %147, %cst_81 {dimension_numbers = #tpu.dot_dimension_numbers<[1], [0], [0], [1], [0, 0, 1, 1], [], []>} : vector<8x128xbf16>, vector<128x128xbf16>, vector<8x128xf32> -> vector<8x128xf32>
    %c6_82 = arith.constant 6 : index
    %c0_83 = arith.constant 0 : index
    %149 = vector.load %arg3[%c6_82, %c0_83] : memref<8x128xf32, #tpu.memory_space<vmem>>, vector<1x128xf32>
    %150 = vector.shape_cast %149 : vector<1x128xf32> to vector<128xf32>
    %151 = vector.shape_cast %150 : vector<128xf32> to vector<1x128xf32>
    %152 = vector.broadcast %151 : vector<1x128xf32> to vector<8x128xf32>
    %153 = arith.addf %148, %152 : vector<8x128xf32>
    %cst_84 = arith.constant 0.000000e+00 : f32
    %154 = vector.broadcast %cst_84 : f32 to vector<8x128xf32>
    %155 = arith.cmpf oge, %153, %154 : vector<8x128xf32>
    %cst_85 = arith.constant 2.000000e-01 : f32
    %156 = vector.broadcast %cst_85 : f32 to vector<8x128xf32>
    %157 = arith.mulf %156, %153 : vector<8x128xf32>
    %158 = arith.select %155, %153, %157 : vector<8x128xi1>, vector<8x128xf32>
    %159 = arith.truncf %158 : vector<8x128xf32> to vector<8x128xbf16>
    %c6_86 = arith.constant 6 : index
    %c0_87 = arith.constant 0 : index
    %c0_88 = arith.constant 0 : index
    %160 = vector.load %arg4[%c6_86, %c0_87, %c0_88] : memref<8x128x128xbf16, #tpu.memory_space<vmem>>, vector<1x128x128xbf16>
    %161 = vector.shape_cast %160 : vector<1x128x128xbf16> to vector<128x128xbf16>
    %cst_89 = arith.constant dense<0.000000e+00> : vector<8x128xf32>
    %162 = tpu.matmul %159, %161, %cst_89 {dimension_numbers = #tpu.dot_dimension_numbers<[1], [0], [0], [1], [0, 0, 1, 1], [], []>} : vector<8x128xbf16>, vector<128x128xbf16>, vector<8x128xf32> -> vector<8x128xf32>
    %163 = arith.addf %144, %162 : vector<8x128xf32>
    %c6_90 = arith.constant 6 : index
    %c0_91 = arith.constant 0 : index
    %164 = vector.load %arg5[%c6_90, %c0_91] : memref<8x128xf32, #tpu.memory_space<vmem>>, vector<1x128xf32>
    %165 = vector.shape_cast %164 : vector<1x128xf32> to vector<128xf32>
    %166 = vector.shape_cast %165 : vector<128xf32> to vector<1x128xf32>
    %167 = vector.broadcast %166 : vector<1x128xf32> to vector<8x128xf32>
    %168 = arith.addf %163, %167 : vector<8x128xf32>
    %169 = arith.truncf %168 : vector<8x128xf32> to vector<8x128xbf16>
    %c7 = arith.constant 7 : index
    %c0_92 = arith.constant 0 : index
    %c0_93 = arith.constant 0 : index
    %170 = vector.load %arg2[%c7, %c0_92, %c0_93] : memref<8x128x128xbf16, #tpu.memory_space<vmem>>, vector<1x128x128xbf16>
    %171 = vector.shape_cast %170 : vector<1x128x128xbf16> to vector<128x128xbf16>
    %cst_94 = arith.constant dense<0.000000e+00> : vector<8x128xf32>
    %172 = tpu.matmul %169, %171, %cst_94 {dimension_numbers = #tpu.dot_dimension_numbers<[1], [0], [0], [1], [0, 0, 1, 1], [], []>} : vector<8x128xbf16>, vector<128x128xbf16>, vector<8x128xf32> -> vector<8x128xf32>
    %c7_95 = arith.constant 7 : index
    %c0_96 = arith.constant 0 : index
    %173 = vector.load %arg3[%c7_95, %c0_96] : memref<8x128xf32, #tpu.memory_space<vmem>>, vector<1x128xf32>
    %174 = vector.shape_cast %173 : vector<1x128xf32> to vector<128xf32>
    %175 = vector.shape_cast %174 : vector<128xf32> to vector<1x128xf32>
    %176 = vector.broadcast %175 : vector<1x128xf32> to vector<8x128xf32>
    %177 = arith.addf %172, %176 : vector<8x128xf32>
    %cst_97 = arith.constant 0.000000e+00 : f32
    %178 = vector.broadcast %cst_97 : f32 to vector<8x128xf32>
    %179 = arith.cmpf oge, %177, %178 : vector<8x128xf32>
    %cst_98 = arith.constant 2.000000e-01 : f32
    %180 = vector.broadcast %cst_98 : f32 to vector<8x128xf32>
    %181 = arith.mulf %180, %177 : vector<8x128xf32>
    %182 = arith.select %179, %177, %181 : vector<8x128xi1>, vector<8x128xf32>
    %183 = arith.truncf %182 : vector<8x128xf32> to vector<8x128xbf16>
    %c7_99 = arith.constant 7 : index
    %c0_100 = arith.constant 0 : index
    %c0_101 = arith.constant 0 : index
    %184 = vector.load %arg4[%c7_99, %c0_100, %c0_101] : memref<8x128x128xbf16, #tpu.memory_space<vmem>>, vector<1x128x128xbf16>
    %185 = vector.shape_cast %184 : vector<1x128x128xbf16> to vector<128x128xbf16>
    %cst_102 = arith.constant dense<0.000000e+00> : vector<8x128xf32>
    %186 = tpu.matmul %183, %185, %cst_102 {dimension_numbers = #tpu.dot_dimension_numbers<[1], [0], [0], [1], [0, 0, 1, 1], [], []>} : vector<8x128xbf16>, vector<128x128xbf16>, vector<8x128xf32> -> vector<8x128xf32>
    %187 = arith.addf %168, %186 : vector<8x128xf32>
    %c7_103 = arith.constant 7 : index
    %c0_104 = arith.constant 0 : index
    %188 = vector.load %arg5[%c7_103, %c0_104] : memref<8x128xf32, #tpu.memory_space<vmem>>, vector<1x128xf32>
    %189 = vector.shape_cast %188 : vector<1x128xf32> to vector<128xf32>
    %190 = vector.shape_cast %189 : vector<128xf32> to vector<1x128xf32>
    %191 = vector.broadcast %190 : vector<1x128xf32> to vector<8x128xf32>
    %192 = arith.addf %187, %191 : vector<8x128xf32>
    %c0_105 = arith.constant 0 : index
    %c0_106 = arith.constant 0 : index
    %193 = vector.load %arg6[%c0_105, %c0_106] : memref<8x128xf32, #tpu.memory_space<vmem>>, vector<8x128xf32>
    tpu.vector_store %arg6[%c0_105, %c0_106], %192 {strides = array<i32>} : memref<8x128xf32, #tpu.memory_space<vmem>>, vector<8x128xf32>,
    return
  }
  func.func @transform_0(%arg0: i32) -> (i32, i32) {
    %c0_i32 = arith.constant 0 : i32
    %c0_i32_0 = arith.constant 0 : i32
    return %arg0, %c0_i32 : i32, i32
  }
  func.func @transform_1(%arg0: i32) -> (i32, i32, i32) {
    %c0_i32 = arith.constant 0 : i32
    %c0_i32_0 = arith.constant 0 : i32
    %c0_i32_1 = arith.constant 0 : i32
    %c0_i32_2 = arith.constant 0 : i32
    return %c0_i32, %c0_i32_0, %c0_i32_1 : i32, i32, i32
  }
  func.func @transform_2(%arg0: i32) -> (i32, i32) {
    %c0_i32 = arith.constant 0 : i32
    %c0_i32_0 = arith.constant 0 : i32
    %c0_i32_1 = arith.constant 0 : i32
    return %c0_i32, %c0_i32_0 : i32, i32
  }
  func.func @transform_3(%arg0: i32) -> (i32, i32, i32) {
    %c0_i32 = arith.constant 0 : i32
    %c0_i32_0 = arith.constant 0 : i32
    %c0_i32_1 = arith.constant 0 : i32
    %c0_i32_2 = arith.constant 0 : i32
    return %c0_i32, %c0_i32_0, %c0_i32_1 : i32, i32, i32
  }
  func.func @transform_4(%arg0: i32) -> (i32, i32) {
    %c0_i32 = arith.constant 0 : i32
    %c0_i32_0 = arith.constant 0 : i32
    %c0_i32_1 = arith.constant 0 : i32
    return %c0_i32, %c0_i32_0 : i32, i32
  }
  func.func @transform_5(%arg0: i32) -> (i32, i32) {
    %c0_i32 = arith.constant 0 : i32
    %c0_i32_0 = arith.constant 0 : i32
    return %arg0, %c0_i32 : i32, i32
  }
}

module attributes {stable_mosaic.version = 11 : i64} {
  func.func @lat_encoder_kernel(%arg0: i32, %arg1: memref<8x128xf32, #tpu.memory_space<vmem>>, %arg2: memref<8x128x128xbf16, #tpu.memory_space<vmem>>, %arg3: memref<8x128xf32, #tpu.memory_space<vmem>>, %arg4: memref<8x128x128xbf16, #tpu.memory_space<vmem>>, %arg5: memref<8x128xf32, #tpu.memory_space<vmem>>, %arg6: memref<8x128xf32, #tpu.memory_space<vmem>>) attributes {dimension_semantics = [#tpu.dimension_semantics<parallel>], iteration_bounds = array<i64: 1>, scalar_prefetch = 0 : i64, scratch_operands = 0 : i64, tpu.core_type = #tpu.core_type<tc>, window_params = [{transform_indices = @transform_0, window_bounds = array<i64: 8, 128>}, {pipeline_mode = #tpu.pipeline_mode<synchronous>, transform_indices = @transform_1, window_bounds = array<i64: 8, 128, 128>}, {pipeline_mode = #tpu.pipeline_mode<synchronous>, transform_indices = @transform_2, window_bounds = array<i64: 8, 128>}, {pipeline_mode = #tpu.pipeline_mode<synchronous>, transform_indices = @transform_3, window_bounds = array<i64: 8, 128, 128>}, {pipeline_mode = #tpu.pipeline_mode<synchronous>, transform_indices = @transform_4, window_bounds = array<i64: 8, 128>}, {transform_indices = @transform_5, window_bounds = array<i64: 8, 128>}]} {
    %c0 = arith.constant 0 : index
    %c0_0 = arith.constant 0 : index
    %0 = vector.load %arg1[%c0, %c0_0] : memref<8x128xf32, #tpu.memory_space<vmem>>, vector<8x128xf32>
    %1 = arith.truncf %0 : vector<8x128xf32> to vector<8x128xbf16>
    %c0_1 = arith.constant 0 : index
    %c0_2 = arith.constant 0 : index
    %c0_3 = arith.constant 0 : index
    %2 = vector.load %arg2[%c0_1, %c0_2, %c0_3] : memref<8x128x128xbf16, #tpu.memory_space<vmem>>, vector<1x128x128xbf16>
    %3 = vector.shape_cast %2 : vector<1x128x128xbf16> to vector<128x128xbf16>
    %cst = arith.constant dense<0.000000e+00> : vector<8x128xf32>
    %4 = tpu.matmul %1, %3, %cst {dimension_numbers = #tpu.dot_dimension_numbers<[1], [0], [0], [1], [0, 0, 1, 1], [], []>} : vector<8x128xbf16>, vector<128x128xbf16>, vector<8x128xf32> -> vector<8x128xf32>
    %c0_4 = arith.constant 0 : index
    %c0_5 = arith.constant 0 : index
    %5 = vector.load %arg3[%c0_4, %c0_5] : memref<8x128xf32, #tpu.memory_space<vmem>>, vector<1x128xf32>
    %6 = vector.shape_cast %5 : vector<1x128xf32> to vector<128xf32>
    %7 = vector.shape_cast %6 : vector<128xf32> to vector<1x128xf32>
    %8 = vector.broadcast %7 : vector<1x128xf32> to vector<8x128xf32>
    %9 = arith.addf %4, %8 : vector<8x128xf32>
    %cst_6 = arith.constant 0.000000e+00 : f32
    %10 = vector.broadcast %cst_6 : f32 to vector<8x128xf32>
    %11 = arith.cmpf oge, %9, %10 : vector<8x128xf32>
    %cst_7 = arith.constant 2.000000e-01 : f32
    %12 = vector.broadcast %cst_7 : f32 to vector<8x128xf32>
    %13 = arith.mulf %12, %9 : vector<8x128xf32>
    %14 = arith.select %11, %9, %13 : vector<8x128xi1>, vector<8x128xf32>
    %15 = arith.truncf %14 : vector<8x128xf32> to vector<8x128xbf16>
    %c0_8 = arith.constant 0 : index
    %c0_9 = arith.constant 0 : index
    %c0_10 = arith.constant 0 : index
    %16 = vector.load %arg4[%c0_8, %c0_9, %c0_10] : memref<8x128x128xbf16, #tpu.memory_space<vmem>>, vector<1x128x128xbf16>
    %17 = vector.shape_cast %16 : vector<1x128x128xbf16> to vector<128x128xbf16>
    %cst_11 = arith.constant dense<0.000000e+00> : vector<8x128xf32>
    %18 = tpu.matmul %15, %17, %cst_11 {dimension_numbers = #tpu.dot_dimension_numbers<[1], [0], [0], [1], [0, 0, 1, 1], [], []>} : vector<8x128xbf16>, vector<128x128xbf16>, vector<8x128xf32> -> vector<8x128xf32>
    %19 = arith.addf %0, %18 : vector<8x128xf32>
    %c0_12 = arith.constant 0 : index
    %c0_13 = arith.constant 0 : index
    %20 = vector.load %arg5[%c0_12, %c0_13] : memref<8x128xf32, #tpu.memory_space<vmem>>, vector<1x128xf32>
    %21 = vector.shape_cast %20 : vector<1x128xf32> to vector<128xf32>
    %22 = vector.shape_cast %21 : vector<128xf32> to vector<1x128xf32>
    %23 = vector.broadcast %22 : vector<1x128xf32> to vector<8x128xf32>
    %24 = arith.addf %19, %23 : vector<8x128xf32>
    %25 = arith.truncf %24 : vector<8x128xf32> to vector<8x128xbf16>
    %c1 = arith.constant 1 : index
    %c0_14 = arith.constant 0 : index
    %c0_15 = arith.constant 0 : index
    %26 = vector.load %arg2[%c1, %c0_14, %c0_15] : memref<8x128x128xbf16, #tpu.memory_space<vmem>>, vector<1x128x128xbf16>
    %27 = vector.shape_cast %26 : vector<1x128x128xbf16> to vector<128x128xbf16>
    %cst_16 = arith.constant dense<0.000000e+00> : vector<8x128xf32>
    %28 = tpu.matmul %25, %27, %cst_16 {dimension_numbers = #tpu.dot_dimension_numbers<[1], [0], [0], [1], [0, 0, 1, 1], [], []>} : vector<8x128xbf16>, vector<128x128xbf16>, vector<8x128xf32> -> vector<8x128xf32>
    %c1_17 = arith.constant 1 : index
    %c0_18 = arith.constant 0 : index
    %29 = vector.load %arg3[%c1_17, %c0_18] : memref<8x128xf32, #tpu.memory_space<vmem>>, vector<1x128xf32>
    %30 = vector.shape_cast %29 : vector<1x128xf32> to vector<128xf32>
    %31 = vector.shape_cast %30 : vector<128xf32> to vector<1x128xf32>
    %32 = vector.broadcast %31 : vector<1x128xf32> to vector<8x128xf32>
    %33 = arith.addf %28, %32 : vector<8x128xf32>
    %cst_19 = arith.constant 0.000000e+00 : f32
    %34 = vector.broadcast %cst_19 : f32 to vector<8x128xf32>
    %35 = arith.cmpf oge, %33, %34 : vector<8x128xf32>
    %cst_20 = arith.constant 2.000000e-01 : f32
    %36 = vector.broadcast %cst_20 : f32 to vector<8x128xf32>
    %37 = arith.mulf %36, %33 : vector<8x128xf32>
    %38 = arith.select %35, %33, %37 : vector<8x128xi1>, vector<8x128xf32>
    %39 = arith.truncf %38 : vector<8x128xf32> to vector<8x128xbf16>
    %c1_21 = arith.constant 1 : index
    %c0_22 = arith.constant 0 : index
    %c0_23 = arith.constant 0 : index
    %40 = vector.load %arg4[%c1_21, %c0_22, %c0_23] : memref<8x128x128xbf16, #tpu.memory_space<vmem>>, vector<1x128x128xbf16>
    %41 = vector.shape_cast %40 : vector<1x128x128xbf16> to vector<128x128xbf16>
    %cst_24 = arith.constant dense<0.000000e+00> : vector<8x128xf32>
    %42 = tpu.matmul %39, %41, %cst_24 {dimension_numbers = #tpu.dot_dimension_numbers<[1], [0], [0], [1], [0, 0, 1, 1], [], []>} : vector<8x128xbf16>, vector<128x128xbf16>, vector<8x128xf32> -> vector<8x128xf32>
    %43 = arith.addf %24, %42 : vector<8x128xf32>
    %c1_25 = arith.constant 1 : index
    %c0_26 = arith.constant 0 : index
    %44 = vector.load %arg5[%c1_25, %c0_26] : memref<8x128xf32, #tpu.memory_space<vmem>>, vector<1x128xf32>
    %45 = vector.shape_cast %44 : vector<1x128xf32> to vector<128xf32>
    %46 = vector.shape_cast %45 : vector<128xf32> to vector<1x128xf32>
    %47 = vector.broadcast %46 : vector<1x128xf32> to vector<8x128xf32>
    %48 = arith.addf %43, %47 : vector<8x128xf32>
    %49 = arith.truncf %48 : vector<8x128xf32> to vector<8x128xbf16>
    %c2 = arith.constant 2 : index
    %c0_27 = arith.constant 0 : index
    %c0_28 = arith.constant 0 : index
    %50 = vector.load %arg2[%c2, %c0_27, %c0_28] : memref<8x128x128xbf16, #tpu.memory_space<vmem>>, vector<1x128x128xbf16>
    %51 = vector.shape_cast %50 : vector<1x128x128xbf16> to vector<128x128xbf16>
    %cst_29 = arith.constant dense<0.000000e+00> : vector<8x128xf32>
    %52 = tpu.matmul %49, %51, %cst_29 {dimension_numbers = #tpu.dot_dimension_numbers<[1], [0], [0], [1], [0, 0, 1, 1], [], []>} : vector<8x128xbf16>, vector<128x128xbf16>, vector<8x128xf32> -> vector<8x128xf32>
    %c2_30 = arith.constant 2 : index
    %c0_31 = arith.constant 0 : index
    %53 = vector.load %arg3[%c2_30, %c0_31] : memref<8x128xf32, #tpu.memory_space<vmem>>, vector<1x128xf32>
    %54 = vector.shape_cast %53 : vector<1x128xf32> to vector<128xf32>
    %55 = vector.shape_cast %54 : vector<128xf32> to vector<1x128xf32>
    %56 = vector.broadcast %55 : vector<1x128xf32> to vector<8x128xf32>
    %57 = arith.addf %52, %56 : vector<8x128xf32>
    %cst_32 = arith.constant 0.000000e+00 : f32
    %58 = vector.broadcast %cst_32 : f32 to vector<8x128xf32>
    %59 = arith.cmpf oge, %57, %58 : vector<8x128xf32>
    %cst_33 = arith.constant 2.000000e-01 : f32
    %60 = vector.broadcast %cst_33 : f32 to vector<8x128xf32>
    %61 = arith.mulf %60, %57 : vector<8x128xf32>
    %62 = arith.select %59, %57, %61 : vector<8x128xi1>, vector<8x128xf32>
    %63 = arith.truncf %62 : vector<8x128xf32> to vector<8x128xbf16>
    %c2_34 = arith.constant 2 : index
    %c0_35 = arith.constant 0 : index
    %c0_36 = arith.constant 0 : index
    %64 = vector.load %arg4[%c2_34, %c0_35, %c0_36] : memref<8x128x128xbf16, #tpu.memory_space<vmem>>, vector<1x128x128xbf16>
    %65 = vector.shape_cast %64 : vector<1x128x128xbf16> to vector<128x128xbf16>
    %cst_37 = arith.constant dense<0.000000e+00> : vector<8x128xf32>
    %66 = tpu.matmul %63, %65, %cst_37 {dimension_numbers = #tpu.dot_dimension_numbers<[1], [0], [0], [1], [0, 0, 1, 1], [], []>} : vector<8x128xbf16>, vector<128x128xbf16>, vector<8x128xf32> -> vector<8x128xf32>
    %67 = arith.addf %48, %66 : vector<8x128xf32>
    %c2_38 = arith.constant 2 : index
    %c0_39 = arith.constant 0 : index
    %68 = vector.load %arg5[%c2_38, %c0_39] : memref<8x128xf32, #tpu.memory_space<vmem>>, vector<1x128xf32>
    %69 = vector.shape_cast %68 : vector<1x128xf32> to vector<128xf32>
    %70 = vector.shape_cast %69 : vector<128xf32> to vector<1x128xf32>
    %71 = vector.broadcast %70 : vector<1x128xf32> to vector<8x128xf32>
    %72 = arith.addf %67, %71 : vector<8x128xf32>
    %73 = arith.truncf %72 : vector<8x128xf32> to vector<8x128xbf16>
    %c3 = arith.constant 3 : index
    %c0_40 = arith.constant 0 : index
    %c0_41 = arith.constant 0 : index
    %74 = vector.load %arg2[%c3, %c0_40, %c0_41] : memref<8x128x128xbf16, #tpu.memory_space<vmem>>, vector<1x128x128xbf16>
    %75 = vector.shape_cast %74 : vector<1x128x128xbf16> to vector<128x128xbf16>
    %cst_42 = arith.constant dense<0.000000e+00> : vector<8x128xf32>
    %76 = tpu.matmul %73, %75, %cst_42 {dimension_numbers = #tpu.dot_dimension_numbers<[1], [0], [0], [1], [0, 0, 1, 1], [], []>} : vector<8x128xbf16>, vector<128x128xbf16>, vector<8x128xf32> -> vector<8x128xf32>
    %c3_43 = arith.constant 3 : index
    %c0_44 = arith.constant 0 : index
    %77 = vector.load %arg3[%c3_43, %c0_44] : memref<8x128xf32, #tpu.memory_space<vmem>>, vector<1x128xf32>
    %78 = vector.shape_cast %77 : vector<1x128xf32> to vector<128xf32>
    %79 = vector.shape_cast %78 : vector<128xf32> to vector<1x128xf32>
    %80 = vector.broadcast %79 : vector<1x128xf32> to vector<8x128xf32>
    %81 = arith.addf %76, %80 : vector<8x128xf32>
    %cst_45 = arith.constant 0.000000e+00 : f32
    %82 = vector.broadcast %cst_45 : f32 to vector<8x128xf32>
    %83 = arith.cmpf oge, %81, %82 : vector<8x128xf32>
    %cst_46 = arith.constant 2.000000e-01 : f32
    %84 = vector.broadcast %cst_46 : f32 to vector<8x128xf32>
    %85 = arith.mulf %84, %81 : vector<8x128xf32>
    %86 = arith.select %83, %81, %85 : vector<8x128xi1>, vector<8x128xf32>
    %87 = arith.truncf %86 : vector<8x128xf32> to vector<8x128xbf16>
    %c3_47 = arith.constant 3 : index
    %c0_48 = arith.constant 0 : index
    %c0_49 = arith.constant 0 : index
    %88 = vector.load %arg4[%c3_47, %c0_48, %c0_49] : memref<8x128x128xbf16, #tpu.memory_space<vmem>>, vector<1x128x128xbf16>
    %89 = vector.shape_cast %88 : vector<1x128x128xbf16> to vector<128x128xbf16>
    %cst_50 = arith.constant dense<0.000000e+00> : vector<8x128xf32>
    %90 = tpu.matmul %87, %89, %cst_50 {dimension_numbers = #tpu.dot_dimension_numbers<[1], [0], [0], [1], [0, 0, 1, 1], [], []>} : vector<8x128xbf16>, vector<128x128xbf16>, vector<8x128xf32> -> vector<8x128xf32>
    %91 = arith.addf %72, %90 : vector<8x128xf32>
    %c3_51 = arith.constant 3 : index
    %c0_52 = arith.constant 0 : index
    %92 = vector.load %arg5[%c3_51, %c0_52] : memref<8x128xf32, #tpu.memory_space<vmem>>, vector<1x128xf32>
    %93 = vector.shape_cast %92 : vector<1x128xf32> to vector<128xf32>
    %94 = vector.shape_cast %93 : vector<128xf32> to vector<1x128xf32>
    %95 = vector.broadcast %94 : vector<1x128xf32> to vector<8x128xf32>
    %96 = arith.addf %91, %95 : vector<8x128xf32>
    %97 = arith.truncf %96 : vector<8x128xf32> to vector<8x128xbf16>
    %c4 = arith.constant 4 : index
    %c0_53 = arith.constant 0 : index
    %c0_54 = arith.constant 0 : index
    %98 = vector.load %arg2[%c4, %c0_53, %c0_54] : memref<8x128x128xbf16, #tpu.memory_space<vmem>>, vector<1x128x128xbf16>
    %99 = vector.shape_cast %98 : vector<1x128x128xbf16> to vector<128x128xbf16>
    %cst_55 = arith.constant dense<0.000000e+00> : vector<8x128xf32>
    %100 = tpu.matmul %97, %99, %cst_55 {dimension_numbers = #tpu.dot_dimension_numbers<[1], [0], [0], [1], [0, 0, 1, 1], [], []>} : vector<8x128xbf16>, vector<128x128xbf16>, vector<8x128xf32> -> vector<8x128xf32>
    %c4_56 = arith.constant 4 : index
    %c0_57 = arith.constant 0 : index
    %101 = vector.load %arg3[%c4_56, %c0_57] : memref<8x128xf32, #tpu.memory_space<vmem>>, vector<1x128xf32>
    %102 = vector.shape_cast %101 : vector<1x128xf32> to vector<128xf32>
    %103 = vector.shape_cast %102 : vector<128xf32> to vector<1x128xf32>
    %104 = vector.broadcast %103 : vector<1x128xf32> to vector<8x128xf32>
    %105 = arith.addf %100, %104 : vector<8x128xf32>
    %cst_58 = arith.constant 0.000000e+00 : f32
    %106 = vector.broadcast %cst_58 : f32 to vector<8x128xf32>
    %107 = arith.cmpf oge, %105, %106 : vector<8x128xf32>
    %cst_59 = arith.constant 2.000000e-01 : f32
    %108 = vector.broadcast %cst_59 : f32 to vector<8x128xf32>
    %109 = arith.mulf %108, %105 : vector<8x128xf32>
    %110 = arith.select %107, %105, %109 : vector<8x128xi1>, vector<8x128xf32>
    %111 = arith.truncf %110 : vector<8x128xf32> to vector<8x128xbf16>
    %c4_60 = arith.constant 4 : index
    %c0_61 = arith.constant 0 : index
    %c0_62 = arith.constant 0 : index
    %112 = vector.load %arg4[%c4_60, %c0_61, %c0_62] : memref<8x128x128xbf16, #tpu.memory_space<vmem>>, vector<1x128x128xbf16>
    %113 = vector.shape_cast %112 : vector<1x128x128xbf16> to vector<128x128xbf16>
    %cst_63 = arith.constant dense<0.000000e+00> : vector<8x128xf32>
    %114 = tpu.matmul %111, %113, %cst_63 {dimension_numbers = #tpu.dot_dimension_numbers<[1], [0], [0], [1], [0, 0, 1, 1], [], []>} : vector<8x128xbf16>, vector<128x128xbf16>, vector<8x128xf32> -> vector<8x128xf32>
    %115 = arith.addf %96, %114 : vector<8x128xf32>
    %c4_64 = arith.constant 4 : index
    %c0_65 = arith.constant 0 : index
    %116 = vector.load %arg5[%c4_64, %c0_65] : memref<8x128xf32, #tpu.memory_space<vmem>>, vector<1x128xf32>
    %117 = vector.shape_cast %116 : vector<1x128xf32> to vector<128xf32>
    %118 = vector.shape_cast %117 : vector<128xf32> to vector<1x128xf32>
    %119 = vector.broadcast %118 : vector<1x128xf32> to vector<8x128xf32>
    %120 = arith.addf %115, %119 : vector<8x128xf32>
    %121 = arith.truncf %120 : vector<8x128xf32> to vector<8x128xbf16>
    %c5 = arith.constant 5 : index
    %c0_66 = arith.constant 0 : index
    %c0_67 = arith.constant 0 : index
    %122 = vector.load %arg2[%c5, %c0_66, %c0_67] : memref<8x128x128xbf16, #tpu.memory_space<vmem>>, vector<1x128x128xbf16>
    %123 = vector.shape_cast %122 : vector<1x128x128xbf16> to vector<128x128xbf16>
    %cst_68 = arith.constant dense<0.000000e+00> : vector<8x128xf32>
    %124 = tpu.matmul %121, %123, %cst_68 {dimension_numbers = #tpu.dot_dimension_numbers<[1], [0], [0], [1], [0, 0, 1, 1], [], []>} : vector<8x128xbf16>, vector<128x128xbf16>, vector<8x128xf32> -> vector<8x128xf32>
    %c5_69 = arith.constant 5 : index
    %c0_70 = arith.constant 0 : index
    %125 = vector.load %arg3[%c5_69, %c0_70] : memref<8x128xf32, #tpu.memory_space<vmem>>, vector<1x128xf32>
    %126 = vector.shape_cast %125 : vector<1x128xf32> to vector<128xf32>
    %127 = vector.shape_cast %126 : vector<128xf32> to vector<1x128xf32>
    %128 = vector.broadcast %127 : vector<1x128xf32> to vector<8x128xf32>
    %129 = arith.addf %124, %128 : vector<8x128xf32>
    %cst_71 = arith.constant 0.000000e+00 : f32
    %130 = vector.broadcast %cst_71 : f32 to vector<8x128xf32>
    %131 = arith.cmpf oge, %129, %130 : vector<8x128xf32>
    %cst_72 = arith.constant 2.000000e-01 : f32
    %132 = vector.broadcast %cst_72 : f32 to vector<8x128xf32>
    %133 = arith.mulf %132, %129 : vector<8x128xf32>
    %134 = arith.select %131, %129, %133 : vector<8x128xi1>, vector<8x128xf32>
    %135 = arith.truncf %134 : vector<8x128xf32> to vector<8x128xbf16>
    %c5_73 = arith.constant 5 : index
    %c0_74 = arith.constant 0 : index
    %c0_75 = arith.constant 0 : index
    %136 = vector.load %arg4[%c5_73, %c0_74, %c0_75] : memref<8x128x128xbf16, #tpu.memory_space<vmem>>, vector<1x128x128xbf16>
    %137 = vector.shape_cast %136 : vector<1x128x128xbf16> to vector<128x128xbf16>
    %cst_76 = arith.constant dense<0.000000e+00> : vector<8x128xf32>
    %138 = tpu.matmul %135, %137, %cst_76 {dimension_numbers = #tpu.dot_dimension_numbers<[1], [0], [0], [1], [0, 0, 1, 1], [], []>} : vector<8x128xbf16>, vector<128x128xbf16>, vector<8x128xf32> -> vector<8x128xf32>
    %139 = arith.addf %120, %138 : vector<8x128xf32>
    %c5_77 = arith.constant 5 : index
    %c0_78 = arith.constant 0 : index
    %140 = vector.load %arg5[%c5_77, %c0_78] : memref<8x128xf32, #tpu.memory_space<vmem>>, vector<1x128xf32>
    %141 = vector.shape_cast %140 : vector<1x128xf32> to vector<128xf32>
    %142 = vector.shape_cast %141 : vector<128xf32> to vector<1x128xf32>
    %143 = vector.broadcast %142 : vector<1x128xf32> to vector<8x128xf32>
    %144 = arith.addf %139, %143 : vector<8x128xf32>
    %145 = arith.truncf %144 : vector<8x128xf32> to vector<8x128xbf16>
    %c6 = arith.constant 6 : index
    %c0_79 = arith.constant 0 : index
    %c0_80 = arith.constant 0 : index
    %146 = vector.load %arg2[%c6, %c0_79, %c0_80] : memref<8x128x128xbf16, #tpu.memory_space<vmem>>, vector<1x128x128xbf16>
    %147 = vector.shape_cast %146 : vector<1x128x128xbf16> to vector<128x128xbf16>
    %cst_81 = arith.constant dense<0.000000e+00> : vector<8x128xf32>
    %148 = tpu.matmul %145, %147, %cst_81 {dimension_numbers = #tpu.dot_dimension_numbers<[1], [0], [0], [1], [0, 0, 1, 1], [], []>} : vector<8x128xbf16>, vector<128x128xbf16>, vector<8x128xf32> -> vector<8x128xf32>
    %c6_82 = arith.constant 6 : index
    %c0_83 = arith.constant 0 : index
    %149 = vector.load %arg3[%c6_82, %c0_83] : memref<8x128xf32, #tpu.memory_space<vmem>>, vector<1x128xf32>
    %150 = vector.shape_cast %149 : vector<1x128xf32> to vector<128xf32>
    %151 = vector.shape_cast %150 : vector<128xf32> to vector<1x128xf32>
    %152 = vector.broadcast %151 : vector<1x128xf32> to vector<8x128xf32>
    %153 = arith.addf %148, %152 : vector<8x128xf32>
    %cst_84 = arith.constant 0.000000e+00 : f32
    %154 = vector.broadcast %cst_84 : f32 to vector<8x128xf32>
    %155 = arith.cmpf oge, %153, %154 : vector<8x128xf32>
    %cst_85 = arith.constant 2.000000e-01 : f32
    %156 = vector.broadcast %cst_85 : f32 to vector<8x128xf32>
    %157 = arith.mulf %156, %153 : vector<8x128xf32>
    %158 = arith.select %155, %153, %157 : vector<8x128xi1>, vector<8x128xf32>
    %159 = arith.truncf %158 : vector<8x128xf32> to vector<8x128xbf16>
    %c6_86 = arith.constant 6 : index
    %c0_87 = arith.constant 0 : index
    %c0_88 = arith.constant 0 : index
    %160 = vector.load %arg4[%c6_86, %c0_87, %c0_88] : memref<8x128x128xbf16, #tpu.memory_space<vmem>>, vector<1x128x128xbf16>
    %161 = vector.shape_cast %160 : vector<1x128x128xbf16> to vector<128x128xbf16>
    %cst_89 = arith.constant dense<0.000000e+00> : vector<8x128xf32>
    %162 = tpu.matmul %159, %161, %cst_89 {dimension_numbers = #tpu.dot_dimension_numbers<[1], [0], [0], [1], [0, 0, 1, 1], [], []>} : vector<8x128xbf16>, vector<128x128xbf16>, vector<8x128xf32> -> vector<8x128xf32>
    %163 = arith.addf %144, %162 : vector<8x128xf32>
    %c6_90 = arith.constant 6 : index
    %c0_91 = arith.constant 0 : index
    %164 = vector.load %arg5[%c6_90, %c0_91] : memref<8x128xf32, #tpu.memory_space<vmem>>, vector<1x128xf32>
    %165 = vector.shape_cast %164 : vector<1x128xf32> to vector<128xf32>
    %166 = vector.shape_cast %165 : vector<128xf32> to vector<1x128xf32>
    %167 = vector.broadcast %166 : vector<1x128xf32> to vector<8x128xf32>
    %168 = arith.addf %163, %167 : vector<8x128xf32>
    %169 = arith.truncf %168 : vector<8x128xf32> to vector<8x128xbf16>
    %c7 = arith.constant 7 : index
    %c0_92 = arith.constant 0 : index
    %c0_93 = arith.constant 0 : index
    %170 = vector.load %arg2[%c7, %c0_92, %c0_93] : memref<8x128x128xbf16, #tpu.memory_space<vmem>>, vector<1x128x128xbf16>
    %171 = vector.shape_cast %170 : vector<1x128x128xbf16> to vector<128x128xbf16>
    %cst_94 = arith.constant dense<0.000000e+00> : vector<8x128xf32>
    %172 = tpu.matmul %169, %171, %cst_94 {dimension_numbers = #tpu.dot_dimension_numbers<[1], [0], [0], [1], [0, 0, 1, 1], [], []>} : vector<8x128xbf16>, vector<128x128xbf16>, vector<8x128xf32> -> vector<8x128xf32>
    %c7_95 = arith.constant 7 : index
    %c0_96 = arith.constant 0 : index
    %173 = vector.load %arg3[%c7_95, %c0_96] : memref<8x128xf32, #tpu.memory_space<vmem>>, vector<1x128xf32>
    %174 = vector.shape_cast %173 : vector<1x128xf32> to vector<128xf32>
    %175 = vector.shape_cast %174 : vector<128xf32> to vector<1x128xf32>
    %176 = vector.broadcast %175 : vector<1x128xf32> to vector<8x128xf32>
    %177 = arith.addf %172, %176 : vector<8x128xf32>
    %cst_97 = arith.constant 0.000000e+00 : f32
    %178 = vector.broadcast %cst_97 : f32 to vector<8x128xf32>
    %179 = arith.cmpf oge, %177, %178 : vector<8x128xf32>
    %cst_98 = arith.constant 2.000000e-01 : f32
    %180 = vector.broadcast %cst_98 : f32 to vector<8x128xf32>
    %181 = arith.mulf %180, %177 : vector<8x128xf32>
    %182 = arith.select %179, %177, %181 : vector<8x128xi1>, vector<8x128xf32>
    %183 = arith.truncf %182 : vector<8x128xf32> to vector<8x128xbf16>
    %c7_99 = arith.constant 7 : index
    %c0_100 = arith.constant 0 : index
    %c0_101 = arith.constant 0 : index
    %184 = vector.load %arg4[%c7_99, %c0_100, %c0_101] : memref<8x128x128xbf16, #tpu.memory_space<vmem>>, vector<1x128x128xbf16>
    %185 = vector.shape_cast %184 : vector<1x128x128xbf16> to vector<128x128xbf16>
    %cst_102 = arith.constant dense<0.000000e+00> : vector<8x128xf32>
    %186 = tpu.matmul %183, %185, %cst_102 {dimension_numbers = #tpu.dot_dimension_numbers<[1], [0], [0], [1], [0, 0, 1, 1], [], []>} : vector<8x128xbf16>, vector<128x128xbf16>, vector<8x128xf32> -> vector<8x128xf32>
    %187 = arith.addf %168, %186 : vector<8x128xf32>
    %c7_103 = arith.constant 7 : index
    %c0_104 = arith.constant 0 : index
    %188 = vector.load %arg5[%c7_103, %c0_104] : memref<8x128xf32, #tpu.memory_space<vmem>>, vector<1x128xf32>
    %189 = vector.shape_cast %188 : vector<1x128xf32> to vector<128xf32>
    %190 = vector.shape_cast %189 : vector<128xf32> to vector<1x128xf32>
    %191 = vector.broadcast %190 : vector<1x128xf32> to vector<8x128xf32>
    %192 = arith.addf %187, %191 : vector<8x128xf32>
    %c0_105 = arith.constant 0 : index
    %c0_106 = arith.constant 0 : index
    %193 = vector.load %arg6[%c0_105, %c0_106] : memref<8x128xf32, #tpu.memory_space<vmem>>, vector<8x128xf32>
    tpu.vector_store %arg6[%c0_105, %c0_106], %192 {strides = array<i32>} : memref<8x128xf32, #tpu.memory_space<vmem>>, vector<8x128xf32>,
    return
  }
  func.func @transform_0(%arg0: i32) -> (i32, i32) {
    %c0_i32 = arith.constant 0 : i32
    %c0_i32_0 = arith.constant 0 : i32
    return %arg0, %c0_i32 : i32, i32
  }
  func.func @transform_1(%arg0: i32) -> (i32, i32, i32) {
    %c0_i32 = arith.constant 0 : i32
    %c0_i32_0 = arith.constant 0 : i32
    %c0_i32_1 = arith.constant 0 : i32
    %c0_i32_2 = arith.constant 0 : i32
    return %c0_i32, %c0_i32_0, %c0_i32_1 : i32, i32, i32
  }
  func.func @transform_2(%arg0: i32) -> (i32, i32) {
    %c0_i32 = arith.constant 0 : i32
    %c0_i32_0 = arith.constant 0 : i32
    %c0_i32_1 = arith.constant 0 : i32
    return %c0_i32, %c0_i32_0 : i32, i32
  }
  func.func @transform_3(%arg0: i32) -> (i32, i32, i32) {
    %c0_i32 = arith.constant 0 : i32
    %c0_i32_0 = arith.constant 0 : i32
    %c0_i32_1 = arith.constant 0 : i32
    %c0_i32_2 = arith.constant 0 : i32
    return %c0_i32, %c0_i32_0, %c0_i32_1 : i32, i32, i32
  }
  func.func @transform_4(%arg0: i32) -> (i32, i32) {
    %c0_i32 = arith.constant 0 : i32
    %c0_i32_0 = arith.constant 0 : i32
    %c0_i32_1 = arith.constant 0 : i32
    return %c0_i32, %c0_i32_0 : i32, i32
  }
  func.func @transform_5(%arg0: i32) -> (i32, i32) {
    %c0_i32 = arith.constant 0 : i32
    %c0_i32_0 = arith.constant 0 : i32
    return %arg0, %c0_i32 : i32, i32
  }
}

</mosaic_0001>

<llo_original>
// kernel: tpu_custom_call.1
$region0: #{tpu_custom_call.1}
  #allocation0 [shape = 'u32[]', space=smem, size = 0x4, offset = 0x4, fixed_abs, tag = 'smem constant byte address 0x4 - core index']
  #allocation1 [shape = 'u32[72,128]{1,0:T(1,128)}', space=vmem, size = 0x9000, scoped, tag = 'internal scratch']
  %s0 = inlined_call_operand.hbm [shape: f32[8,128], index: 0, kind: input, shape index: {}]
  %s1 = inlined_call_operand.hbm [shape: bf16[8,128,128], index: 1, kind: input, shape index: {}]
  %s2 = inlined_call_operand.hbm [shape: f32[8,128], index: 2, kind: input, shape index: {}]
  %s3 = inlined_call_operand.hbm [shape: bf16[8,128,128], index: 3, kind: input, shape index: {}]
  %s4 = inlined_call_operand.hbm [shape: f32[8,128], index: 4, kind: input, shape index: {}]
  %s5 = inlined_call_operand.hbm [shape: f32[8,128], index: 5, kind: output, shape index: {}]
  %s6 = sld [smem:[#allocation0]]
  $region50: #{tpu_custom_call.1} parent=0
    _
  %s8 = ssub.s32 1, %s6
  %s9 = scalar_select 0, %s8, %s6
  $region1: #{tpu_custom_call.1} parent=0
    #allocation2 [shape = 'u8[4096]{0}', space=vmem, size = 0x1000, scoped, tag = 'input window, operand 0, single buffered']
    #allocation3 [shape = 's32[1]{0}', space=sflag, size = 0x4, scoped, tag = 'scoped memory for tpu_custom_call.1']
    #allocation4 [shape = 's32[1]{0}', space=sflag, size = 0x4, scoped, tag = 'scoped memory for tpu_custom_call.1']
    #allocation5 [shape = 'u8[262144]{0}', space=vmem, size = 0x40000, scoped, tag = 'input window, operand 1, single buffered']
    #allocation6 [shape = 's32[1]{0}', space=sflag, size = 0x4, scoped, tag = 'scoped memory for tpu_custom_call.1']
    #allocation7 [shape = 'u8[4096]{0}', space=vmem, size = 0x1000, scoped, tag = 'input window, operand 2, single buffered']
    #allocation8 [shape = 'u8[262144]{0}', space=vmem, size = 0x40000, scoped, tag = 'input window, operand 3, single buffered']
    #allocation9 [shape = 's32[1]{0}', space=sflag, size = 0x4, scoped, tag = 'scoped memory for tpu_custom_call.1']
    #allocation10 [shape = 'u8[4096]{0}', space=vmem, size = 0x1000, scoped, tag = 'input window, operand 4, single buffered']
    #allocation11 [shape = 'u8[4096]{0}', space=vmem, size = 0x1000, scoped, tag = 'output window, operand 0, single buffered']
    %10 = vsyncpa [#allocation3], 0
    %11 = vsyncpa [#allocation6], 0
    %12 = vsyncpa [#allocation9], 0
    %13 = vsyncpa [#allocation4], 0
    // Predicated region
    $region2: #{tpu_custom_call.1} parent=1 // pred_check
      _
    $region3: #{tpu_custom_call.1} parent=1 // pred_check_branch
      %15 = sbr.rel (0) target = $region5
    $region4: #{tpu_custom_call.1} parent=1 // pred_region
      %17 = vsyncadd [#allocation3], 0
      %s19 = sshll.u32 %s0, 4
      %s20 = int_to_ptr.hbm [resolvable:$true] %s19
      %s21 = sshll.u32 [#allocation2], 4
      %s22 = int_to_ptr.vmem [resolvable:$true] %s21
      %24 = dma.hbm_to_vmem [thread:$0]  %s20, 128, %s22, [#allocation3]
    $region5: #{tpu_custom_call.1} parent=1 // pred_fallthru
      _
    // Predicated region
    $region6: #{tpu_custom_call.1} parent=1 // pred_check
      _
    $region7: #{tpu_custom_call.1} parent=1 // pred_check_branch
      %26 = sbr.rel (0) target = $region9
    $region8: #{tpu_custom_call.1} parent=1 // pred_region
      %28 = vsyncadd [#allocation6], 0
      %s29 = sshll.u32 %s1, 4
      %s30 = int_to_ptr.hbm [resolvable:$true] %s29
      %s31 = sshll.u32 [#allocation5], 4
      %s32 = int_to_ptr.vmem [resolvable:$true] %s31
      %37 = dma.hbm_to_vmem [thread:$0]  %s30, 8192, %s32, [#allocation6], 64, 64, 4
    $region9: #{tpu_custom_call.1} parent=1 // pred_fallthru
      _
    // Predicated region
    $region10: #{tpu_custom_call.1} parent=1 // pred_check
      _
    $region11: #{tpu_custom_call.1} parent=1 // pred_check_branch
      %39 = sbr.rel (0) target = $region13
    $region12: #{tpu_custom_call.1} parent=1 // pred_region
      %41 = vsyncadd [#allocation6], 0
      %s43 = sshll.u32 %s2, 4
      %s44 = int_to_ptr.hbm [resolvable:$true] %s43
      %s45 = sshll.u32 [#allocation7], 4
      %s46 = int_to_ptr.vmem [resolvable:$true] %s45
      %48 = dma.hbm_to_vmem [thread:$0]  %s44, 128, %s46, [#allocation6]
    $region13: #{tpu_custom_call.1} parent=1 // pred_fallthru
      _
    // Predicated region
    $region14: #{tpu_custom_call.1} parent=1 // pred_check
      _
    $region15: #{tpu_custom_call.1} parent=1 // pred_check_branch
      %50 = sbr.rel (0) target = $region17
    $region16: #{tpu_custom_call.1} parent=1 // pred_region
      %52 = vsyncadd [#allocation9], 0
      %s53 = sshll.u32 %s3, 4
      %s54 = int_to_ptr.hbm [resolvable:$true] %s53
      %s55 = sshll.u32 [#allocation8], 4
      %s56 = int_to_ptr.vmem [resolvable:$true] %s55
      %61 = dma.hbm_to_vmem [thread:$0]  %s54, 8192, %s56, [#allocation9], 64, 64, 4
    $region17: #{tpu_custom_call.1} parent=1 // pred_fallthru
      _
    // Predicated region
    $region18: #{tpu_custom_call.1} parent=1 // pred_check
      _
    $region19: #{tpu_custom_call.1} parent=1 // pred_check_branch
      %63 = sbr.rel (0) target = $region21
    $region20: #{tpu_custom_call.1} parent=1 // pred_region
      %65 = vsyncadd [#allocation9], 0
      %s67 = sshll.u32 %s4, 4
      %s68 = int_to_ptr.hbm [resolvable:$true] %s67
      %s69 = sshll.u32 [#allocation10], 4
      %s70 = int_to_ptr.vmem [resolvable:$true] %s69
      %72 = dma.hbm_to_vmem [thread:$0]  %s68, 128, %s70, [#allocation9]
    $region21: #{tpu_custom_call.1} parent=1 // pred_fallthru
      _
    // Predicated region
    $region22: #{tpu_custom_call.1} parent=1 // pred_check
      _
    $region23: #{tpu_custom_call.1} parent=1 // pred_check_branch
      %74 = sbr.rel (0) target = $region25
    $region24: #{tpu_custom_call.1} parent=1 // pred_region
      %76 = dma.done [#allocation3], 128
    $region25: #{tpu_custom_call.1} parent=1 // pred_fallthru
      _
    // Predicated region
    $region26: #{tpu_custom_call.1} parent=1 // pred_check
      _
    $region27: #{tpu_custom_call.1} parent=1 // pred_check_branch
      %78 = sbr.rel (0) target = $region29
    $region28: #{tpu_custom_call.1} parent=1 // pred_region
      %80 = dma.done [#allocation6], 8192
    $region29: #{tpu_custom_call.1} parent=1 // pred_fallthru
      _
    // Predicated region
    $region30: #{tpu_custom_call.1} parent=1 // pred_check
      _
    $region31: #{tpu_custom_call.1} parent=1 // pred_check_branch
      %82 = sbr.rel (0) target = $region33
    $region32: #{tpu_custom_call.1} parent=1 // pred_region
      %84 = dma.done [#allocation6], 128
    $region33: #{tpu_custom_call.1} parent=1 // pred_fallthru
      _
    // Predicated region
    $region34: #{tpu_custom_call.1} parent=1 // pred_check
      _
    $region35: #{tpu_custom_call.1} parent=1 // pred_check_branch
      %86 = sbr.rel (0) target = $region37
    $region36: #{tpu_custom_call.1} parent=1 // pred_region
      %88 = dma.done [#allocation9], 8192
    $region37: #{tpu_custom_call.1} parent=1 // pred_fallthru
      _
    // Predicated region
    $region38: #{tpu_custom_call.1} parent=1 // pred_check
      _
    $region39: #{tpu_custom_call.1} parent=1 // pred_check_branch
      %90 = sbr.rel (0) target = $region41
    $region40: #{tpu_custom_call.1} parent=1 // pred_region
      %92 = dma.done [#allocation9], 128
    $region41: #{tpu_custom_call.1} parent=1 // pred_fallthru
      _
    %v93 = vld [vmem:[#allocation2] sm:$0xff]
    %v94 = vpack.c.bf16 %v93, %v93
    %v95 = vld [vmem:[#allocation5] sm:$0xf]
    %v96 = vld [vmem:[#allocation5 + $0x4] sm:$0xf]
    %v97 = vld [vmem:[#allocation5 + $0x8] sm:$0xf]
    %v98 = vld [vmem:[#allocation5 + $0xc] sm:$0xf]
    %v99 = vld [vmem:[#allocation5 + $0x10] sm:$0xf]
    %v100 = vld [vmem:[#allocation5 + $0x14] sm:$0xf]
    %v101 = vld [vmem:[#allocation5 + $0x18] sm:$0xf]
    %v102 = vld [vmem:[#allocation5 + $0x1c] sm:$0xf]
    %v103 = vld [vmem:[#allocation5 + $0x20] sm:$0xf]
    %v104 = vld [vmem:[#allocation5 + $0x24] sm:$0xf]
    %v105 = vld [vmem:[#allocation5 + $0x28] sm:$0xf]
    %v106 = vld [vmem:[#allocation5 + $0x2c] sm:$0xf]
    %v107 = vld [vmem:[#allocation5 + $0x30] sm:$0xf]
    %v108 = vld [vmem:[#allocation5 + $0x34] sm:$0xf]
    %v109 = vld [vmem:[#allocation5 + $0x38] sm:$0xf]
    %v110 = vld [vmem:[#allocation5 + $0x3c] sm:$0xf]
    %v111 = vld [vmem:[#allocation7] sm:$0x1]
    %v112 = vperm.slane %v111, 0
    %v129 = vunpack.c.l.b16 %v95
    %v130 = vunpack.c.l.b16 %v96
    %v131 = vunpack.c.l.b16 %v97
    %v132 = vunpack.c.l.b16 %v98
    %v133 = vunpack.c.l.b16 %v99
    %v134 = vunpack.c.l.b16 %v100
    %v135 = vunpack.c.l.b16 %v101
    %v136 = vunpack.c.l.b16 %v102
    %v137 = vunpack.c.l.b16 %v103
    %v138 = vunpack.c.l.b16 %v104
    %v139 = vunpack.c.l.b16 %v105
    %v140 = vunpack.c.l.b16 %v106
    %v141 = vunpack.c.l.b16 %v107
    %v142 = vunpack.c.l.b16 %v108
    %v143 = vunpack.c.l.b16 %v109
    %v144 = vunpack.c.l.b16 %v110
    %v145 = vpack.c.b16 %v130, %v129
    %v146 = vpack.c.b16 %v132, %v131
    %v147 = vpack.c.b16 %v134, %v133
    %v148 = vpack.c.b16 %v136, %v135
    %v149 = vpack.c.b16 %v138, %v137
    %v150 = vpack.c.b16 %v140, %v139
    %v151 = vpack.c.b16 %v142, %v141
    %v152 = vpack.c.b16 %v144, %v143
    %161 = vmatpush.bf16.msra.mxu0 %v152
    %162 = vmatpush.bf16.msra.mxu0 %v151
    %163 = vmatpush.bf16.msra.mxu0 %v150
    %164 = vmatpush.bf16.msra.mxu0 %v149
    %165 = vmatpush.bf16.msra.mxu0 %v148
    %166 = vmatpush.bf16.msra.mxu0 %v147
    %167 = vmatpush.bf16.msra.mxu0 %v146
    %168 = vmatpush.bf16.msra.mxu0 %v145
    %169 = vmatmul.bf16.gmra.mxu0 %v94
    %v170 = vpop.f32.mrf.mxu0
    %v171 = vadd.f32 %v112, %v170
    %v172 = vpop.f32.mrf.mxu0
    %173 = vdwg.mxu0
    %vm174 = vcmp.ge.f32.partialorder %v171, 0.0
    %v175 = vmul.f32 %v171, 0.2
    %v176 = vsel %vm174, %v171, %v175
    %v177 = vpack.c.bf16 %v176, %v176
    %v178 = vld [vmem:[#allocation8] sm:$0xf]
    %v179 = vld [vmem:[#allocation8 + $0x4] sm:$0xf]
    %v180 = vld [vmem:[#allocation8 + $0x8] sm:$0xf]
    %v181 = vld [vmem:[#allocation8 + $0xc] sm:$0xf]
    %v182 = vld [vmem:[#allocation8 + $0x10] sm:$0xf]
    %v183 = vld [vmem:[#allocation8 + $0x14] sm:$0xf]
    %v184 = vld [vmem:[#allocation8 + $0x18] sm:$0xf]
    %v185 = vld [vmem:[#allocation8 + $0x1c] sm:$0xf]
    %v186 = vld [vmem:[#allocation8 + $0x20] sm:$0xf]
    %v187 = vld [vmem:[#allocation8 + $0x24] sm:$0xf]
    %v188 = vld [vmem:[#allocation8 + $0x28] sm:$0xf]
    %v189 = vld [vmem:[#allocation8 + $0x2c] sm:$0xf]
    %v190 = vld [vmem:[#allocation8 + $0x30] sm:$0xf]
    %v191 = vld [vmem:[#allocation8 + $0x34] sm:$0xf]
    %v192 = vld [vmem:[#allocation8 + $0x38] sm:$0xf]
    %v193 = vld [vmem:[#allocation8 + $0x3c] sm:$0xf]
    %v210 = vunpack.c.l.b16 %v178
    %v211 = vunpack.c.l.b16 %v179
    %v212 = vunpack.c.l.b16 %v180
    %v213 = vunpack.c.l.b16 %v181
    %v214 = vunpack.c.l.b16 %v182
    %v215 = vunpack.c.l.b16 %v183
    %v216 = vunpack.c.l.b16 %v184
    %v217 = vunpack.c.l.b16 %v185
    %v218 = vunpack.c.l.b16 %v186
    %v219 = vunpack.c.l.b16 %v187
    %v220 = vunpack.c.l.b16 %v188
    %v221 = vunpack.c.l.b16 %v189
    %v222 = vunpack.c.l.b16 %v190
    %v223 = vunpack.c.l.b16 %v191
    %v224 = vunpack.c.l.b16 %v192
    %v225 = vunpack.c.l.b16 %v193
    %v226 = vpack.c.b16 %v211, %v210
    %v227 = vpack.c.b16 %v213, %v212
    %v228 = vpack.c.b16 %v215, %v214
    %v229 = vpack.c.b16 %v217, %v216
    %v230 = vpack.c.b16 %v219, %v218
    %v231 = vpack.c.b16 %v221, %v220
    %v232 = vpack.c.b16 %v223, %v222
    %v233 = vpack.c.b16 %v225, %v224
    %242 = vmatpush.bf16.msra.mxu0 %v233
    %243 = vmatpush.bf16.msra.mxu0 %v232
    %244 = vmatpush.bf16.msra.mxu0 %v231
    %245 = vmatpush.bf16.msra.mxu0 %v230
    %246 = vmatpush.bf16.msra.mxu0 %v229
    %247 = vmatpush.bf16.msra.mxu0 %v228
    %248 = vmatpush.bf16.msra.mxu0 %v227
    %249 = vmatpush.bf16.msra.mxu0 %v226
    %250 = vmatmul.bf16.gmra.mxu0 %v177
    %v251 = vpop.f32.mrf.mxu0
    %v252 = vadd.f32 0.0, %v251
    %v253 = vpop.f32.mrf.mxu0
    %254 = vdwg.mxu0
    %v255 = vadd.f32 %v93, %v252
    %v256 = vld [vmem:[#allocation10] sm:$0x1]
    %v257 = vperm.slane %v256, 0
    %v258 = vadd.f32 %v255, %v257
    %v259 = vpack.c.bf16 %v258, %v258
    %s260 = scalar_lea.vmem [#allocation5], 64
    %v261 = vld [vmem:[%s260] sm:$0xf]
    %v262 = vld [vmem:[%s260 + $0x4] sm:$0xf]
    %v263 = vld [vmem:[%s260 + $0x8] sm:$0xf]
    %v264 = vld [vmem:[%s260 + $0xc] sm:$0xf]
    %v265 = vld [vmem:[%s260 + $0x10] sm:$0xf]
    %v266 = vld [vmem:[%s260 + $0x14] sm:$0xf]
    %v267 = vld [vmem:[%s260 + $0x18] sm:$0xf]
    %v268 = vld [vmem:[%s260 + $0x1c] sm:$0xf]
    %v269 = vld [vmem:[%s260 + $0x20] sm:$0xf]
    %v270 = vld [vmem:[%s260 + $0x24] sm:$0xf]
    %v271 = vld [vmem:[%s260 + $0x28] sm:$0xf]
    %v272 = vld [vmem:[%s260 + $0x2c] sm:$0xf]
    %v273 = vld [vmem:[%s260 + $0x30] sm:$0xf]
    %v274 = vld [vmem:[%s260 + $0x34] sm:$0xf]
    %v275 = vld [vmem:[%s260 + $0x38] sm:$0xf]
    %v276 = vld [vmem:[%s260 + $0x3c] sm:$0xf]
    %v277 = vld [vmem:[#allocation7 + $0x1] sm:$0x1]
    %v278 = vperm.slane %v277, 0
    %v295 = vunpack.c.l.b16 %v261
    %v296 = vunpack.c.l.b16 %v262
    %v297 = vunpack.c.l.b16 %v263
    %v298 = vunpack.c.l.b16 %v264
    %v299 = vunpack.c.l.b16 %v265
    %v300 = vunpack.c.l.b16 %v266
    %v301 = vunpack.c.l.b16 %v267
    %v302 = vunpack.c.l.b16 %v268
    %v303 = vunpack.c.l.b16 %v269
    %v304 = vunpack.c.l.b16 %v270
    %v305 = vunpack.c.l.b16 %v271
    %v306 = vunpack.c.l.b16 %v272
    %v307 = vunpack.c.l.b16 %v273
    %v308 = vunpack.c.l.b16 %v274
    %v309 = vunpack.c.l.b16 %v275
    %v310 = vunpack.c.l.b16 %v276
    %v311 = vpack.c.b16 %v296, %v295
    %v312 = vpack.c.b16 %v298, %v297
    %v313 = vpack.c.b16 %v300, %v299
    %v314 = vpack.c.b16 %v302, %v301
    %v315 = vpack.c.b16 %v304, %v303
    %v316 = vpack.c.b16 %v306, %v305
    %v317 = vpack.c.b16 %v308, %v307
    %v318 = vpack.c.b16 %v310, %v309
    %327 = vmatpush.bf16.msra.mxu0 %v318
    %328 = vmatpush.bf16.msra.mxu0 %v317
    %329 = vmatpush.bf16.msra.mxu0 %v316
    %330 = vmatpush.bf16.msra.mxu0 %v315
    %331 = vmatpush.bf16.msra.mxu0 %v314
    %332 = vmatpush.bf16.msra.mxu0 %v313
    %333 = vmatpush.bf16.msra.mxu0 %v312
    %334 = vmatpush.bf16.msra.mxu0 %v311
    %335 = vmatmul.bf16.gmra.mxu0 %v259
    %v336 = vpop.f32.mrf.mxu0
    %v337 = vadd.f32 %v278, %v336
    %v338 = vpop.f32.mrf.mxu0
    %339 = vdwg.mxu0
    %vm340 = vcmp.ge.f32.partialorder %v337, 0.0
    %v341 = vmul.f32 %v337, 0.2
    %v342 = vsel %vm340, %v337, %v341
    %v343 = vpack.c.bf16 %v342, %v342
    %s344 = scalar_lea.vmem [#allocation8], 64
    %v345 = vld [vmem:[%s344] sm:$0xf]
    %v346 = vld [vmem:[%s344 + $0x4] sm:$0xf]
    %v347 = vld [vmem:[%s344 + $0x8] sm:$0xf]
    %v348 = vld [vmem:[%s344 + $0xc] sm:$0xf]
    %v349 = vld [vmem:[%s344 + $0x10] sm:$0xf]
    %v350 = vld [vmem:[%s344 + $0x14] sm:$0xf]
    %v351 = vld [vmem:[%s344 + $0x18] sm:$0xf]
    %v352 = vld [vmem:[%s344 + $0x1c] sm:$0xf]
    %v353 = vld [vmem:[%s344 + $0x20] sm:$0xf]
    %v354 = vld [vmem:[%s344 + $0x24] sm:$0xf]
    %v355 = vld [vmem:[%s344 + $0x28] sm:$0xf]
    %v356 = vld [vmem:[%s344 + $0x2c] sm:$0xf]
    %v357 = vld [vmem:[%s344 + $0x30] sm:$0xf]
    %v358 = vld [vmem:[%s344 + $0x34] sm:$0xf]
    %v359 = vld [vmem:[%s344 + $0x38] sm:$0xf]
    %v360 = vld [vmem:[%s344 + $0x3c] sm:$0xf]
    %v377 = vunpack.c.l.b16 %v345
    %v378 = vunpack.c.l.b16 %v346
    %v379 = vunpack.c.l.b16 %v347
    %v380 = vunpack.c.l.b16 %v348
    %v381 = vunpack.c.l.b16 %v349
    %v382 = vunpack.c.l.b16 %v350
    %v383 = vunpack.c.l.b16 %v351
    %v384 = vunpack.c.l.b16 %v352
    %v385 = vunpack.c.l.b16 %v353
    %v386 = vunpack.c.l.b16 %v354
    %v387 = vunpack.c.l.b16 %v355
    %v388 = vunpack.c.l.b16 %v356
    %v389 = vunpack.c.l.b16 %v357
    %v390 = vunpack.c.l.b16 %v358
    %v391 = vunpack.c.l.b16 %v359
    %v392 = vunpack.c.l.b16 %v360
    %v393 = vpack.c.b16 %v378, %v377
    %v394 = vpack.c.b16 %v380, %v379
    %v395 = vpack.c.b16 %v382, %v381
    %v396 = vpack.c.b16 %v384, %v383
    %v397 = vpack.c.b16 %v386, %v385
    %v398 = vpack.c.b16 %v388, %v387
    %v399 = vpack.c.b16 %v390, %v389
    %v400 = vpack.c.b16 %v392, %v391
    %409 = vmatpush.bf16.msra.mxu0 %v400
    %410 = vmatpush.bf16.msra.mxu0 %v399
    %411 = vmatpush.bf16.msra.mxu0 %v398
    %412 = vmatpush.bf16.msra.mxu0 %v397
    %413 = vmatpush.bf16.msra.mxu0 %v396
    %414 = vmatpush.bf16.msra.mxu0 %v395
    %415 = vmatpush.bf16.msra.mxu0 %v394
    %416 = vmatpush.bf16.msra.mxu0 %v393
    %417 = vmatmul.bf16.gmra.mxu0 %v343
    %v418 = vpop.f32.mrf.mxu0
    %v419 = vadd.f32 0.0, %v418
    %v420 = vpop.f32.mrf.mxu0
    %421 = vdwg.mxu0
    %v422 = vadd.f32 %v258, %v419
    %v423 = vld [vmem:[#allocation10 + $0x1] sm:$0x1]
    %v424 = vperm.slane %v423, 0
    %v425 = vadd.f32 %v422, %v424
    %v426 = vpack.c.bf16 %v425, %v425
    %s427 = scalar_lea.vmem [#allocation5], 128
    %v428 = vld [vmem:[%s427] sm:$0xf]
    %v429 = vld [vmem:[%s427 + $0x4] sm:$0xf]
    %v430 = vld [vmem:[%s427 + $0x8] sm:$0xf]
    %v431 = vld [vmem:[%s427 + $0xc] sm:$0xf]
    %v432 = vld [vmem:[%s427 + $0x10] sm:$0xf]
    %v433 = vld [vmem:[%s427 + $0x14] sm:$0xf]
    %v434 = vld [vmem:[%s427 + $0x18] sm:$0xf]
    %v435 = vld [vmem:[%s427 + $0x1c] sm:$0xf]
    %v436 = vld [vmem:[%s427 + $0x20] sm:$0xf]
    %v437 = vld [vmem:[%s427 + $0x24] sm:$0xf]
    %v438 = vld [vmem:[%s427 + $0x28] sm:$0xf]
    %v439 = vld [vmem:[%s427 + $0x2c] sm:$0xf]
    %v440 = vld [vmem:[%s427 + $0x30] sm:$0xf]
    %v441 = vld [vmem:[%s427 + $0x34] sm:$0xf]
    %v442 = vld [vmem:[%s427 + $0x38] sm:$0xf]
    %v443 = vld [vmem:[%s427 + $0x3c] sm:$0xf]
    %v444 = vld [vmem:[#allocation7 + $0x2] sm:$0x1]
    %v445 = vperm.slane %v444, 0
    %v462 = vunpack.c.l.b16 %v428
    %v463 = vunpack.c.l.b16 %v429
    %v464 = vunpack.c.l.b16 %v430
    %v465 = vunpack.c.l.b16 %v431
    %v466 = vunpack.c.l.b16 %v432
    %v467 = vunpack.c.l.b16 %v433
    %v468 = vunpack.c.l.b16 %v434
    %v469 = vunpack.c.l.b16 %v435
    %v470 = vunpack.c.l.b16 %v436
    %v471 = vunpack.c.l.b16 %v437
    %v472 = vunpack.c.l.b16 %v438
    %v473 = vunpack.c.l.b16 %v439
    %v474 = vunpack.c.l.b16 %v440
    %v475 = vunpack.c.l.b16 %v441
    %v476 = vunpack.c.l.b16 %v442
    %v477 = vunpack.c.l.b16 %v443
    %v478 = vpack.c.b16 %v463, %v462
    %v479 = vpack.c.b16 %v465, %v464
    %v480 = vpack.c.b16 %v467, %v466
    %v481 = vpack.c.b16 %v469, %v468
    %v482 = vpack.c.b16 %v471, %v470
    %v483 = vpack.c.b16 %v473, %v472
    %v484 = vpack.c.b16 %v475, %v474
    %v485 = vpack.c.b16 %v477, %v476
    %494 = vmatpush.bf16.msra.mxu0 %v485
    %495 = vmatpush.bf16.msra.mxu0 %v484
    %496 = vmatpush.bf16.msra.mxu0 %v483
    %497 = vmatpush.bf16.msra.mxu0 %v482
    %498 = vmatpush.bf16.msra.mxu0 %v481
    %499 = vmatpush.bf16.msra.mxu0 %v480
    %500 = vmatpush.bf16.msra.mxu0 %v479
    %501 = vmatpush.bf16.msra.mxu0 %v478
    %502 = vmatmul.bf16.gmra.mxu0 %v426
    %v503 = vpop.f32.mrf.mxu0
    %v504 = vadd.f32 %v445, %v503
    %v505 = vpop.f32.mrf.mxu0
    %506 = vdwg.mxu0
    %vm507 = vcmp.ge.f32.partialorder %v504, 0.0
    %v508 = vmul.f32 %v504, 0.2
    %v509 = vsel %vm507, %v504, %v508
    %v510 = vpack.c.bf16 %v509, %v509
    %s511 = scalar_lea.vmem [#allocation8], 128
    %v512 = vld [vmem:[%s511] sm:$0xf]
    %v513 = vld [vmem:[%s511 + $0x4] sm:$0xf]
    %v514 = vld [vmem:[%s511 + $0x8] sm:$0xf]
    %v515 = vld [vmem:[%s511 + $0xc] sm:$0xf]
    %v516 = vld [vmem:[%s511 + $0x10] sm:$0xf]
    %v517 = vld [vmem:[%s511 + $0x14] sm:$0xf]
    %v518 = vld [vmem:[%s511 + $0x18] sm:$0xf]
    %v519 = vld [vmem:[%s511 + $0x1c] sm:$0xf]
    %v520 = vld [vmem:[%s511 + $0x20] sm:$0xf]
    %v521 = vld [vmem:[%s511 + $0x24] sm:$0xf]
    %v522 = vld [vmem:[%s511 + $0x28] sm:$0xf]
    %v523 = vld [vmem:[%s511 + $0x2c] sm:$0xf]
    %v524 = vld [vmem:[%s511 + $0x30] sm:$0xf]
    %v525 = vld [vmem:[%s511 + $0x34] sm:$0xf]
    %v526 = vld [vmem:[%s511 + $0x38] sm:$0xf]
    %v527 = vld [vmem:[%s511 + $0x3c] sm:$0xf]
    %v544 = vunpack.c.l.b16 %v512
    %v545 = vunpack.c.l.b16 %v513
    %v546 = vunpack.c.l.b16 %v514
    %v547 = vunpack.c.l.b16 %v515
    %v548 = vunpack.c.l.b16 %v516
    %v549 = vunpack.c.l.b16 %v517
    %v550 = vunpack.c.l.b16 %v518
    %v551 = vunpack.c.l.b16 %v519
    %v552 = vunpack.c.l.b16 %v520
    %v553 = vunpack.c.l.b16 %v521
    %v554 = vunpack.c.l.b16 %v522
    %v555 = vunpack.c.l.b16 %v523
    %v556 = vunpack.c.l.b16 %v524
    %v557 = vunpack.c.l.b16 %v525
    %v558 = vunpack.c.l.b16 %v526
    %v559 = vunpack.c.l.b16 %v527
    %v560 = vpack.c.b16 %v545, %v544
    %v561 = vpack.c.b16 %v547, %v546
    %v562 = vpack.c.b16 %v549, %v548
    %v563 = vpack.c.b16 %v551, %v550
    %v564 = vpack.c.b16 %v553, %v552
    %v565 = vpack.c.b16 %v555, %v554
    %v566 = vpack.c.b16 %v557, %v556
    %v567 = vpack.c.b16 %v559, %v558
    %576 = vmatpush.bf16.msra.mxu0 %v567
    %577 = vmatpush.bf16.msra.mxu0 %v566
    %578 = vmatpush.bf16.msra.mxu0 %v565
    %579 = vmatpush.bf16.msra.mxu0 %v564
    %580 = vmatpush.bf16.msra.mxu0 %v563
    %581 = vmatpush.bf16.msra.mxu0 %v562
    %582 = vmatpush.bf16.msra.mxu0 %v561
    %583 = vmatpush.bf16.msra.mxu0 %v560
    %584 = vmatmul.bf16.gmra.mxu0 %v510
    %v585 = vpop.f32.mrf.mxu0
    %v586 = vadd.f32 0.0, %v585
    %v587 = vpop.f32.mrf.mxu0
    %588 = vdwg.mxu0
    %v589 = vadd.f32 %v425, %v586
    %v590 = vld [vmem:[#allocation10 + $0x2] sm:$0x1]
    %v591 = vperm.slane %v590, 0
    %v592 = vadd.f32 %v589, %v591
    %v593 = vpack.c.bf16 %v592, %v592
    %s594 = scalar_lea.vmem [#allocation5], 192
    %v595 = vld [vmem:[%s594] sm:$0xf]
    %v596 = vld [vmem:[%s594 + $0x4] sm:$0xf]
    %v597 = vld [vmem:[%s594 + $0x8] sm:$0xf]
    %v598 = vld [vmem:[%s594 + $0xc] sm:$0xf]
    %v599 = vld [vmem:[%s594 + $0x10] sm:$0xf]
    %v600 = vld [vmem:[%s594 + $0x14] sm:$0xf]
    %v601 = vld [vmem:[%s594 + $0x18] sm:$0xf]
    %v602 = vld [vmem:[%s594 + $0x1c] sm:$0xf]
    %v603 = vld [vmem:[%s594 + $0x20] sm:$0xf]
    %v604 = vld [vmem:[%s594 + $0x24] sm:$0xf]
    %v605 = vld [vmem:[%s594 + $0x28] sm:$0xf]
    %v606 = vld [vmem:[%s594 + $0x2c] sm:$0xf]
    %v607 = vld [vmem:[%s594 + $0x30] sm:$0xf]
    %v608 = vld [vmem:[%s594 + $0x34] sm:$0xf]
    %v609 = vld [vmem:[%s594 + $0x38] sm:$0xf]
    %v610 = vld [vmem:[%s594 + $0x3c] sm:$0xf]
    %v611 = vld [vmem:[#allocation7 + $0x3] sm:$0x1]
    %v612 = vperm.slane %v611, 0
    %v629 = vunpack.c.l.b16 %v595
    %v630 = vunpack.c.l.b16 %v596
    %v631 = vunpack.c.l.b16 %v597
    %v632 = vunpack.c.l.b16 %v598
    %v633 = vunpack.c.l.b16 %v599
    %v634 = vunpack.c.l.b16 %v600
    %v635 = vunpack.c.l.b16 %v601
    %v636 = vunpack.c.l.b16 %v602
    %v637 = vunpack.c.l.b16 %v603
    %v638 = vunpack.c.l.b16 %v604
    %v639 = vunpack.c.l.b16 %v605
    %v640 = vunpack.c.l.b16 %v606
    %v641 = vunpack.c.l.b16 %v607
    %v642 = vunpack.c.l.b16 %v608
    %v643 = vunpack.c.l.b16 %v609
    %v644 = vunpack.c.l.b16 %v610
    %v645 = vpack.c.b16 %v630, %v629
    %v646 = vpack.c.b16 %v632, %v631
    %v647 = vpack.c.b16 %v634, %v633
    %v648 = vpack.c.b16 %v636, %v635
    %v649 = vpack.c.b16 %v638, %v637
    %v650 = vpack.c.b16 %v640, %v639
    %v651 = vpack.c.b16 %v642, %v641
    %v652 = vpack.c.b16 %v644, %v643
    %661 = vmatpush.bf16.msra.mxu0 %v652
    %662 = vmatpush.bf16.msra.mxu0 %v651
    %663 = vmatpush.bf16.msra.mxu0 %v650
    %664 = vmatpush.bf16.msra.mxu0 %v649
    %665 = vmatpush.bf16.msra.mxu0 %v648
    %666 = vmatpush.bf16.msra.mxu0 %v647
    %667 = vmatpush.bf16.msra.mxu0 %v646
    %668 = vmatpush.bf16.msra.mxu0 %v645
    %669 = vmatmul.bf16.gmra.mxu0 %v593
    %v670 = vpop.f32.mrf.mxu0
    %v671 = vadd.f32 %v612, %v670
    %v672 = vpop.f32.mrf.mxu0
    %673 = vdwg.mxu0
    %vm674 = vcmp.ge.f32.partialorder %v671, 0.0
    %v675 = vmul.f32 %v671, 0.2
    %v676 = vsel %vm674, %v671, %v675
    %v677 = vpack.c.bf16 %v676, %v676
    %s678 = scalar_lea.vmem [#allocation8], 192
    %v679 = vld [vmem:[%s678] sm:$0xf]
    %v680 = vld [vmem:[%s678 + $0x4] sm:$0xf]
    %v681 = vld [vmem:[%s678 + $0x8] sm:$0xf]
    %v682 = vld [vmem:[%s678 + $0xc] sm:$0xf]
    %v683 = vld [vmem:[%s678 + $0x10] sm:$0xf]
    %v684 = vld [vmem:[%s678 + $0x14] sm:$0xf]
    %v685 = vld [vmem:[%s678 + $0x18] sm:$0xf]
    %v686 = vld [vmem:[%s678 + $0x1c] sm:$0xf]
    %v687 = vld [vmem:[%s678 + $0x20] sm:$0xf]
    %v688 = vld [vmem:[%s678 + $0x24] sm:$0xf]
    %v689 = vld [vmem:[%s678 + $0x28] sm:$0xf]
    %v690 = vld [vmem:[%s678 + $0x2c] sm:$0xf]
    %v691 = vld [vmem:[%s678 + $0x30] sm:$0xf]
    %v692 = vld [vmem:[%s678 + $0x34] sm:$0xf]
    %v693 = vld [vmem:[%s678 + $0x38] sm:$0xf]
    %v694 = vld [vmem:[%s678 + $0x3c] sm:$0xf]
    %v711 = vunpack.c.l.b16 %v679
    %v712 = vunpack.c.l.b16 %v680
    %v713 = vunpack.c.l.b16 %v681
    %v714 = vunpack.c.l.b16 %v682
    %v715 = vunpack.c.l.b16 %v683
    %v716 = vunpack.c.l.b16 %v684
    %v717 = vunpack.c.l.b16 %v685
    %v718 = vunpack.c.l.b16 %v686
    %v719 = vunpack.c.l.b16 %v687
    %v720 = vunpack.c.l.b16 %v688
    %v721 = vunpack.c.l.b16 %v689
    %v722 = vunpack.c.l.b16 %v690
    %v723 = vunpack.c.l.b16 %v691
    %v724 = vunpack.c.l.b16 %v692
    %v725 = vunpack.c.l.b16 %v693
    %v726 = vunpack.c.l.b16 %v694
    %v727 = vpack.c.b16 %v712, %v711
    %v728 = vpack.c.b16 %v714, %v713
    %v729 = vpack.c.b16 %v716, %v715
    %v730 = vpack.c.b16 %v718, %v717
    %v731 = vpack.c.b16 %v720, %v719
    %v732 = vpack.c.b16 %v722, %v721
    %v733 = vpack.c.b16 %v724, %v723
    %v734 = vpack.c.b16 %v726, %v725
    %743 = vmatpush.bf16.msra.mxu0 %v734
    %744 = vmatpush.bf16.msra.mxu0 %v733
    %745 = vmatpush.bf16.msra.mxu0 %v732
    %746 = vmatpush.bf16.msra.mxu0 %v731
    %747 = vmatpush.bf16.msra.mxu0 %v730
    %748 = vmatpush.bf16.msra.mxu0 %v729
    %749 = vmatpush.bf16.msra.mxu0 %v728
    %750 = vmatpush.bf16.msra.mxu0 %v727
    %751 = vmatmul.bf16.gmra.mxu0 %v677
    %v752 = vpop.f32.mrf.mxu0
    %v753 = vadd.f32 0.0, %v752
    %v754 = vpop.f32.mrf.mxu0
    %755 = vdwg.mxu0
    %v756 = vadd.f32 %v592, %v753
    %v757 = vld [vmem:[#allocation10 + $0x3] sm:$0x1]
    %v758 = vperm.slane %v757, 0
    %v759 = vadd.f32 %v756, %v758
    %v760 = vpack.c.bf16 %v759, %v759
    %s761 = scalar_lea.vmem [#allocation5], 256
    %v762 = vld [vmem:[%s761] sm:$0xf]
    %v763 = vld [vmem:[%s761 + $0x4] sm:$0xf]
    %v764 = vld [vmem:[%s761 + $0x8] sm:$0xf]
    %v765 = vld [vmem:[%s761 + $0xc] sm:$0xf]
    %v766 = vld [vmem:[%s761 + $0x10] sm:$0xf]
    %v767 = vld [vmem:[%s761 + $0x14] sm:$0xf]
    %v768 = vld [vmem:[%s761 + $0x18] sm:$0xf]
    %v769 = vld [vmem:[%s761 + $0x1c] sm:$0xf]
    %v770 = vld [vmem:[%s761 + $0x20] sm:$0xf]
    %v771 = vld [vmem:[%s761 + $0x24] sm:$0xf]
    %v772 = vld [vmem:[%s761 + $0x28] sm:$0xf]
    %v773 = vld [vmem:[%s761 + $0x2c] sm:$0xf]
    %v774 = vld [vmem:[%s761 + $0x30] sm:$0xf]
    %v775 = vld [vmem:[%s761 + $0x34] sm:$0xf]
    %v776 = vld [vmem:[%s761 + $0x38] sm:$0xf]
    %v777 = vld [vmem:[%s761 + $0x3c] sm:$0xf]
    %v778 = vld [vmem:[#allocation7 + $0x4] sm:$0x1]
    %v779 = vperm.slane %v778, 0
    %v796 = vunpack.c.l.b16 %v762
    %v797 = vunpack.c.l.b16 %v763
    %v798 = vunpack.c.l.b16 %v764
    %v799 = vunpack.c.l.b16 %v765
    %v800 = vunpack.c.l.b16 %v766
    %v801 = vunpack.c.l.b16 %v767
    %v802 = vunpack.c.l.b16 %v768
    %v803 = vunpack.c.l.b16 %v769
    %v804 = vunpack.c.l.b16 %v770
    %v805 = vunpack.c.l.b16 %v771
    %v806 = vunpack.c.l.b16 %v772
    %v807 = vunpack.c.l.b16 %v773
    %v808 = vunpack.c.l.b16 %v774
    %v809 = vunpack.c.l.b16 %v775
    %v810 = vunpack.c.l.b16 %v776
    %v811 = vunpack.c.l.b16 %v777
    %v812 = vpack.c.b16 %v797, %v796
    %v813 = vpack.c.b16 %v799, %v798
    %v814 = vpack.c.b16 %v801, %v800
    %v815 = vpack.c.b16 %v803, %v802
    %v816 = vpack.c.b16 %v805, %v804
    %v817 = vpack.c.b16 %v807, %v806
    %v818 = vpack.c.b16 %v809, %v808
    %v819 = vpack.c.b16 %v811, %v810
    %828 = vmatpush.bf16.msra.mxu0 %v819
    %829 = vmatpush.bf16.msra.mxu0 %v818
    %830 = vmatpush.bf16.msra.mxu0 %v817
    %831 = vmatpush.bf16.msra.mxu0 %v816
    %832 = vmatpush.bf16.msra.mxu0 %v815
    %833 = vmatpush.bf16.msra.mxu0 %v814
    %834 = vmatpush.bf16.msra.mxu0 %v813
    %835 = vmatpush.bf16.msra.mxu0 %v812
    %836 = vmatmul.bf16.gmra.mxu0 %v760
    %v837 = vpop.f32.mrf.mxu0
    %v838 = vadd.f32 %v779, %v837
    %v839 = vpop.f32.mrf.mxu0
    %840 = vdwg.mxu0
    %vm841 = vcmp.ge.f32.partialorder %v838, 0.0
    %v842 = vmul.f32 %v838, 0.2
    %v843 = vsel %vm841, %v838, %v842
    %v844 = vpack.c.bf16 %v843, %v843
    %s845 = scalar_lea.vmem [#allocation8], 256
    %v846 = vld [vmem:[%s845] sm:$0xf]
    %v847 = vld [vmem:[%s845 + $0x4] sm:$0xf]
    %v848 = vld [vmem:[%s845 + $0x8] sm:$0xf]
    %v849 = vld [vmem:[%s845 + $0xc] sm:$0xf]
    %v850 = vld [vmem:[%s845 + $0x10] sm:$0xf]
    %v851 = vld [vmem:[%s845 + $0x14] sm:$0xf]
    %v852 = vld [vmem:[%s845 + $0x18] sm:$0xf]
    %v853 = vld [vmem:[%s845 + $0x1c] sm:$0xf]
    %v854 = vld [vmem:[%s845 + $0x20] sm:$0xf]
    %v855 = vld [vmem:[%s845 + $0x24] sm:$0xf]
    %v856 = vld [vmem:[%s845 + $0x28] sm:$0xf]
    %v857 = vld [vmem:[%s845 + $0x2c] sm:$0xf]
    %v858 = vld [vmem:[%s845 + $0x30] sm:$0xf]
    %v859 = vld [vmem:[%s845 + $0x34] sm:$0xf]
    %v860 = vld [vmem:[%s845 + $0x38] sm:$0xf]
    %v861 = vld [vmem:[%s845 + $0x3c] sm:$0xf]
    %v878 = vunpack.c.l.b16 %v846
    %v879 = vunpack.c.l.b16 %v847
    %v880 = vunpack.c.l.b16 %v848
    %v881 = vunpack.c.l.b16 %v849
    %v882 = vunpack.c.l.b16 %v850
    %v883 = vunpack.c.l.b16 %v851
    %v884 = vunpack.c.l.b16 %v852
    %v885 = vunpack.c.l.b16 %v853
    %v886 = vunpack.c.l.b16 %v854
    %v887 = vunpack.c.l.b16 %v855
    %v888 = vunpack.c.l.b16 %v856
    %v889 = vunpack.c.l.b16 %v857
    %v890 = vunpack.c.l.b16 %v858
    %v891 = vunpack.c.l.b16 %v859
    %v892 = vunpack.c.l.b16 %v860
    %v893 = vunpack.c.l.b16 %v861
    %v894 = vpack.c.b16 %v879, %v878
    %v895 = vpack.c.b16 %v881, %v880
    %v896 = vpack.c.b16 %v883, %v882
    %v897 = vpack.c.b16 %v885, %v884
    %v898 = vpack.c.b16 %v887, %v886
    %v899 = vpack.c.b16 %v889, %v888
    %v900 = vpack.c.b16 %v891, %v890
    %v901 = vpack.c.b16 %v893, %v892
    %910 = vmatpush.bf16.msra.mxu0 %v901
    %911 = vmatpush.bf16.msra.mxu0 %v900
    %912 = vmatpush.bf16.msra.mxu0 %v899
    %913 = vmatpush.bf16.msra.mxu0 %v898
    %914 = vmatpush.bf16.msra.mxu0 %v897
    %915 = vmatpush.bf16.msra.mxu0 %v896
    %916 = vmatpush.bf16.msra.mxu0 %v895
    %917 = vmatpush.bf16.msra.mxu0 %v894
    %918 = vmatmul.bf16.gmra.mxu0 %v844
    %v919 = vpop.f32.mrf.mxu0
    %v920 = vadd.f32 0.0, %v919
    %v921 = vpop.f32.mrf.mxu0
    %922 = vdwg.mxu0
    %v923 = vadd.f32 %v759, %v920
    %v924 = vld [vmem:[#allocation10 + $0x4] sm:$0x1]
    %v925 = vperm.slane %v924, 0
    %v926 = vadd.f32 %v923, %v925
    %v927 = vpack.c.bf16 %v926, %v926
    %s928 = scalar_lea.vmem [#allocation5], 320
    %v929 = vld [vmem:[%s928] sm:$0xf]
    %v930 = vld [vmem:[%s928 + $0x4] sm:$0xf]
    %v931 = vld [vmem:[%s928 + $0x8] sm:$0xf]
    %v932 = vld [vmem:[%s928 + $0xc] sm:$0xf]
    %v933 = vld [vmem:[%s928 + $0x10] sm:$0xf]
    %v934 = vld [vmem:[%s928 + $0x14] sm:$0xf]
    %v935 = vld [vmem:[%s928 + $0x18] sm:$0xf]
    %v936 = vld [vmem:[%s928 + $0x1c] sm:$0xf]
    %v937 = vld [vmem:[%s928 + $0x20] sm:$0xf]
    %v938 = vld [vmem:[%s928 + $0x24] sm:$0xf]
    %v939 = vld [vmem:[%s928 + $0x28] sm:$0xf]
    %v940 = vld [vmem:[%s928 + $0x2c] sm:$0xf]
    %v941 = vld [vmem:[%s928 + $0x30] sm:$0xf]
    %v942 = vld [vmem:[%s928 + $0x34] sm:$0xf]
    %v943 = vld [vmem:[%s928 + $0x38] sm:$0xf]
    %v944 = vld [vmem:[%s928 + $0x3c] sm:$0xf]
    %v945 = vld [vmem:[#allocation7 + $0x5] sm:$0x1]
    %v946 = vperm.slane %v945, 0
    %v963 = vunpack.c.l.b16 %v929
    %v964 = vunpack.c.l.b16 %v930
    %v965 = vunpack.c.l.b16 %v931
    %v966 = vunpack.c.l.b16 %v932
    %v967 = vunpack.c.l.b16 %v933
    %v968 = vunpack.c.l.b16 %v934
    %v969 = vunpack.c.l.b16 %v935
    %v970 = vunpack.c.l.b16 %v936
    %v971 = vunpack.c.l.b16 %v937
    %v972 = vunpack.c.l.b16 %v938
    %v973 = vunpack.c.l.b16 %v939
    %v974 = vunpack.c.l.b16 %v940
    %v975 = vunpack.c.l.b16 %v941
    %v976 = vunpack.c.l.b16 %v942
    %v977 = vunpack.c.l.b16 %v943
    %v978 = vunpack.c.l.b16 %v944
    %v979 = vpack.c.b16 %v964, %v963
    %v980 = vpack.c.b16 %v966, %v965
    %v981 = vpack.c.b16 %v968, %v967
    %v982 = vpack.c.b16 %v970, %v969
    %v983 = vpack.c.b16 %v972, %v971
    %v984 = vpack.c.b16 %v974, %v973
    %v985 = vpack.c.b16 %v976, %v975
    %v986 = vpack.c.b16 %v978, %v977
    %995 = vmatpush.bf16.msra.mxu0 %v986
    %996 = vmatpush.bf16.msra.mxu0 %v985
    %997 = vmatpush.bf16.msra.mxu0 %v984
    %998 = vmatpush.bf16.msra.mxu0 %v983
    %999 = vmatpush.bf16.msra.mxu0 %v982
    %1000 = vmatpush.bf16.msra.mxu0 %v981
    %1001 = vmatpush.bf16.msra.mxu0 %v980
    %1002 = vmatpush.bf16.msra.mxu0 %v979
    %1003 = vmatmul.bf16.gmra.mxu0 %v927
    %v1004 = vpop.f32.mrf.mxu0
    %v1005 = vadd.f32 %v946, %v1004
    %v1006 = vpop.f32.mrf.mxu0
    %1007 = vdwg.mxu0
    %vm1008 = vcmp.ge.f32.partialorder %v1005, 0.0
    %v1009 = vmul.f32 %v1005, 0.2
    %v1010 = vsel %vm1008, %v1005, %v1009
    %v1011 = vpack.c.bf16 %v1010, %v1010
    %s1012 = scalar_lea.vmem [#allocation8], 320
    %v1013 = vld [vmem:[%s1012] sm:$0xf]
    %v1014 = vld [vmem:[%s1012 + $0x4] sm:$0xf]
    %v1015 = vld [vmem:[%s1012 + $0x8] sm:$0xf]
    %v1016 = vld [vmem:[%s1012 + $0xc] sm:$0xf]
    %v1017 = vld [vmem:[%s1012 + $0x10] sm:$0xf]
    %v1018 = vld [vmem:[%s1012 + $0x14] sm:$0xf]
    %v1019 = vld [vmem:[%s1012 + $0x18] sm:$0xf]
    %v1020 = vld [vmem:[%s1012 + $0x1c] sm:$0xf]
    %v1021 = vld [vmem:[%s1012 + $0x20] sm:$0xf]
    %v1022 = vld [vmem:[%s1012 + $0x24] sm:$0xf]
    %v1023 = vld [vmem:[%s1012 + $0x28] sm:$0xf]
    %v1024 = vld [vmem:[%s1012 + $0x2c] sm:$0xf]
    %v1025 = vld [vmem:[%s1012 + $0x30] sm:$0xf]
    %v1026 = vld [vmem:[%s1012 + $0x34] sm:$0xf]
    %v1027 = vld [vmem:[%s1012 + $0x38] sm:$0xf]
    %v1028 = vld [vmem:[%s1012 + $0x3c] sm:$0xf]
    %v1045 = vunpack.c.l.b16 %v1013
    %v1046 = vunpack.c.l.b16 %v1014
    %v1047 = vunpack.c.l.b16 %v1015
    %v1048 = vunpack.c.l.b16 %v1016
    %v1049 = vunpack.c.l.b16 %v1017
    %v1050 = vunpack.c.l.b16 %v1018
    %v1051 = vunpack.c.l.b16 %v1019
    %v1052 = vunpack.c.l.b16 %v1020
    %v1053 = vunpack.c.l.b16 %v1021
    %v1054 = vunpack.c.l.b16 %v1022
    %v1055 = vunpack.c.l.b16 %v1023
    %v1056 = vunpack.c.l.b16 %v1024
    %v1057 = vunpack.c.l.b16 %v1025
    %v1058 = vunpack.c.l.b16 %v1026
    %v1059 = vunpack.c.l.b16 %v1027
    %v1060 = vunpack.c.l.b16 %v1028
    %v1061 = vpack.c.b16 %v1046, %v1045
    %v1062 = vpack.c.b16 %v1048, %v1047
    %v1063 = vpack.c.b16 %v1050, %v1049
    %v1064 = vpack.c.b16 %v1052, %v1051
    %v1065 = vpack.c.b16 %v1054, %v1053
    %v1066 = vpack.c.b16 %v1056, %v1055
    %v1067 = vpack.c.b16 %v1058, %v1057
    %v1068 = vpack.c.b16 %v1060, %v1059
    %1077 = vmatpush.bf16.msra.mxu0 %v1068
    %1078 = vmatpush.bf16.msra.mxu0 %v1067
    %1079 = vmatpush.bf16.msra.mxu0 %v1066
    %1080 = vmatpush.bf16.msra.mxu0 %v1065
    %1081 = vmatpush.bf16.msra.mxu0 %v1064
    %1082 = vmatpush.bf16.msra.mxu0 %v1063
    %1083 = vmatpush.bf16.msra.mxu0 %v1062
    %1084 = vmatpush.bf16.msra.mxu0 %v1061
    %1085 = vmatmul.bf16.gmra.mxu0 %v1011
    %v1086 = vpop.f32.mrf.mxu0
    %v1087 = vadd.f32 0.0, %v1086
    %v1088 = vpop.f32.mrf.mxu0
    %1089 = vdwg.mxu0
    %v1090 = vadd.f32 %v926, %v1087
    %v1091 = vld [vmem:[#allocation10 + $0x5] sm:$0x1]
    %v1092 = vperm.slane %v1091, 0
    %v1093 = vadd.f32 %v1090, %v1092
    %v1094 = vpack.c.bf16 %v1093, %v1093
    %s1095 = scalar_lea.vmem [#allocation5], 384
    %v1096 = vld [vmem:[%s1095] sm:$0xf]
    %v1097 = vld [vmem:[%s1095 + $0x4] sm:$0xf]
    %v1098 = vld [vmem:[%s1095 + $0x8] sm:$0xf]
    %v1099 = vld [vmem:[%s1095 + $0xc] sm:$0xf]
    %v1100 = vld [vmem:[%s1095 + $0x10] sm:$0xf]
    %v1101 = vld [vmem:[%s1095 + $0x14] sm:$0xf]
    %v1102 = vld [vmem:[%s1095 + $0x18] sm:$0xf]
    %v1103 = vld [vmem:[%s1095 + $0x1c] sm:$0xf]
    %v1104 = vld [vmem:[%s1095 + $0x20] sm:$0xf]
    %v1105 = vld [vmem:[%s1095 + $0x24] sm:$0xf]
    %v1106 = vld [vmem:[%s1095 + $0x28] sm:$0xf]
    %v1107 = vld [vmem:[%s1095 + $0x2c] sm:$0xf]
    %v1108 = vld [vmem:[%s1095 + $0x30] sm:$0xf]
    %v1109 = vld [vmem:[%s1095 + $0x34] sm:$0xf]
    %v1110 = vld [vmem:[%s1095 + $0x38] sm:$0xf]
    %v1111 = vld [vmem:[%s1095 + $0x3c] sm:$0xf]
    %v1112 = vld [vmem:[#allocation7 + $0x6] sm:$0x1]
    %v1113 = vperm.slane %v1112, 0
    %v1130 = vunpack.c.l.b16 %v1096
    %v1131 = vunpack.c.l.b16 %v1097
    %v1132 = vunpack.c.l.b16 %v1098
    %v1133 = vunpack.c.l.b16 %v1099
    %v1134 = vunpack.c.l.b16 %v1100
    %v1135 = vunpack.c.l.b16 %v1101
    %v1136 = vunpack.c.l.b16 %v1102
    %v1137 = vunpack.c.l.b16 %v1103
    %v1138 = vunpack.c.l.b16 %v1104
    %v1139 = vunpack.c.l.b16 %v1105
    %v1140 = vunpack.c.l.b16 %v1106
    %v1141 = vunpack.c.l.b16 %v1107
    %v1142 = vunpack.c.l.b16 %v1108
    %v1143 = vunpack.c.l.b16 %v1109
    %v1144 = vunpack.c.l.b16 %v1110
    %v1145 = vunpack.c.l.b16 %v1111
    %v1146 = vpack.c.b16 %v1131, %v1130
    %v1147 = vpack.c.b16 %v1133, %v1132
    %v1148 = vpack.c.b16 %v1135, %v1134
    %v1149 = vpack.c.b16 %v1137, %v1136
    %v1150 = vpack.c.b16 %v1139, %v1138
    %v1151 = vpack.c.b16 %v1141, %v1140
    %v1152 = vpack.c.b16 %v1143, %v1142
    %v1153 = vpack.c.b16 %v1145, %v1144
    %1162 = vmatpush.bf16.msra.mxu0 %v1153
    %1163 = vmatpush.bf16.msra.mxu0 %v1152
    %1164 = vmatpush.bf16.msra.mxu0 %v1151
    %1165 = vmatpush.bf16.msra.mxu0 %v1150
    %1166 = vmatpush.bf16.msra.mxu0 %v1149
    %1167 = vmatpush.bf16.msra.mxu0 %v1148
    %1168 = vmatpush.bf16.msra.mxu0 %v1147
    %1169 = vmatpush.bf16.msra.mxu0 %v1146
    %1170 = vmatmul.bf16.gmra.mxu0 %v1094
    %v1171 = vpop.f32.mrf.mxu0
    %v1172 = vadd.f32 %v1113, %v1171
    %v1173 = vpop.f32.mrf.mxu0
    %1174 = vdwg.mxu0
    %vm1175 = vcmp.ge.f32.partialorder %v1172, 0.0
    %v1176 = vmul.f32 %v1172, 0.2
    %v1177 = vsel %vm1175, %v1172, %v1176
    %v1178 = vpack.c.bf16 %v1177, %v1177
    %s1179 = scalar_lea.vmem [#allocation8], 384
    %v1180 = vld [vmem:[%s1179] sm:$0xf]
    %v1181 = vld [vmem:[%s1179 + $0x4] sm:$0xf]
    %v1182 = vld [vmem:[%s1179 + $0x8] sm:$0xf]
    %v1183 = vld [vmem:[%s1179 + $0xc] sm:$0xf]
    %v1184 = vld [vmem:[%s1179 + $0x10] sm:$0xf]
    %v1185 = vld [vmem:[%s1179 + $0x14] sm:$0xf]
    %v1186 = vld [vmem:[%s1179 + $0x18] sm:$0xf]
    %v1187 = vld [vmem:[%s1179 + $0x1c] sm:$0xf]
    %v1188 = vld [vmem:[%s1179 + $0x20] sm:$0xf]
    %v1189 = vld [vmem:[%s1179 + $0x24] sm:$0xf]
    %v1190 = vld [vmem:[%s1179 + $0x28] sm:$0xf]
    %v1191 = vld [vmem:[%s1179 + $0x2c] sm:$0xf]
    %v1192 = vld [vmem:[%s1179 + $0x30] sm:$0xf]
    %v1193 = vld [vmem:[%s1179 + $0x34] sm:$0xf]
    %v1194 = vld [vmem:[%s1179 + $0x38] sm:$0xf]
    %v1195 = vld [vmem:[%s1179 + $0x3c] sm:$0xf]
    %v1212 = vunpack.c.l.b16 %v1180
    %v1213 = vunpack.c.l.b16 %v1181
    %v1214 = vunpack.c.l.b16 %v1182
    %v1215 = vunpack.c.l.b16 %v1183
    %v1216 = vunpack.c.l.b16 %v1184
    %v1217 = vunpack.c.l.b16 %v1185
    %v1218 = vunpack.c.l.b16 %v1186
    %v1219 = vunpack.c.l.b16 %v1187
    %v1220 = vunpack.c.l.b16 %v1188
    %v1221 = vunpack.c.l.b16 %v1189
    %v1222 = vunpack.c.l.b16 %v1190
    %v1223 = vunpack.c.l.b16 %v1191
    %v1224 = vunpack.c.l.b16 %v1192
    %v1225 = vunpack.c.l.b16 %v1193
    %v1226 = vunpack.c.l.b16 %v1194
    %v1227 = vunpack.c.l.b16 %v1195
    %v1228 = vpack.c.b16 %v1213, %v1212
    %v1229 = vpack.c.b16 %v1215, %v1214
    %v1230 = vpack.c.b16 %v1217, %v1216
    %v1231 = vpack.c.b16 %v1219, %v1218
    %v1232 = vpack.c.b16 %v1221, %v1220
    %v1233 = vpack.c.b16 %v1223, %v1222
    %v1234 = vpack.c.b16 %v1225, %v1224
    %v1235 = vpack.c.b16 %v1227, %v1226
    %1244 = vmatpush.bf16.msra.mxu0 %v1235
    %1245 = vmatpush.bf16.msra.mxu0 %v1234
    %1246 = vmatpush.bf16.msra.mxu0 %v1233
    %1247 = vmatpush.bf16.msra.mxu0 %v1232
    %1248 = vmatpush.bf16.msra.mxu0 %v1231
    %1249 = vmatpush.bf16.msra.mxu0 %v1230
    %1250 = vmatpush.bf16.msra.mxu0 %v1229
    %1251 = vmatpush.bf16.msra.mxu0 %v1228
    %1252 = vmatmul.bf16.gmra.mxu0 %v1178
    %v1253 = vpop.f32.mrf.mxu0
    %v1254 = vadd.f32 0.0, %v1253
    %v1255 = vpop.f32.mrf.mxu0
    %1256 = vdwg.mxu0
    %v1257 = vadd.f32 %v1093, %v1254
    %v1258 = vld [vmem:[#allocation10 + $0x6] sm:$0x1]
    %v1259 = vperm.slane %v1258, 0
    %v1260 = vadd.f32 %v1257, %v1259
    %v1261 = vpack.c.bf16 %v1260, %v1260
    %s1262 = scalar_lea.vmem [#allocation5], 448
    %v1263 = vld [vmem:[%s1262] sm:$0xf]
    %v1264 = vld [vmem:[%s1262 + $0x4] sm:$0xf]
    %v1265 = vld [vmem:[%s1262 + $0x8] sm:$0xf]
    %v1266 = vld [vmem:[%s1262 + $0xc] sm:$0xf]
    %v1267 = vld [vmem:[%s1262 + $0x10] sm:$0xf]
    %v1268 = vld [vmem:[%s1262 + $0x14] sm:$0xf]
    %v1269 = vld [vmem:[%s1262 + $0x18] sm:$0xf]
    %v1270 = vld [vmem:[%s1262 + $0x1c] sm:$0xf]
    %v1271 = vld [vmem:[%s1262 + $0x20] sm:$0xf]
    %v1272 = vld [vmem:[%s1262 + $0x24] sm:$0xf]
    %v1273 = vld [vmem:[%s1262 + $0x28] sm:$0xf]
    %v1274 = vld [vmem:[%s1262 + $0x2c] sm:$0xf]
    %v1275 = vld [vmem:[%s1262 + $0x30] sm:$0xf]
    %v1276 = vld [vmem:[%s1262 + $0x34] sm:$0xf]
    %v1277 = vld [vmem:[%s1262 + $0x38] sm:$0xf]
    %v1278 = vld [vmem:[%s1262 + $0x3c] sm:$0xf]
    %v1279 = vld [vmem:[#allocation7 + $0x7] sm:$0x1]
    %v1280 = vperm.slane %v1279, 0
    %v1297 = vunpack.c.l.b16 %v1263
    %v1298 = vunpack.c.l.b16 %v1264
    %v1299 = vunpack.c.l.b16 %v1265
    %v1300 = vunpack.c.l.b16 %v1266
    %v1301 = vunpack.c.l.b16 %v1267
    %v1302 = vunpack.c.l.b16 %v1268
    %v1303 = vunpack.c.l.b16 %v1269
    %v1304 = vunpack.c.l.b16 %v1270
    %v1305 = vunpack.c.l.b16 %v1271
    %v1306 = vunpack.c.l.b16 %v1272
    %v1307 = vunpack.c.l.b16 %v1273
    %v1308 = vunpack.c.l.b16 %v1274
    %v1309 = vunpack.c.l.b16 %v1275
    %v1310 = vunpack.c.l.b16 %v1276
    %v1311 = vunpack.c.l.b16 %v1277
    %v1312 = vunpack.c.l.b16 %v1278
    %v1313 = vpack.c.b16 %v1298, %v1297
    %v1314 = vpack.c.b16 %v1300, %v1299
    %v1315 = vpack.c.b16 %v1302, %v1301
    %v1316 = vpack.c.b16 %v1304, %v1303
    %v1317 = vpack.c.b16 %v1306, %v1305
    %v1318 = vpack.c.b16 %v1308, %v1307
    %v1319 = vpack.c.b16 %v1310, %v1309
    %v1320 = vpack.c.b16 %v1312, %v1311
    %1329 = vmatpush.bf16.msra.mxu0 %v1320
    %1330 = vmatpush.bf16.msra.mxu0 %v1319
    %1331 = vmatpush.bf16.msra.mxu0 %v1318
    %1332 = vmatpush.bf16.msra.mxu0 %v1317
    %1333 = vmatpush.bf16.msra.mxu0 %v1316
    %1334 = vmatpush.bf16.msra.mxu0 %v1315
    %1335 = vmatpush.bf16.msra.mxu0 %v1314
    %1336 = vmatpush.bf16.msra.mxu0 %v1313
    %1337 = vmatmul.bf16.gmra.mxu0 %v1261
    %v1338 = vpop.f32.mrf.mxu0
    %v1339 = vadd.f32 %v1280, %v1338
    %v1340 = vpop.f32.mrf.mxu0
    %1341 = vdwg.mxu0
    %vm1342 = vcmp.ge.f32.partialorder %v1339, 0.0
    %v1343 = vmul.f32 %v1339, 0.2
    %v1344 = vsel %vm1342, %v1339, %v1343
    %v1345 = vpack.c.bf16 %v1344, %v1344
    %s1346 = scalar_lea.vmem [#allocation8], 448
    %v1347 = vld [vmem:[%s1346] sm:$0xf]
    %v1348 = vld [vmem:[%s1346 + $0x4] sm:$0xf]
    %v1349 = vld [vmem:[%s1346 + $0x8] sm:$0xf]
    %v1350 = vld [vmem:[%s1346 + $0xc] sm:$0xf]
    %v1351 = vld [vmem:[%s1346 + $0x10] sm:$0xf]
    %v1352 = vld [vmem:[%s1346 + $0x14] sm:$0xf]
    %v1353 = vld [vmem:[%s1346 + $0x18] sm:$0xf]
    %v1354 = vld [vmem:[%s1346 + $0x1c] sm:$0xf]
    %v1355 = vld [vmem:[%s1346 + $0x20] sm:$0xf]
    %v1356 = vld [vmem:[%s1346 + $0x24] sm:$0xf]
    %v1357 = vld [vmem:[%s1346 + $0x28] sm:$0xf]
    %v1358 = vld [vmem:[%s1346 + $0x2c] sm:$0xf]
    %v1359 = vld [vmem:[%s1346 + $0x30] sm:$0xf]
    %v1360 = vld [vmem:[%s1346 + $0x34] sm:$0xf]
    %v1361 = vld [vmem:[%s1346 + $0x38] sm:$0xf]
    %v1362 = vld [vmem:[%s1346 + $0x3c] sm:$0xf]
    %v1379 = vunpack.c.l.b16 %v1347
    %v1380 = vunpack.c.l.b16 %v1348
    %v1381 = vunpack.c.l.b16 %v1349
    %v1382 = vunpack.c.l.b16 %v1350
    %v1383 = vunpack.c.l.b16 %v1351
    %v1384 = vunpack.c.l.b16 %v1352
    %v1385 = vunpack.c.l.b16 %v1353
    %v1386 = vunpack.c.l.b16 %v1354
    %v1387 = vunpack.c.l.b16 %v1355
    %v1388 = vunpack.c.l.b16 %v1356
    %v1389 = vunpack.c.l.b16 %v1357
    %v1390 = vunpack.c.l.b16 %v1358
    %v1391 = vunpack.c.l.b16 %v1359
    %v1392 = vunpack.c.l.b16 %v1360
    %v1393 = vunpack.c.l.b16 %v1361
    %v1394 = vunpack.c.l.b16 %v1362
    %v1395 = vpack.c.b16 %v1380, %v1379
    %v1396 = vpack.c.b16 %v1382, %v1381
    %v1397 = vpack.c.b16 %v1384, %v1383
    %v1398 = vpack.c.b16 %v1386, %v1385
    %v1399 = vpack.c.b16 %v1388, %v1387
    %v1400 = vpack.c.b16 %v1390, %v1389
    %v1401 = vpack.c.b16 %v1392, %v1391
    %v1402 = vpack.c.b16 %v1394, %v1393
    %1411 = vmatpush.bf16.msra.mxu0 %v1402
    %1412 = vmatpush.bf16.msra.mxu0 %v1401
    %1413 = vmatpush.bf16.msra.mxu0 %v1400
    %1414 = vmatpush.bf16.msra.mxu0 %v1399
    %1415 = vmatpush.bf16.msra.mxu0 %v1398
    %1416 = vmatpush.bf16.msra.mxu0 %v1397
    %1417 = vmatpush.bf16.msra.mxu0 %v1396
    %1418 = vmatpush.bf16.msra.mxu0 %v1395
    %1419 = vmatmul.bf16.gmra.mxu0 %v1345
    %v1420 = vpop.f32.mrf.mxu0
    %v1421 = vadd.f32 0.0, %v1420
    %v1422 = vpop.f32.mrf.mxu0
    %1423 = vdwg.mxu0
    %v1424 = vadd.f32 %v1260, %v1421
    %v1425 = vld [vmem:[#allocation10 + $0x7] sm:$0x1]
    %v1426 = vperm.slane %v1425, 0
    %v1427 = vadd.f32 %v1424, %v1426
    %1428 = vst [vmem:[#allocation11] sm:$0xff] %v1427
    // Predicated region
    $region42: #{tpu_custom_call.1} parent=1 // pred_check
      _
    $region43: #{tpu_custom_call.1} parent=1 // pred_check_branch
      %1430 = sbr.rel (0) target = $region45
    $region44: #{tpu_custom_call.1} parent=1 // pred_region
      %1432 = vsyncadd [#allocation4], 0
      %s1434 = sshll.u32 [#allocation11], 4
      %s1435 = int_to_ptr.vmem [resolvable:$true] %s1434
      %s1436 = sshll.u32 %s5, 4
      %s1437 = int_to_ptr.hbm [resolvable:$true] %s1436
      %1439 = dma.vmem_to_hbm [thread:$0]  %s1435, 128, %s1437, [#allocation4]
    $region45: #{tpu_custom_call.1} parent=1 // pred_fallthru
      _
    // Predicated region
    $region46: #{tpu_custom_call.1} parent=1 // pred_check
      _
    $region47: #{tpu_custom_call.1} parent=1 // pred_check_branch
      %1441 = sbr.rel (0) target = $region49
    $region48: #{tpu_custom_call.1} parent=1 // pred_region
      %1443 = dma.done [#allocation4], 128
    $region49: #{tpu_custom_call.1} parent=1 // pred_fallthru
      _
    %1444 = vsyncpa [#allocation3], 1
    %1445 = vsyncpa [#allocation6], 1
    %1446 = vsyncpa [#allocation9], 1
    %1447 = vsyncpa [#allocation4], 1

// kernel: tpu_custom_call.1
$region0: #{tpu_custom_call.1}
  #allocation0 [shape = 'u32[]', space=smem, size = 0x4, offset = 0x4, fixed_abs, tag = 'smem constant byte address 0x4 - core index']
  #allocation1 [shape = 'u32[72,128]{1,0:T(1,128)}', space=vmem, size = 0x9000, scoped, tag = 'internal scratch']
  %s0 = inlined_call_operand.hbm [shape: f32[8,128], index: 0, kind: input, shape index: {}]
  %s1 = inlined_call_operand.hbm [shape: bf16[8,128,128], index: 1, kind: input, shape index: {}]
  %s2 = inlined_call_operand.hbm [shape: f32[8,128], index: 2, kind: input, shape index: {}]
  %s3 = inlined_call_operand.hbm [shape: bf16[8,128,128], index: 3, kind: input, shape index: {}]
  %s4 = inlined_call_operand.hbm [shape: f32[8,128], index: 4, kind: input, shape index: {}]
  %s5 = inlined_call_operand.hbm [shape: f32[8,128], index: 5, kind: output, shape index: {}]
  %s6 = sld [smem:[#allocation0]]
  $region50: #{tpu_custom_call.1} parent=0
    _
  %s8 = ssub.s32 1, %s6
  %s9 = scalar_select 0, %s8, %s6
  $region1: #{tpu_custom_call.1} parent=0
    #allocation2 [shape = 'u8[4096]{0}', space=vmem, size = 0x1000, scoped, tag = 'input window, operand 0, single buffered']
    #allocation3 [shape = 's32[1]{0}', space=sflag, size = 0x4, scoped, tag = 'scoped memory for tpu_custom_call.1']
    #allocation4 [shape = 's32[1]{0}', space=sflag, size = 0x4, scoped, tag = 'scoped memory for tpu_custom_call.1']
    #allocation5 [shape = 'u8[262144]{0}', space=vmem, size = 0x40000, scoped, tag = 'input window, operand 1, single buffered']
    #allocation6 [shape = 's32[1]{0}', space=sflag, size = 0x4, scoped, tag = 'scoped memory for tpu_custom_call.1']
    #allocation7 [shape = 'u8[4096]{0}', space=vmem, size = 0x1000, scoped, tag = 'input window, operand 2, single buffered']
    #allocation8 [shape = 'u8[262144]{0}', space=vmem, size = 0x40000, scoped, tag = 'input window, operand 3, single buffered']
    #allocation9 [shape = 's32[1]{0}', space=sflag, size = 0x4, scoped, tag = 'scoped memory for tpu_custom_call.1']
    #allocation10 [shape = 'u8[4096]{0}', space=vmem, size = 0x1000, scoped, tag = 'input window, operand 4, single buffered']
    #allocation11 [shape = 'u8[4096]{0}', space=vmem, size = 0x1000, scoped, tag = 'output window, operand 0, single buffered']
    %10 = vsyncpa [#allocation3], 0
    %11 = vsyncpa [#allocation6], 0
    %12 = vsyncpa [#allocation9], 0
    %13 = vsyncpa [#allocation4], 0
    // Predicated region
    $region2: #{tpu_custom_call.1} parent=1 // pred_check
      _
    $region3: #{tpu_custom_call.1} parent=1 // pred_check_branch
      %15 = sbr.rel (0) target = $region5
    $region4: #{tpu_custom_call.1} parent=1 // pred_region
      %17 = vsyncadd [#allocation3], 0
      %s19 = sshll.u32 %s0, 4
      %s20 = int_to_ptr.hbm [resolvable:$true] %s19
      %s21 = sshll.u32 [#allocation2], 4
      %s22 = int_to_ptr.vmem [resolvable:$true] %s21
      %24 = dma.hbm_to_vmem [thread:$0]  %s20, 128, %s22, [#allocation3]
    $region5: #{tpu_custom_call.1} parent=1 // pred_fallthru
      _
    // Predicated region
    $region6: #{tpu_custom_call.1} parent=1 // pred_check
      _
    $region7: #{tpu_custom_call.1} parent=1 // pred_check_branch
      %26 = sbr.rel (0) target = $region9
    $region8: #{tpu_custom_call.1} parent=1 // pred_region
      %28 = vsyncadd [#allocation6], 0
      %s29 = sshll.u32 %s1, 4
      %s30 = int_to_ptr.hbm [resolvable:$true] %s29
      %s31 = sshll.u32 [#allocation5], 4
      %s32 = int_to_ptr.vmem [resolvable:$true] %s31
      %37 = dma.hbm_to_vmem [thread:$0]  %s30, 8192, %s32, [#allocation6], 64, 64, 4
    $region9: #{tpu_custom_call.1} parent=1 // pred_fallthru
      _
    // Predicated region
    $region10: #{tpu_custom_call.1} parent=1 // pred_check
      _
    $region11: #{tpu_custom_call.1} parent=1 // pred_check_branch
      %39 = sbr.rel (0) target = $region13
    $region12: #{tpu_custom_call.1} parent=1 // pred_region
      %41 = vsyncadd [#allocation6], 0
      %s43 = sshll.u32 %s2, 4
      %s44 = int_to_ptr.hbm [resolvable:$true] %s43
      %s45 = sshll.u32 [#allocation7], 4
      %s46 = int_to_ptr.vmem [resolvable:$true] %s45
      %48 = dma.hbm_to_vmem [thread:$0]  %s44, 128, %s46, [#allocation6]
    $region13: #{tpu_custom_call.1} parent=1 // pred_fallthru
      _
    // Predicated region
    $region14: #{tpu_custom_call.1} parent=1 // pred_check
      _
    $region15: #{tpu_custom_call.1} parent=1 // pred_check_branch
      %50 = sbr.rel (0) target = $region17
    $region16: #{tpu_custom_call.1} parent=1 // pred_region
      %52 = vsyncadd [#allocation9], 0
      %s53 = sshll.u32 %s3, 4
      %s54 = int_to_ptr.hbm [resolvable:$true] %s53
      %s55 = sshll.u32 [#allocation8], 4
      %s56 = int_to_ptr.vmem [resolvable:$true] %s55
      %61 = dma.hbm_to_vmem [thread:$0]  %s54, 8192, %s56, [#allocation9], 64, 64, 4
    $region17: #{tpu_custom_call.1} parent=1 // pred_fallthru
      _
    // Predicated region
    $region18: #{tpu_custom_call.1} parent=1 // pred_check
      _
    $region19: #{tpu_custom_call.1} parent=1 // pred_check_branch
      %63 = sbr.rel (0) target = $region21
    $region20: #{tpu_custom_call.1} parent=1 // pred_region
      %65 = vsyncadd [#allocation9], 0
      %s67 = sshll.u32 %s4, 4
      %s68 = int_to_ptr.hbm [resolvable:$true] %s67
      %s69 = sshll.u32 [#allocation10], 4
      %s70 = int_to_ptr.vmem [resolvable:$true] %s69
      %72 = dma.hbm_to_vmem [thread:$0]  %s68, 128, %s70, [#allocation9]
    $region21: #{tpu_custom_call.1} parent=1 // pred_fallthru
      _
    // Predicated region
    $region22: #{tpu_custom_call.1} parent=1 // pred_check
      _
    $region23: #{tpu_custom_call.1} parent=1 // pred_check_branch
      %74 = sbr.rel (0) target = $region25
    $region24: #{tpu_custom_call.1} parent=1 // pred_region
      %76 = dma.done [#allocation3], 128
    $region25: #{tpu_custom_call.1} parent=1 // pred_fallthru
      _
    // Predicated region
    $region26: #{tpu_custom_call.1} parent=1 // pred_check
      _
    $region27: #{tpu_custom_call.1} parent=1 // pred_check_branch
      %78 = sbr.rel (0) target = $region29
    $region28: #{tpu_custom_call.1} parent=1 // pred_region
      %80 = dma.done [#allocation6], 8192
    $region29: #{tpu_custom_call.1} parent=1 // pred_fallthru
      _
    // Predicated region
    $region30: #{tpu_custom_call.1} parent=1 // pred_check
      _
    $region31: #{tpu_custom_call.1} parent=1 // pred_check_branch
      %82 = sbr.rel (0) target = $region33
    $region32: #{tpu_custom_call.1} parent=1 // pred_region
      %84 = dma.done [#allocation6], 128
    $region33: #{tpu_custom_call.1} parent=1 // pred_fallthru
      _
    // Predicated region
    $region34: #{tpu_custom_call.1} parent=1 // pred_check
      _
    $region35: #{tpu_custom_call.1} parent=1 // pred_check_branch
      %86 = sbr.rel (0) target = $region37
    $region36: #{tpu_custom_call.1} parent=1 // pred_region
      %88 = dma.done [#allocation9], 8192
    $region37: #{tpu_custom_call.1} parent=1 // pred_fallthru
      _
    // Predicated region
    $region38: #{tpu_custom_call.1} parent=1 // pred_check
      _
    $region39: #{tpu_custom_call.1} parent=1 // pred_check_branch
      %90 = sbr.rel (0) target = $region41
    $region40: #{tpu_custom_call.1} parent=1 // pred_region
      %92 = dma.done [#allocation9], 128
    $region41: #{tpu_custom_call.1} parent=1 // pred_fallthru
      _
    %v93 = vld [vmem:[#allocation2] sm:$0xff]
    %v94 = vpack.c.bf16 %v93, %v93
    %v95 = vld [vmem:[#allocation5] sm:$0xf]
    %v96 = vld [vmem:[#allocation5 + $0x4] sm:$0xf]
    %v97 = vld [vmem:[#allocation5 + $0x8] sm:$0xf]
    %v98 = vld [vmem:[#allocation5 + $0xc] sm:$0xf]
    %v99 = vld [vmem:[#allocation5 + $0x10] sm:$0xf]
    %v100 = vld [vmem:[#allocation5 + $0x14] sm:$0xf]
    %v101 = vld [vmem:[#allocation5 + $0x18] sm:$0xf]
    %v102 = vld [vmem:[#allocation5 + $0x1c] sm:$0xf]
    %v103 = vld [vmem:[#allocation5 + $0x20] sm:$0xf]
    %v104 = vld [vmem:[#allocation5 + $0x24] sm:$0xf]
    %v105 = vld [vmem:[#allocation5 + $0x28] sm:$0xf]
    %v106 = vld [vmem:[#allocation5 + $0x2c] sm:$0xf]
    %v107 = vld [vmem:[#allocation5 + $0x30] sm:$0xf]
    %v108 = vld [vmem:[#allocation5 + $0x34] sm:$0xf]
    %v109 = vld [vmem:[#allocation5 + $0x38] sm:$0xf]
    %v110 = vld [vmem:[#allocation5 + $0x3c] sm:$0xf]
    %v111 = vld [vmem:[#allocation7] sm:$0x1]
    %v112 = vperm.slane %v111, 0
    %v129 = vunpack.c.l.b16 %v95
    %v130 = vunpack.c.l.b16 %v96
    %v131 = vunpack.c.l.b16 %v97
    %v132 = vunpack.c.l.b16 %v98
    %v133 = vunpack.c.l.b16 %v99
    %v134 = vunpack.c.l.b16 %v100
    %v135 = vunpack.c.l.b16 %v101
    %v136 = vunpack.c.l.b16 %v102
    %v137 = vunpack.c.l.b16 %v103
    %v138 = vunpack.c.l.b16 %v104
    %v139 = vunpack.c.l.b16 %v105
    %v140 = vunpack.c.l.b16 %v106
    %v141 = vunpack.c.l.b16 %v107
    %v142 = vunpack.c.l.b16 %v108
    %v143 = vunpack.c.l.b16 %v109
    %v144 = vunpack.c.l.b16 %v110
    %v145 = vpack.c.b16 %v130, %v129
    %v146 = vpack.c.b16 %v132, %v131
    %v147 = vpack.c.b16 %v134, %v133
    %v148 = vpack.c.b16 %v136, %v135
    %v149 = vpack.c.b16 %v138, %v137
    %v150 = vpack.c.b16 %v140, %v139
    %v151 = vpack.c.b16 %v142, %v141
    %v152 = vpack.c.b16 %v144, %v143
    %161 = vmatpush.bf16.msra.mxu0 %v152
    %162 = vmatpush.bf16.msra.mxu0 %v151
    %163 = vmatpush.bf16.msra.mxu0 %v150
    %164 = vmatpush.bf16.msra.mxu0 %v149
    %165 = vmatpush.bf16.msra.mxu0 %v148
    %166 = vmatpush.bf16.msra.mxu0 %v147
    %167 = vmatpush.bf16.msra.mxu0 %v146
    %168 = vmatpush.bf16.msra.mxu0 %v145
    %169 = vmatmul.bf16.gmra.mxu0 %v94
    %v170 = vpop.f32.mrf.mxu0
    %v171 = vadd.f32 %v112, %v170
    %v172 = vpop.f32.mrf.mxu0
    %173 = vdwg.mxu0
    %vm174 = vcmp.ge.f32.partialorder %v171, 0.0
    %v175 = vmul.f32 %v171, 0.2
    %v176 = vsel %vm174, %v171, %v175
    %v177 = vpack.c.bf16 %v176, %v176
    %v178 = vld [vmem:[#allocation8] sm:$0xf]
    %v179 = vld [vmem:[#allocation8 + $0x4] sm:$0xf]
    %v180 = vld [vmem:[#allocation8 + $0x8] sm:$0xf]
    %v181 = vld [vmem:[#allocation8 + $0xc] sm:$0xf]
    %v182 = vld [vmem:[#allocation8 + $0x10] sm:$0xf]
    %v183 = vld [vmem:[#allocation8 + $0x14] sm:$0xf]
    %v184 = vld [vmem:[#allocation8 + $0x18] sm:$0xf]
    %v185 = vld [vmem:[#allocation8 + $0x1c] sm:$0xf]
    %v186 = vld [vmem:[#allocation8 + $0x20] sm:$0xf]
    %v187 = vld [vmem:[#allocation8 + $0x24] sm:$0xf]
    %v188 = vld [vmem:[#allocation8 + $0x28] sm:$0xf]
    %v189 = vld [vmem:[#allocation8 + $0x2c] sm:$0xf]
    %v190 = vld [vmem:[#allocation8 + $0x30] sm:$0xf]
    %v191 = vld [vmem:[#allocation8 + $0x34] sm:$0xf]
    %v192 = vld [vmem:[#allocation8 + $0x38] sm:$0xf]
    %v193 = vld [vmem:[#allocation8 + $0x3c] sm:$0xf]
    %v210 = vunpack.c.l.b16 %v178
    %v211 = vunpack.c.l.b16 %v179
    %v212 = vunpack.c.l.b16 %v180
    %v213 = vunpack.c.l.b16 %v181
    %v214 = vunpack.c.l.b16 %v182
    %v215 = vunpack.c.l.b16 %v183
    %v216 = vunpack.c.l.b16 %v184
    %v217 = vunpack.c.l.b16 %v185
    %v218 = vunpack.c.l.b16 %v186
    %v219 = vunpack.c.l.b16 %v187
    %v220 = vunpack.c.l.b16 %v188
    %v221 = vunpack.c.l.b16 %v189
    %v222 = vunpack.c.l.b16 %v190
    %v223 = vunpack.c.l.b16 %v191
    %v224 = vunpack.c.l.b16 %v192
    %v225 = vunpack.c.l.b16 %v193
    %v226 = vpack.c.b16 %v211, %v210
    %v227 = vpack.c.b16 %v213, %v212
    %v228 = vpack.c.b16 %v215, %v214
    %v229 = vpack.c.b16 %v217, %v216
    %v230 = vpack.c.b16 %v219, %v218
    %v231 = vpack.c.b16 %v221, %v220
    %v232 = vpack.c.b16 %v223, %v222
    %v233 = vpack.c.b16 %v225, %v224
    %242 = vmatpush.bf16.msra.mxu0 %v233
    %243 = vmatpush.bf16.msra.mxu0 %v232
    %244 = vmatpush.bf16.msra.mxu0 %v231
    %245 = vmatpush.bf16.msra.mxu0 %v230
    %246 = vmatpush.bf16.msra.mxu0 %v229
    %247 = vmatpush.bf16.msra.mxu0 %v228
    %248 = vmatpush.bf16.msra.mxu0 %v227
    %249 = vmatpush.bf16.msra.mxu0 %v226
    %250 = vmatmul.bf16.gmra.mxu0 %v177
    %v251 = vpop.f32.mrf.mxu0
    %v252 = vadd.f32 0.0, %v251
    %v253 = vpop.f32.mrf.mxu0
    %254 = vdwg.mxu0
    %v255 = vadd.f32 %v93, %v252
    %v256 = vld [vmem:[#allocation10] sm:$0x1]
    %v257 = vperm.slane %v256, 0
    %v258 = vadd.f32 %v255, %v257
    %v259 = vpack.c.bf16 %v258, %v258
    %s260 = scalar_lea.vmem [#allocation5], 64
    %v261 = vld [vmem:[%s260] sm:$0xf]
    %v262 = vld [vmem:[%s260 + $0x4] sm:$0xf]
    %v263 = vld [vmem:[%s260 + $0x8] sm:$0xf]
    %v264 = vld [vmem:[%s260 + $0xc] sm:$0xf]
    %v265 = vld [vmem:[%s260 + $0x10] sm:$0xf]
    %v266 = vld [vmem:[%s260 + $0x14] sm:$0xf]
    %v267 = vld [vmem:[%s260 + $0x18] sm:$0xf]
    %v268 = vld [vmem:[%s260 + $0x1c] sm:$0xf]
    %v269 = vld [vmem:[%s260 + $0x20] sm:$0xf]
    %v270 = vld [vmem:[%s260 + $0x24] sm:$0xf]
    %v271 = vld [vmem:[%s260 + $0x28] sm:$0xf]
    %v272 = vld [vmem:[%s260 + $0x2c] sm:$0xf]
    %v273 = vld [vmem:[%s260 + $0x30] sm:$0xf]
    %v274 = vld [vmem:[%s260 + $0x34] sm:$0xf]
    %v275 = vld [vmem:[%s260 + $0x38] sm:$0xf]
    %v276 = vld [vmem:[%s260 + $0x3c] sm:$0xf]
    %v277 = vld [vmem:[#allocation7 + $0x1] sm:$0x1]
    %v278 = vperm.slane %v277, 0
    %v295 = vunpack.c.l.b16 %v261
    %v296 = vunpack.c.l.b16 %v262
    %v297 = vunpack.c.l.b16 %v263
    %v298 = vunpack.c.l.b16 %v264
    %v299 = vunpack.c.l.b16 %v265
    %v300 = vunpack.c.l.b16 %v266
    %v301 = vunpack.c.l.b16 %v267
    %v302 = vunpack.c.l.b16 %v268
    %v303 = vunpack.c.l.b16 %v269
    %v304 = vunpack.c.l.b16 %v270
    %v305 = vunpack.c.l.b16 %v271
    %v306 = vunpack.c.l.b16 %v272
    %v307 = vunpack.c.l.b16 %v273
    %v308 = vunpack.c.l.b16 %v274
    %v309 = vunpack.c.l.b16 %v275
    %v310 = vunpack.c.l.b16 %v276
    %v311 = vpack.c.b16 %v296, %v295
    %v312 = vpack.c.b16 %v298, %v297
    %v313 = vpack.c.b16 %v300, %v299
    %v314 = vpack.c.b16 %v302, %v301
    %v315 = vpack.c.b16 %v304, %v303
    %v316 = vpack.c.b16 %v306, %v305
    %v317 = vpack.c.b16 %v308, %v307
    %v318 = vpack.c.b16 %v310, %v309
    %327 = vmatpush.bf16.msra.mxu0 %v318
    %328 = vmatpush.bf16.msra.mxu0 %v317
    %329 = vmatpush.bf16.msra.mxu0 %v316
    %330 = vmatpush.bf16.msra.mxu0 %v315
    %331 = vmatpush.bf16.msra.mxu0 %v314
    %332 = vmatpush.bf16.msra.mxu0 %v313
    %333 = vmatpush.bf16.msra.mxu0 %v312
    %334 = vmatpush.bf16.msra.mxu0 %v311
    %335 = vmatmul.bf16.gmra.mxu0 %v259
    %v336 = vpop.f32.mrf.mxu0
    %v337 = vadd.f32 %v278, %v336
    %v338 = vpop.f32.mrf.mxu0
    %339 = vdwg.mxu0
    %vm340 = vcmp.ge.f32.partialorder %v337, 0.0
    %v341 = vmul.f32 %v337, 0.2
    %v342 = vsel %vm340, %v337, %v341
    %v343 = vpack.c.bf16 %v342, %v342
    %s344 = scalar_lea.vmem [#allocation8], 64
    %v345 = vld [vmem:[%s344] sm:$0xf]
    %v346 = vld [vmem:[%s344 + $0x4] sm:$0xf]
    %v347 = vld [vmem:[%s344 + $0x8] sm:$0xf]
    %v348 = vld [vmem:[%s344 + $0xc] sm:$0xf]
    %v349 = vld [vmem:[%s344 + $0x10] sm:$0xf]
    %v350 = vld [vmem:[%s344 + $0x14] sm:$0xf]
    %v351 = vld [vmem:[%s344 + $0x18] sm:$0xf]
    %v352 = vld [vmem:[%s344 + $0x1c] sm:$0xf]
    %v353 = vld [vmem:[%s344 + $0x20] sm:$0xf]
    %v354 = vld [vmem:[%s344 + $0x24] sm:$0xf]
    %v355 = vld [vmem:[%s344 + $0x28] sm:$0xf]
    %v356 = vld [vmem:[%s344 + $0x2c] sm:$0xf]
    %v357 = vld [vmem:[%s344 + $0x30] sm:$0xf]
    %v358 = vld [vmem:[%s344 + $0x34] sm:$0xf]
    %v359 = vld [vmem:[%s344 + $0x38] sm:$0xf]
    %v360 = vld [vmem:[%s344 + $0x3c] sm:$0xf]
    %v377 = vunpack.c.l.b16 %v345
    %v378 = vunpack.c.l.b16 %v346
    %v379 = vunpack.c.l.b16 %v347
    %v380 = vunpack.c.l.b16 %v348
    %v381 = vunpack.c.l.b16 %v349
    %v382 = vunpack.c.l.b16 %v350
    %v383 = vunpack.c.l.b16 %v351
    %v384 = vunpack.c.l.b16 %v352
    %v385 = vunpack.c.l.b16 %v353
    %v386 = vunpack.c.l.b16 %v354
    %v387 = vunpack.c.l.b16 %v355
    %v388 = vunpack.c.l.b16 %v356
    %v389 = vunpack.c.l.b16 %v357
    %v390 = vunpack.c.l.b16 %v358
    %v391 = vunpack.c.l.b16 %v359
    %v392 = vunpack.c.l.b16 %v360
    %v393 = vpack.c.b16 %v378, %v377
    %v394 = vpack.c.b16 %v380, %v379
    %v395 = vpack.c.b16 %v382, %v381
    %v396 = vpack.c.b16 %v384, %v383
    %v397 = vpack.c.b16 %v386, %v385
    %v398 = vpack.c.b16 %v388, %v387
    %v399 = vpack.c.b16 %v390, %v389
    %v400 = vpack.c.b16 %v392, %v391
    %409 = vmatpush.bf16.msra.mxu0 %v400
    %410 = vmatpush.bf16.msra.mxu0 %v399
    %411 = vmatpush.bf16.msra.mxu0 %v398
    %412 = vmatpush.bf16.msra.mxu0 %v397
    %413 = vmatpush.bf16.msra.mxu0 %v396
    %414 = vmatpush.bf16.msra.mxu0 %v395
    %415 = vmatpush.bf16.msra.mxu0 %v394
    %416 = vmatpush.bf16.msra.mxu0 %v393
    %417 = vmatmul.bf16.gmra.mxu0 %v343
    %v418 = vpop.f32.mrf.mxu0
    %v419 = vadd.f32 0.0, %v418
    %v420 = vpop.f32.mrf.mxu0
    %421 = vdwg.mxu0
    %v422 = vadd.f32 %v258, %v419
    %v423 = vld [vmem:[#allocation10 + $0x1] sm:$0x1]
    %v424 = vperm.slane %v423, 0
    %v425 = vadd.f32 %v422, %v424
    %v426 = vpack.c.bf16 %v425, %v425
    %s427 = scalar_lea.vmem [#allocation5], 128
    %v428 = vld [vmem:[%s427] sm:$0xf]
    %v429 = vld [vmem:[%s427 + $0x4] sm:$0xf]
    %v430 = vld [vmem:[%s427 + $0x8] sm:$0xf]
    %v431 = vld [vmem:[%s427 + $0xc] sm:$0xf]
    %v432 = vld [vmem:[%s427 + $0x10] sm:$0xf]
    %v433 = vld [vmem:[%s427 + $0x14] sm:$0xf]
    %v434 = vld [vmem:[%s427 + $0x18] sm:$0xf]
    %v435 = vld [vmem:[%s427 + $0x1c] sm:$0xf]
    %v436 = vld [vmem:[%s427 + $0x20] sm:$0xf]
    %v437 = vld [vmem:[%s427 + $0x24] sm:$0xf]
    %v438 = vld [vmem:[%s427 + $0x28] sm:$0xf]
    %v439 = vld [vmem:[%s427 + $0x2c] sm:$0xf]
    %v440 = vld [vmem:[%s427 + $0x30] sm:$0xf]
    %v441 = vld [vmem:[%s427 + $0x34] sm:$0xf]
    %v442 = vld [vmem:[%s427 + $0x38] sm:$0xf]
    %v443 = vld [vmem:[%s427 + $0x3c] sm:$0xf]
    %v444 = vld [vmem:[#allocation7 + $0x2] sm:$0x1]
    %v445 = vperm.slane %v444, 0
    %v462 = vunpack.c.l.b16 %v428
    %v463 = vunpack.c.l.b16 %v429
    %v464 = vunpack.c.l.b16 %v430
    %v465 = vunpack.c.l.b16 %v431
    %v466 = vunpack.c.l.b16 %v432
    %v467 = vunpack.c.l.b16 %v433
    %v468 = vunpack.c.l.b16 %v434
    %v469 = vunpack.c.l.b16 %v435
    %v470 = vunpack.c.l.b16 %v436
    %v471 = vunpack.c.l.b16 %v437
    %v472 = vunpack.c.l.b16 %v438
    %v473 = vunpack.c.l.b16 %v439
    %v474 = vunpack.c.l.b16 %v440
    %v475 = vunpack.c.l.b16 %v441
    %v476 = vunpack.c.l.b16 %v442
    %v477 = vunpack.c.l.b16 %v443
    %v478 = vpack.c.b16 %v463, %v462
    %v479 = vpack.c.b16 %v465, %v464
    %v480 = vpack.c.b16 %v467, %v466
    %v481 = vpack.c.b16 %v469, %v468
    %v482 = vpack.c.b16 %v471, %v470
    %v483 = vpack.c.b16 %v473, %v472
    %v484 = vpack.c.b16 %v475, %v474
    %v485 = vpack.c.b16 %v477, %v476
    %494 = vmatpush.bf16.msra.mxu0 %v485
    %495 = vmatpush.bf16.msra.mxu0 %v484
    %496 = vmatpush.bf16.msra.mxu0 %v483
    %497 = vmatpush.bf16.msra.mxu0 %v482
    %498 = vmatpush.bf16.msra.mxu0 %v481
    %499 = vmatpush.bf16.msra.mxu0 %v480
    %500 = vmatpush.bf16.msra.mxu0 %v479
    %501 = vmatpush.bf16.msra.mxu0 %v478
    %502 = vmatmul.bf16.gmra.mxu0 %v426
    %v503 = vpop.f32.mrf.mxu0
    %v504 = vadd.f32 %v445, %v503
    %v505 = vpop.f32.mrf.mxu0
    %506 = vdwg.mxu0
    %vm507 = vcmp.ge.f32.partialorder %v504, 0.0
    %v508 = vmul.f32 %v504, 0.2
    %v509 = vsel %vm507, %v504, %v508
    %v510 = vpack.c.bf16 %v509, %v509
    %s511 = scalar_lea.vmem [#allocation8], 128
    %v512 = vld [vmem:[%s511] sm:$0xf]
    %v513 = vld [vmem:[%s511 + $0x4] sm:$0xf]
    %v514 = vld [vmem:[%s511 + $0x8] sm:$0xf]
    %v515 = vld [vmem:[%s511 + $0xc] sm:$0xf]
    %v516 = vld [vmem:[%s511 + $0x10] sm:$0xf]
    %v517 = vld [vmem:[%s511 + $0x14] sm:$0xf]
    %v518 = vld [vmem:[%s511 + $0x18] sm:$0xf]
    %v519 = vld [vmem:[%s511 + $0x1c] sm:$0xf]
    %v520 = vld [vmem:[%s511 + $0x20] sm:$0xf]
    %v521 = vld [vmem:[%s511 + $0x24] sm:$0xf]
    %v522 = vld [vmem:[%s511 + $0x28] sm:$0xf]
    %v523 = vld [vmem:[%s511 + $0x2c] sm:$0xf]
    %v524 = vld [vmem:[%s511 + $0x30] sm:$0xf]
    %v525 = vld [vmem:[%s511 + $0x34] sm:$0xf]
    %v526 = vld [vmem:[%s511 + $0x38] sm:$0xf]
    %v527 = vld [vmem:[%s511 + $0x3c] sm:$0xf]
    %v544 = vunpack.c.l.b16 %v512
    %v545 = vunpack.c.l.b16 %v513
    %v546 = vunpack.c.l.b16 %v514
    %v547 = vunpack.c.l.b16 %v515
    %v548 = vunpack.c.l.b16 %v516
    %v549 = vunpack.c.l.b16 %v517
    %v550 = vunpack.c.l.b16 %v518
    %v551 = vunpack.c.l.b16 %v519
    %v552 = vunpack.c.l.b16 %v520
    %v553 = vunpack.c.l.b16 %v521
    %v554 = vunpack.c.l.b16 %v522
    %v555 = vunpack.c.l.b16 %v523
    %v556 = vunpack.c.l.b16 %v524
    %v557 = vunpack.c.l.b16 %v525
    %v558 = vunpack.c.l.b16 %v526
    %v559 = vunpack.c.l.b16 %v527
    %v560 = vpack.c.b16 %v545, %v544
    %v561 = vpack.c.b16 %v547, %v546
    %v562 = vpack.c.b16 %v549, %v548
    %v563 = vpack.c.b16 %v551, %v550
    %v564 = vpack.c.b16 %v553, %v552
    %v565 = vpack.c.b16 %v555, %v554
    %v566 = vpack.c.b16 %v557, %v556
    %v567 = vpack.c.b16 %v559, %v558
    %576 = vmatpush.bf16.msra.mxu0 %v567
    %577 = vmatpush.bf16.msra.mxu0 %v566
    %578 = vmatpush.bf16.msra.mxu0 %v565
    %579 = vmatpush.bf16.msra.mxu0 %v564
    %580 = vmatpush.bf16.msra.mxu0 %v563
    %581 = vmatpush.bf16.msra.mxu0 %v562
    %582 = vmatpush.bf16.msra.mxu0 %v561
    %583 = vmatpush.bf16.msra.mxu0 %v560
    %584 = vmatmul.bf16.gmra.mxu0 %v510
    %v585 = vpop.f32.mrf.mxu0
    %v586 = vadd.f32 0.0, %v585
    %v587 = vpop.f32.mrf.mxu0
    %588 = vdwg.mxu0
    %v589 = vadd.f32 %v425, %v586
    %v590 = vld [vmem:[#allocation10 + $0x2] sm:$0x1]
    %v591 = vperm.slane %v590, 0
    %v592 = vadd.f32 %v589, %v591
    %v593 = vpack.c.bf16 %v592, %v592
    %s594 = scalar_lea.vmem [#allocation5], 192
    %v595 = vld [vmem:[%s594] sm:$0xf]
    %v596 = vld [vmem:[%s594 + $0x4] sm:$0xf]
    %v597 = vld [vmem:[%s594 + $0x8] sm:$0xf]
    %v598 = vld [vmem:[%s594 + $0xc] sm:$0xf]
    %v599 = vld [vmem:[%s594 + $0x10] sm:$0xf]
    %v600 = vld [vmem:[%s594 + $0x14] sm:$0xf]
    %v601 = vld [vmem:[%s594 + $0x18] sm:$0xf]
    %v602 = vld [vmem:[%s594 + $0x1c] sm:$0xf]
    %v603 = vld [vmem:[%s594 + $0x20] sm:$0xf]
    %v604 = vld [vmem:[%s594 + $0x24] sm:$0xf]
    %v605 = vld [vmem:[%s594 + $0x28] sm:$0xf]
    %v606 = vld [vmem:[%s594 + $0x2c] sm:$0xf]
    %v607 = vld [vmem:[%s594 + $0x30] sm:$0xf]
    %v608 = vld [vmem:[%s594 + $0x34] sm:$0xf]
    %v609 = vld [vmem:[%s594 + $0x38] sm:$0xf]
    %v610 = vld [vmem:[%s594 + $0x3c] sm:$0xf]
    %v611 = vld [vmem:[#allocation7 + $0x3] sm:$0x1]
    %v612 = vperm.slane %v611, 0
    %v629 = vunpack.c.l.b16 %v595
    %v630 = vunpack.c.l.b16 %v596
    %v631 = vunpack.c.l.b16 %v597
    %v632 = vunpack.c.l.b16 %v598
    %v633 = vunpack.c.l.b16 %v599
    %v634 = vunpack.c.l.b16 %v600
    %v635 = vunpack.c.l.b16 %v601
    %v636 = vunpack.c.l.b16 %v602
    %v637 = vunpack.c.l.b16 %v603
    %v638 = vunpack.c.l.b16 %v604
    %v639 = vunpack.c.l.b16 %v605
    %v640 = vunpack.c.l.b16 %v606
    %v641 = vunpack.c.l.b16 %v607
    %v642 = vunpack.c.l.b16 %v608
    %v643 = vunpack.c.l.b16 %v609
    %v644 = vunpack.c.l.b16 %v610
    %v645 = vpack.c.b16 %v630, %v629
    %v646 = vpack.c.b16 %v632, %v631
    %v647 = vpack.c.b16 %v634, %v633
    %v648 = vpack.c.b16 %v636, %v635
    %v649 = vpack.c.b16 %v638, %v637
    %v650 = vpack.c.b16 %v640, %v639
    %v651 = vpack.c.b16 %v642, %v641
    %v652 = vpack.c.b16 %v644, %v643
    %661 = vmatpush.bf16.msra.mxu0 %v652
    %662 = vmatpush.bf16.msra.mxu0 %v651
    %663 = vmatpush.bf16.msra.mxu0 %v650
    %664 = vmatpush.bf16.msra.mxu0 %v649
    %665 = vmatpush.bf16.msra.mxu0 %v648
    %666 = vmatpush.bf16.msra.mxu0 %v647
    %667 = vmatpush.bf16.msra.mxu0 %v646
    %668 = vmatpush.bf16.msra.mxu0 %v645
    %669 = vmatmul.bf16.gmra.mxu0 %v593
    %v670 = vpop.f32.mrf.mxu0
    %v671 = vadd.f32 %v612, %v670
    %v672 = vpop.f32.mrf.mxu0
    %673 = vdwg.mxu0
    %vm674 = vcmp.ge.f32.partialorder %v671, 0.0
    %v675 = vmul.f32 %v671, 0.2
    %v676 = vsel %vm674, %v671, %v675
    %v677 = vpack.c.bf16 %v676, %v676
    %s678 = scalar_lea.vmem [#allocation8], 192
    %v679 = vld [vmem:[%s678] sm:$0xf]
    %v680 = vld [vmem:[%s678 + $0x4] sm:$0xf]
    %v681 = vld [vmem:[%s678 + $0x8] sm:$0xf]
    %v682 = vld [vmem:[%s678 + $0xc] sm:$0xf]
    %v683 = vld [vmem:[%s678 + $0x10] sm:$0xf]
    %v684 = vld [vmem:[%s678 + $0x14] sm:$0xf]
    %v685 = vld [vmem:[%s678 + $0x18] sm:$0xf]
    %v686 = vld [vmem:[%s678 + $0x1c] sm:$0xf]
    %v687 = vld [vmem:[%s678 + $0x20] sm:$0xf]
    %v688 = vld [vmem:[%s678 + $0x24] sm:$0xf]
    %v689 = vld [vmem:[%s678 + $0x28] sm:$0xf]
    %v690 = vld [vmem:[%s678 + $0x2c] sm:$0xf]
    %v691 = vld [vmem:[%s678 + $0x30] sm:$0xf]
    %v692 = vld [vmem:[%s678 + $0x34] sm:$0xf]
    %v693 = vld [vmem:[%s678 + $0x38] sm:$0xf]
    %v694 = vld [vmem:[%s678 + $0x3c] sm:$0xf]
    %v711 = vunpack.c.l.b16 %v679
    %v712 = vunpack.c.l.b16 %v680
    %v713 = vunpack.c.l.b16 %v681
    %v714 = vunpack.c.l.b16 %v682
    %v715 = vunpack.c.l.b16 %v683
    %v716 = vunpack.c.l.b16 %v684
    %v717 = vunpack.c.l.b16 %v685
    %v718 = vunpack.c.l.b16 %v686
    %v719 = vunpack.c.l.b16 %v687
    %v720 = vunpack.c.l.b16 %v688
    %v721 = vunpack.c.l.b16 %v689
    %v722 = vunpack.c.l.b16 %v690
    %v723 = vunpack.c.l.b16 %v691
    %v724 = vunpack.c.l.b16 %v692
    %v725 = vunpack.c.l.b16 %v693
    %v726 = vunpack.c.l.b16 %v694
    %v727 = vpack.c.b16 %v712, %v711
    %v728 = vpack.c.b16 %v714, %v713
    %v729 = vpack.c.b16 %v716, %v715
    %v730 = vpack.c.b16 %v718, %v717
    %v731 = vpack.c.b16 %v720, %v719
    %v732 = vpack.c.b16 %v722, %v721
    %v733 = vpack.c.b16 %v724, %v723
    %v734 = vpack.c.b16 %v726, %v725
    %743 = vmatpush.bf16.msra.mxu0 %v734
    %744 = vmatpush.bf16.msra.mxu0 %v733
    %745 = vmatpush.bf16.msra.mxu0 %v732
    %746 = vmatpush.bf16.msra.mxu0 %v731
    %747 = vmatpush.bf16.msra.mxu0 %v730
    %748 = vmatpush.bf16.msra.mxu0 %v729
    %749 = vmatpush.bf16.msra.mxu0 %v728
    %750 = vmatpush.bf16.msra.mxu0 %v727
    %751 = vmatmul.bf16.gmra.mxu0 %v677
    %v752 = vpop.f32.mrf.mxu0
    %v753 = vadd.f32 0.0, %v752
    %v754 = vpop.f32.mrf.mxu0
    %755 = vdwg.mxu0
    %v756 = vadd.f32 %v592, %v753
    %v757 = vld [vmem:[#allocation10 + $0x3] sm:$0x1]
    %v758 = vperm.slane %v757, 0
    %v759 = vadd.f32 %v756, %v758
    %v760 = vpack.c.bf16 %v759, %v759
    %s761 = scalar_lea.vmem [#allocation5], 256
    %v762 = vld [vmem:[%s761] sm:$0xf]
    %v763 = vld [vmem:[%s761 + $0x4] sm:$0xf]
    %v764 = vld [vmem:[%s761 + $0x8] sm:$0xf]
    %v765 = vld [vmem:[%s761 + $0xc] sm:$0xf]
    %v766 = vld [vmem:[%s761 + $0x10] sm:$0xf]
    %v767 = vld [vmem:[%s761 + $0x14] sm:$0xf]
    %v768 = vld [vmem:[%s761 + $0x18] sm:$0xf]
    %v769 = vld [vmem:[%s761 + $0x1c] sm:$0xf]
    %v770 = vld [vmem:[%s761 + $0x20] sm:$0xf]
    %v771 = vld [vmem:[%s761 + $0x24] sm:$0xf]
    %v772 = vld [vmem:[%s761 + $0x28] sm:$0xf]
    %v773 = vld [vmem:[%s761 + $0x2c] sm:$0xf]
    %v774 = vld [vmem:[%s761 + $0x30] sm:$0xf]
    %v775 = vld [vmem:[%s761 + $0x34] sm:$0xf]
    %v776 = vld [vmem:[%s761 + $0x38] sm:$0xf]
    %v777 = vld [vmem:[%s761 + $0x3c] sm:$0xf]
    %v778 = vld [vmem:[#allocation7 + $0x4] sm:$0x1]
    %v779 = vperm.slane %v778, 0
    %v796 = vunpack.c.l.b16 %v762
    %v797 = vunpack.c.l.b16 %v763
    %v798 = vunpack.c.l.b16 %v764
    %v799 = vunpack.c.l.b16 %v765
    %v800 = vunpack.c.l.b16 %v766
    %v801 = vunpack.c.l.b16 %v767
    %v802 = vunpack.c.l.b16 %v768
    %v803 = vunpack.c.l.b16 %v769
    %v804 = vunpack.c.l.b16 %v770
    %v805 = vunpack.c.l.b16 %v771
    %v806 = vunpack.c.l.b16 %v772
    %v807 = vunpack.c.l.b16 %v773
    %v808 = vunpack.c.l.b16 %v774
    %v809 = vunpack.c.l.b16 %v775
    %v810 = vunpack.c.l.b16 %v776
    %v811 = vunpack.c.l.b16 %v777
    %v812 = vpack.c.b16 %v797, %v796
    %v813 = vpack.c.b16 %v799, %v798
    %v814 = vpack.c.b16 %v801, %v800
    %v815 = vpack.c.b16 %v803, %v802
    %v816 = vpack.c.b16 %v805, %v804
    %v817 = vpack.c.b16 %v807, %v806
    %v818 = vpack.c.b16 %v809, %v808
    %v819 = vpack.c.b16 %v811, %v810
    %828 = vmatpush.bf16.msra.mxu0 %v819
    %829 = vmatpush.bf16.msra.mxu0 %v818
    %830 = vmatpush.bf16.msra.mxu0 %v817
    %831 = vmatpush.bf16.msra.mxu0 %v816
    %832 = vmatpush.bf16.msra.mxu0 %v815
    %833 = vmatpush.bf16.msra.mxu0 %v814
    %834 = vmatpush.bf16.msra.mxu0 %v813
    %835 = vmatpush.bf16.msra.mxu0 %v812
    %836 = vmatmul.bf16.gmra.mxu0 %v760
    %v837 = vpop.f32.mrf.mxu0
    %v838 = vadd.f32 %v779, %v837
    %v839 = vpop.f32.mrf.mxu0
    %840 = vdwg.mxu0
    %vm841 = vcmp.ge.f32.partialorder %v838, 0.0
    %v842 = vmul.f32 %v838, 0.2
    %v843 = vsel %vm841, %v838, %v842
    %v844 = vpack.c.bf16 %v843, %v843
    %s845 = scalar_lea.vmem [#allocation8], 256
    %v846 = vld [vmem:[%s845] sm:$0xf]
    %v847 = vld [vmem:[%s845 + $0x4] sm:$0xf]
    %v848 = vld [vmem:[%s845 + $0x8] sm:$0xf]
    %v849 = vld [vmem:[%s845 + $0xc] sm:$0xf]
    %v850 = vld [vmem:[%s845 + $0x10] sm:$0xf]
    %v851 = vld [vmem:[%s845 + $0x14] sm:$0xf]
    %v852 = vld [vmem:[%s845 + $0x18] sm:$0xf]
    %v853 = vld [vmem:[%s845 + $0x1c] sm:$0xf]
    %v854 = vld [vmem:[%s845 + $0x20] sm:$0xf]
    %v855 = vld [vmem:[%s845 + $0x24] sm:$0xf]
    %v856 = vld [vmem:[%s845 + $0x28] sm:$0xf]
    %v857 = vld [vmem:[%s845 + $0x2c] sm:$0xf]
    %v858 = vld [vmem:[%s845 + $0x30] sm:$0xf]
    %v859 = vld [vmem:[%s845 + $0x34] sm:$0xf]
    %v860 = vld [vmem:[%s845 + $0x38] sm:$0xf]
    %v861 = vld [vmem:[%s845 + $0x3c] sm:$0xf]
    %v878 = vunpack.c.l.b16 %v846
    %v879 = vunpack.c.l.b16 %v847
    %v880 = vunpack.c.l.b16 %v848
    %v881 = vunpack.c.l.b16 %v849
    %v882 = vunpack.c.l.b16 %v850
    %v883 = vunpack.c.l.b16 %v851
    %v884 = vunpack.c.l.b16 %v852
    %v885 = vunpack.c.l.b16 %v853
    %v886 = vunpack.c.l.b16 %v854
    %v887 = vunpack.c.l.b16 %v855
    %v888 = vunpack.c.l.b16 %v856
    %v889 = vunpack.c.l.b16 %v857
    %v890 = vunpack.c.l.b16 %v858
    %v891 = vunpack.c.l.b16 %v859
    %v892 = vunpack.c.l.b16 %v860
    %v893 = vunpack.c.l.b16 %v861
    %v894 = vpack.c.b16 %v879, %v878
    %v895 = vpack.c.b16 %v881, %v880
    %v896 = vpack.c.b16 %v883, %v882
    %v897 = vpack.c.b16 %v885, %v884
    %v898 = vpack.c.b16 %v887, %v886
    %v899 = vpack.c.b16 %v889, %v888
    %v900 = vpack.c.b16 %v891, %v890
    %v901 = vpack.c.b16 %v893, %v892
    %910 = vmatpush.bf16.msra.mxu0 %v901
    %911 = vmatpush.bf16.msra.mxu0 %v900
    %912 = vmatpush.bf16.msra.mxu0 %v899
    %913 = vmatpush.bf16.msra.mxu0 %v898
    %914 = vmatpush.bf16.msra.mxu0 %v897
    %915 = vmatpush.bf16.msra.mxu0 %v896
    %916 = vmatpush.bf16.msra.mxu0 %v895
    %917 = vmatpush.bf16.msra.mxu0 %v894
    %918 = vmatmul.bf16.gmra.mxu0 %v844
    %v919 = vpop.f32.mrf.mxu0
    %v920 = vadd.f32 0.0, %v919
    %v921 = vpop.f32.mrf.mxu0
    %922 = vdwg.mxu0
    %v923 = vadd.f32 %v759, %v920
    %v924 = vld [vmem:[#allocation10 + $0x4] sm:$0x1]
    %v925 = vperm.slane %v924, 0
    %v926 = vadd.f32 %v923, %v925
    %v927 = vpack.c.bf16 %v926, %v926
    %s928 = scalar_lea.vmem [#allocation5], 320
    %v929 = vld [vmem:[%s928] sm:$0xf]
    %v930 = vld [vmem:[%s928 + $0x4] sm:$0xf]
    %v931 = vld [vmem:[%s928 + $0x8] sm:$0xf]
    %v932 = vld [vmem:[%s928 + $0xc] sm:$0xf]
    %v933 = vld [vmem:[%s928 + $0x10] sm:$0xf]
    %v934 = vld [vmem:[%s928 + $0x14] sm:$0xf]
    %v935 = vld [vmem:[%s928 + $0x18] sm:$0xf]
    %v936 = vld [vmem:[%s928 + $0x1c] sm:$0xf]
    %v937 = vld [vmem:[%s928 + $0x20] sm:$0xf]
    %v938 = vld [vmem:[%s928 + $0x24] sm:$0xf]
    %v939 = vld [vmem:[%s928 + $0x28] sm:$0xf]
    %v940 = vld [vmem:[%s928 + $0x2c] sm:$0xf]
    %v941 = vld [vmem:[%s928 + $0x30] sm:$0xf]
    %v942 = vld [vmem:[%s928 + $0x34] sm:$0xf]
    %v943 = vld [vmem:[%s928 + $0x38] sm:$0xf]
    %v944 = vld [vmem:[%s928 + $0x3c] sm:$0xf]
    %v945 = vld [vmem:[#allocation7 + $0x5] sm:$0x1]
    %v946 = vperm.slane %v945, 0
    %v963 = vunpack.c.l.b16 %v929
    %v964 = vunpack.c.l.b16 %v930
    %v965 = vunpack.c.l.b16 %v931
    %v966 = vunpack.c.l.b16 %v932
    %v967 = vunpack.c.l.b16 %v933
    %v968 = vunpack.c.l.b16 %v934
    %v969 = vunpack.c.l.b16 %v935
    %v970 = vunpack.c.l.b16 %v936
    %v971 = vunpack.c.l.b16 %v937
    %v972 = vunpack.c.l.b16 %v938
    %v973 = vunpack.c.l.b16 %v939
    %v974 = vunpack.c.l.b16 %v940
    %v975 = vunpack.c.l.b16 %v941
    %v976 = vunpack.c.l.b16 %v942
    %v977 = vunpack.c.l.b16 %v943
    %v978 = vunpack.c.l.b16 %v944
    %v979 = vpack.c.b16 %v964, %v963
    %v980 = vpack.c.b16 %v966, %v965
    %v981 = vpack.c.b16 %v968, %v967
    %v982 = vpack.c.b16 %v970, %v969
    %v983 = vpack.c.b16 %v972, %v971
    %v984 = vpack.c.b16 %v974, %v973
    %v985 = vpack.c.b16 %v976, %v975
    %v986 = vpack.c.b16 %v978, %v977
    %995 = vmatpush.bf16.msra.mxu0 %v986
    %996 = vmatpush.bf16.msra.mxu0 %v985
    %997 = vmatpush.bf16.msra.mxu0 %v984
    %998 = vmatpush.bf16.msra.mxu0 %v983
    %999 = vmatpush.bf16.msra.mxu0 %v982
    %1000 = vmatpush.bf16.msra.mxu0 %v981
    %1001 = vmatpush.bf16.msra.mxu0 %v980
    %1002 = vmatpush.bf16.msra.mxu0 %v979
    %1003 = vmatmul.bf16.gmra.mxu0 %v927
    %v1004 = vpop.f32.mrf.mxu0
    %v1005 = vadd.f32 %v946, %v1004
    %v1006 = vpop.f32.mrf.mxu0
    %1007 = vdwg.mxu0
    %vm1008 = vcmp.ge.f32.partialorder %v1005, 0.0
    %v1009 = vmul.f32 %v1005, 0.2
    %v1010 = vsel %vm1008, %v1005, %v1009
    %v1011 = vpack.c.bf16 %v1010, %v1010
    %s1012 = scalar_lea.vmem [#allocation8], 320
    %v1013 = vld [vmem:[%s1012] sm:$0xf]
    %v1014 = vld [vmem:[%s1012 + $0x4] sm:$0xf]
    %v1015 = vld [vmem:[%s1012 + $0x8] sm:$0xf]
    %v1016 = vld [vmem:[%s1012 + $0xc] sm:$0xf]
    %v1017 = vld [vmem:[%s1012 + $0x10] sm:$0xf]
    %v1018 = vld [vmem:[%s1012 + $0x14] sm:$0xf]
    %v1019 = vld [vmem:[%s1012 + $0x18] sm:$0xf]
    %v1020 = vld [vmem:[%s1012 + $0x1c] sm:$0xf]
    %v1021 = vld [vmem:[%s1012 + $0x20] sm:$0xf]
    %v1022 = vld [vmem:[%s1012 + $0x24] sm:$0xf]
    %v1023 = vld [vmem:[%s1012 + $0x28] sm:$0xf]
    %v1024 = vld [vmem:[%s1012 + $0x2c] sm:$0xf]
    %v1025 = vld [vmem:[%s1012 + $0x30] sm:$0xf]
    %v1026 = vld [vmem:[%s1012 + $0x34] sm:$0xf]
    %v1027 = vld [vmem:[%s1012 + $0x38] sm:$0xf]
    %v1028 = vld [vmem:[%s1012 + $0x3c] sm:$0xf]
    %v1045 = vunpack.c.l.b16 %v1013
    %v1046 = vunpack.c.l.b16 %v1014
    %v1047 = vunpack.c.l.b16 %v1015
    %v1048 = vunpack.c.l.b16 %v1016
    %v1049 = vunpack.c.l.b16 %v1017
    %v1050 = vunpack.c.l.b16 %v1018
    %v1051 = vunpack.c.l.b16 %v1019
    %v1052 = vunpack.c.l.b16 %v1020
    %v1053 = vunpack.c.l.b16 %v1021
    %v1054 = vunpack.c.l.b16 %v1022
    %v1055 = vunpack.c.l.b16 %v1023
    %v1056 = vunpack.c.l.b16 %v1024
    %v1057 = vunpack.c.l.b16 %v1025
    %v1058 = vunpack.c.l.b16 %v1026
    %v1059 = vunpack.c.l.b16 %v1027
    %v1060 = vunpack.c.l.b16 %v1028
    %v1061 = vpack.c.b16 %v1046, %v1045
    %v1062 = vpack.c.b16 %v1048, %v1047
    %v1063 = vpack.c.b16 %v1050, %v1049
    %v1064 = vpack.c.b16 %v1052, %v1051
    %v1065 = vpack.c.b16 %v1054, %v1053
    %v1066 = vpack.c.b16 %v1056, %v1055
    %v1067 = vpack.c.b16 %v1058, %v1057
    %v1068 = vpack.c.b16 %v1060, %v1059
    %1077 = vmatpush.bf16.msra.mxu0 %v1068
    %1078 = vmatpush.bf16.msra.mxu0 %v1067
    %1079 = vmatpush.bf16.msra.mxu0 %v1066
    %1080 = vmatpush.bf16.msra.mxu0 %v1065
    %1081 = vmatpush.bf16.msra.mxu0 %v1064
    %1082 = vmatpush.bf16.msra.mxu0 %v1063
    %1083 = vmatpush.bf16.msra.mxu0 %v1062
    %1084 = vmatpush.bf16.msra.mxu0 %v1061
    %1085 = vmatmul.bf16.gmra.mxu0 %v1011
    %v1086 = vpop.f32.mrf.mxu0
    %v1087 = vadd.f32 0.0, %v1086
    %v1088 = vpop.f32.mrf.mxu0
    %1089 = vdwg.mxu0
    %v1090 = vadd.f32 %v926, %v1087
    %v1091 = vld [vmem:[#allocation10 + $0x5] sm:$0x1]
    %v1092 = vperm.slane %v1091, 0
    %v1093 = vadd.f32 %v1090, %v1092
    %v1094 = vpack.c.bf16 %v1093, %v1093
    %s1095 = scalar_lea.vmem [#allocation5], 384
    %v1096 = vld [vmem:[%s1095] sm:$0xf]
    %v1097 = vld [vmem:[%s1095 + $0x4] sm:$0xf]
    %v1098 = vld [vmem:[%s1095 + $0x8] sm:$0xf]
    %v1099 = vld [vmem:[%s1095 + $0xc] sm:$0xf]
    %v1100 = vld [vmem:[%s1095 + $0x10] sm:$0xf]
    %v1101 = vld [vmem:[%s1095 + $0x14] sm:$0xf]
    %v1102 = vld [vmem:[%s1095 + $0x18] sm:$0xf]
    %v1103 = vld [vmem:[%s1095 + $0x1c] sm:$0xf]
    %v1104 = vld [vmem:[%s1095 + $0x20] sm:$0xf]
    %v1105 = vld [vmem:[%s1095 + $0x24] sm:$0xf]
    %v1106 = vld [vmem:[%s1095 + $0x28] sm:$0xf]
    %v1107 = vld [vmem:[%s1095 + $0x2c] sm:$0xf]
    %v1108 = vld [vmem:[%s1095 + $0x30] sm:$0xf]
    %v1109 = vld [vmem:[%s1095 + $0x34] sm:$0xf]
    %v1110 = vld [vmem:[%s1095 + $0x38] sm:$0xf]
    %v1111 = vld [vmem:[%s1095 + $0x3c] sm:$0xf]
    %v1112 = vld [vmem:[#allocation7 + $0x6] sm:$0x1]
    %v1113 = vperm.slane %v1112, 0
    %v1130 = vunpack.c.l.b16 %v1096
    %v1131 = vunpack.c.l.b16 %v1097
    %v1132 = vunpack.c.l.b16 %v1098
    %v1133 = vunpack.c.l.b16 %v1099
    %v1134 = vunpack.c.l.b16 %v1100
    %v1135 = vunpack.c.l.b16 %v1101
    %v1136 = vunpack.c.l.b16 %v1102
    %v1137 = vunpack.c.l.b16 %v1103
    %v1138 = vunpack.c.l.b16 %v1104
    %v1139 = vunpack.c.l.b16 %v1105
    %v1140 = vunpack.c.l.b16 %v1106
    %v1141 = vunpack.c.l.b16 %v1107
    %v1142 = vunpack.c.l.b16 %v1108
    %v1143 = vunpack.c.l.b16 %v1109
    %v1144 = vunpack.c.l.b16 %v1110
    %v1145 = vunpack.c.l.b16 %v1111
    %v1146 = vpack.c.b16 %v1131, %v1130
    %v1147 = vpack.c.b16 %v1133, %v1132
    %v1148 = vpack.c.b16 %v1135, %v1134
    %v1149 = vpack.c.b16 %v1137, %v1136
    %v1150 = vpack.c.b16 %v1139, %v1138
    %v1151 = vpack.c.b16 %v1141, %v1140
    %v1152 = vpack.c.b16 %v1143, %v1142
    %v1153 = vpack.c.b16 %v1145, %v1144
    %1162 = vmatpush.bf16.msra.mxu0 %v1153
    %1163 = vmatpush.bf16.msra.mxu0 %v1152
    %1164 = vmatpush.bf16.msra.mxu0 %v1151
    %1165 = vmatpush.bf16.msra.mxu0 %v1150
    %1166 = vmatpush.bf16.msra.mxu0 %v1149
    %1167 = vmatpush.bf16.msra.mxu0 %v1148
    %1168 = vmatpush.bf16.msra.mxu0 %v1147
    %1169 = vmatpush.bf16.msra.mxu0 %v1146
    %1170 = vmatmul.bf16.gmra.mxu0 %v1094
    %v1171 = vpop.f32.mrf.mxu0
    %v1172 = vadd.f32 %v1113, %v1171
    %v1173 = vpop.f32.mrf.mxu0
    %1174 = vdwg.mxu0
    %vm1175 = vcmp.ge.f32.partialorder %v1172, 0.0
    %v1176 = vmul.f32 %v1172, 0.2
    %v1177 = vsel %vm1175, %v1172, %v1176
    %v1178 = vpack.c.bf16 %v1177, %v1177
    %s1179 = scalar_lea.vmem [#allocation8], 384
    %v1180 = vld [vmem:[%s1179] sm:$0xf]
    %v1181 = vld [vmem:[%s1179 + $0x4] sm:$0xf]
    %v1182 = vld [vmem:[%s1179 + $0x8] sm:$0xf]
    %v1183 = vld [vmem:[%s1179 + $0xc] sm:$0xf]
    %v1184 = vld [vmem:[%s1179 + $0x10] sm:$0xf]
    %v1185 = vld [vmem:[%s1179 + $0x14] sm:$0xf]
    %v1186 = vld [vmem:[%s1179 + $0x18] sm:$0xf]
    %v1187 = vld [vmem:[%s1179 + $0x1c] sm:$0xf]
    %v1188 = vld [vmem:[%s1179 + $0x20] sm:$0xf]
    %v1189 = vld [vmem:[%s1179 + $0x24] sm:$0xf]
    %v1190 = vld [vmem:[%s1179 + $0x28] sm:$0xf]
    %v1191 = vld [vmem:[%s1179 + $0x2c] sm:$0xf]
    %v1192 = vld [vmem:[%s1179 + $0x30] sm:$0xf]
    %v1193 = vld [vmem:[%s1179 + $0x34] sm:$0xf]
    %v1194 = vld [vmem:[%s1179 + $0x38] sm:$0xf]
    %v1195 = vld [vmem:[%s1179 + $0x3c] sm:$0xf]
    %v1212 = vunpack.c.l.b16 %v1180
    %v1213 = vunpack.c.l.b16 %v1181
    %v1214 = vunpack.c.l.b16 %v1182
    %v1215 = vunpack.c.l.b16 %v1183
    %v1216 = vunpack.c.l.b16 %v1184
    %v1217 = vunpack.c.l.b16 %v1185
    %v1218 = vunpack.c.l.b16 %v1186
    %v1219 = vunpack.c.l.b16 %v1187
    %v1220 = vunpack.c.l.b16 %v1188
    %v1221 = vunpack.c.l.b16 %v1189
    %v1222 = vunpack.c.l.b16 %v1190
    %v1223 = vunpack.c.l.b16 %v1191
    %v1224 = vunpack.c.l.b16 %v1192
    %v1225 = vunpack.c.l.b16 %v1193
    %v1226 = vunpack.c.l.b16 %v1194
    %v1227 = vunpack.c.l.b16 %v1195
    %v1228 = vpack.c.b16 %v1213, %v1212
    %v1229 = vpack.c.b16 %v1215, %v1214
    %v1230 = vpack.c.b16 %v1217, %v1216
    %v1231 = vpack.c.b16 %v1219, %v1218
    %v1232 = vpack.c.b16 %v1221, %v1220
    %v1233 = vpack.c.b16 %v1223, %v1222
    %v1234 = vpack.c.b16 %v1225, %v1224
    %v1235 = vpack.c.b16 %v1227, %v1226
    %1244 = vmatpush.bf16.msra.mxu0 %v1235
    %1245 = vmatpush.bf16.msra.mxu0 %v1234
    %1246 = vmatpush.bf16.msra.mxu0 %v1233
    %1247 = vmatpush.bf16.msra.mxu0 %v1232
    %1248 = vmatpush.bf16.msra.mxu0 %v1231
    %1249 = vmatpush.bf16.msra.mxu0 %v1230
    %1250 = vmatpush.bf16.msra.mxu0 %v1229
    %1251 = vmatpush.bf16.msra.mxu0 %v1228
    %1252 = vmatmul.bf16.gmra.mxu0 %v1178
    %v1253 = vpop.f32.mrf.mxu0
    %v1254 = vadd.f32 0.0, %v1253
    %v1255 = vpop.f32.mrf.mxu0
    %1256 = vdwg.mxu0
    %v1257 = vadd.f32 %v1093, %v1254
    %v1258 = vld [vmem:[#allocation10 + $0x6] sm:$0x1]
    %v1259 = vperm.slane %v1258, 0
    %v1260 = vadd.f32 %v1257, %v1259
    %v1261 = vpack.c.bf16 %v1260, %v1260
    %s1262 = scalar_lea.vmem [#allocation5], 448
    %v1263 = vld [vmem:[%s1262] sm:$0xf]
    %v1264 = vld [vmem:[%s1262 + $0x4] sm:$0xf]
    %v1265 = vld [vmem:[%s1262 + $0x8] sm:$0xf]
    %v1266 = vld [vmem:[%s1262 + $0xc] sm:$0xf]
    %v1267 = vld [vmem:[%s1262 + $0x10] sm:$0xf]
    %v1268 = vld [vmem:[%s1262 + $0x14] sm:$0xf]
    %v1269 = vld [vmem:[%s1262 + $0x18] sm:$0xf]
    %v1270 = vld [vmem:[%s1262 + $0x1c] sm:$0xf]
    %v1271 = vld [vmem:[%s1262 + $0x20] sm:$0xf]
    %v1272 = vld [vmem:[%s1262 + $0x24] sm:$0xf]
    %v1273 = vld [vmem:[%s1262 + $0x28] sm:$0xf]
    %v1274 = vld [vmem:[%s1262 + $0x2c] sm:$0xf]
    %v1275 = vld [vmem:[%s1262 + $0x30] sm:$0xf]
    %v1276 = vld [vmem:[%s1262 + $0x34] sm:$0xf]
    %v1277 = vld [vmem:[%s1262 + $0x38] sm:$0xf]
    %v1278 = vld [vmem:[%s1262 + $0x3c] sm:$0xf]
    %v1279 = vld [vmem:[#allocation7 + $0x7] sm:$0x1]
    %v1280 = vperm.slane %v1279, 0
    %v1297 = vunpack.c.l.b16 %v1263
    %v1298 = vunpack.c.l.b16 %v1264
    %v1299 = vunpack.c.l.b16 %v1265
    %v1300 = vunpack.c.l.b16 %v1266
    %v1301 = vunpack.c.l.b16 %v1267
    %v1302 = vunpack.c.l.b16 %v1268
    %v1303 = vunpack.c.l.b16 %v1269
    %v1304 = vunpack.c.l.b16 %v1270
    %v1305 = vunpack.c.l.b16 %v1271
    %v1306 = vunpack.c.l.b16 %v1272
    %v1307 = vunpack.c.l.b16 %v1273
    %v1308 = vunpack.c.l.b16 %v1274
    %v1309 = vunpack.c.l.b16 %v1275
    %v1310 = vunpack.c.l.b16 %v1276
    %v1311 = vunpack.c.l.b16 %v1277
    %v1312 = vunpack.c.l.b16 %v1278
    %v1313 = vpack.c.b16 %v1298, %v1297
    %v1314 = vpack.c.b16 %v1300, %v1299
    %v1315 = vpack.c.b16 %v1302, %v1301
    %v1316 = vpack.c.b16 %v1304, %v1303
    %v1317 = vpack.c.b16 %v1306, %v1305
    %v1318 = vpack.c.b16 %v1308, %v1307
    %v1319 = vpack.c.b16 %v1310, %v1309
    %v1320 = vpack.c.b16 %v1312, %v1311
    %1329 = vmatpush.bf16.msra.mxu0 %v1320
    %1330 = vmatpush.bf16.msra.mxu0 %v1319
    %1331 = vmatpush.bf16.msra.mxu0 %v1318
    %1332 = vmatpush.bf16.msra.mxu0 %v1317
    %1333 = vmatpush.bf16.msra.mxu0 %v1316
    %1334 = vmatpush.bf16.msra.mxu0 %v1315
    %1335 = vmatpush.bf16.msra.mxu0 %v1314
    %1336 = vmatpush.bf16.msra.mxu0 %v1313
    %1337 = vmatmul.bf16.gmra.mxu0 %v1261
    %v1338 = vpop.f32.mrf.mxu0
    %v1339 = vadd.f32 %v1280, %v1338
    %v1340 = vpop.f32.mrf.mxu0
    %1341 = vdwg.mxu0
    %vm1342 = vcmp.ge.f32.partialorder %v1339, 0.0
    %v1343 = vmul.f32 %v1339, 0.2
    %v1344 = vsel %vm1342, %v1339, %v1343
    %v1345 = vpack.c.bf16 %v1344, %v1344
    %s1346 = scalar_lea.vmem [#allocation8], 448
    %v1347 = vld [vmem:[%s1346] sm:$0xf]
    %v1348 = vld [vmem:[%s1346 + $0x4] sm:$0xf]
    %v1349 = vld [vmem:[%s1346 + $0x8] sm:$0xf]
    %v1350 = vld [vmem:[%s1346 + $0xc] sm:$0xf]
    %v1351 = vld [vmem:[%s1346 + $0x10] sm:$0xf]
    %v1352 = vld [vmem:[%s1346 + $0x14] sm:$0xf]
    %v1353 = vld [vmem:[%s1346 + $0x18] sm:$0xf]
    %v1354 = vld [vmem:[%s1346 + $0x1c] sm:$0xf]
    %v1355 = vld [vmem:[%s1346 + $0x20] sm:$0xf]
    %v1356 = vld [vmem:[%s1346 + $0x24] sm:$0xf]
    %v1357 = vld [vmem:[%s1346 + $0x28] sm:$0xf]
    %v1358 = vld [vmem:[%s1346 + $0x2c] sm:$0xf]
    %v1359 = vld [vmem:[%s1346 + $0x30] sm:$0xf]
    %v1360 = vld [vmem:[%s1346 + $0x34] sm:$0xf]
    %v1361 = vld [vmem:[%s1346 + $0x38] sm:$0xf]
    %v1362 = vld [vmem:[%s1346 + $0x3c] sm:$0xf]
    %v1379 = vunpack.c.l.b16 %v1347
    %v1380 = vunpack.c.l.b16 %v1348
    %v1381 = vunpack.c.l.b16 %v1349
    %v1382 = vunpack.c.l.b16 %v1350
    %v1383 = vunpack.c.l.b16 %v1351
    %v1384 = vunpack.c.l.b16 %v1352
    %v1385 = vunpack.c.l.b16 %v1353
    %v1386 = vunpack.c.l.b16 %v1354
    %v1387 = vunpack.c.l.b16 %v1355
    %v1388 = vunpack.c.l.b16 %v1356
    %v1389 = vunpack.c.l.b16 %v1357
    %v1390 = vunpack.c.l.b16 %v1358
    %v1391 = vunpack.c.l.b16 %v1359
    %v1392 = vunpack.c.l.b16 %v1360
    %v1393 = vunpack.c.l.b16 %v1361
    %v1394 = vunpack.c.l.b16 %v1362
    %v1395 = vpack.c.b16 %v1380, %v1379
    %v1396 = vpack.c.b16 %v1382, %v1381
    %v1397 = vpack.c.b16 %v1384, %v1383
    %v1398 = vpack.c.b16 %v1386, %v1385
    %v1399 = vpack.c.b16 %v1388, %v1387
    %v1400 = vpack.c.b16 %v1390, %v1389
    %v1401 = vpack.c.b16 %v1392, %v1391
    %v1402 = vpack.c.b16 %v1394, %v1393
    %1411 = vmatpush.bf16.msra.mxu0 %v1402
    %1412 = vmatpush.bf16.msra.mxu0 %v1401
    %1413 = vmatpush.bf16.msra.mxu0 %v1400
    %1414 = vmatpush.bf16.msra.mxu0 %v1399
    %1415 = vmatpush.bf16.msra.mxu0 %v1398
    %1416 = vmatpush.bf16.msra.mxu0 %v1397
    %1417 = vmatpush.bf16.msra.mxu0 %v1396
    %1418 = vmatpush.bf16.msra.mxu0 %v1395
    %1419 = vmatmul.bf16.gmra.mxu0 %v1345
    %v1420 = vpop.f32.mrf.mxu0
    %v1421 = vadd.f32 0.0, %v1420
    %v1422 = vpop.f32.mrf.mxu0
    %1423 = vdwg.mxu0
    %v1424 = vadd.f32 %v1260, %v1421
    %v1425 = vld [vmem:[#allocation10 + $0x7] sm:$0x1]
    %v1426 = vperm.slane %v1425, 0
    %v1427 = vadd.f32 %v1424, %v1426
    %1428 = vst [vmem:[#allocation11] sm:$0xff] %v1427
    // Predicated region
    $region42: #{tpu_custom_call.1} parent=1 // pred_check
      _
    $region43: #{tpu_custom_call.1} parent=1 // pred_check_branch
      %1430 = sbr.rel (0) target = $region45
    $region44: #{tpu_custom_call.1} parent=1 // pred_region
      %1432 = vsyncadd [#allocation4], 0
      %s1434 = sshll.u32 [#allocation11], 4
      %s1435 = int_to_ptr.vmem [resolvable:$true] %s1434
      %s1436 = sshll.u32 %s5, 4
      %s1437 = int_to_ptr.hbm [resolvable:$true] %s1436
      %1439 = dma.vmem_to_hbm [thread:$0]  %s1435, 128, %s1437, [#allocation4]
    $region45: #{tpu_custom_call.1} parent=1 // pred_fallthru
      _
    // Predicated region
    $region46: #{tpu_custom_call.1} parent=1 // pred_check
      _
    $region47: #{tpu_custom_call.1} parent=1 // pred_check_branch
      %1441 = sbr.rel (0) target = $region49
    $region48: #{tpu_custom_call.1} parent=1 // pred_region
      %1443 = dma.done [#allocation4], 128
    $region49: #{tpu_custom_call.1} parent=1 // pred_fallthru
      _
    %1444 = vsyncpa [#allocation3], 1
    %1445 = vsyncpa [#allocation6], 1
    %1446 = vsyncpa [#allocation9], 1
    %1447 = vsyncpa [#allocation4], 1

</llo_original>
